<compile_context>
chip_gen: v5e
topology: v5e:2x2
jax: 0.10.0
libtpu: 0.0.40
codegen_flags: <defaults>
</compile_context>

<pallas_src>
import functools

import jax
import jax.numpy as jnp
from jax import lax
from jax.experimental import pallas as pl
from jax.experimental.pallas import tpu as pltpu

BN_EPS = 1e-5
LANE = 128


def _round_up(x, m):
    return (x + m - 1) // m * m


def _vmem_limit_bytes():
    """32 MiB on 64-MiB-VMEM parts (v7x), 64 MiB on 128-MiB parts (v5e/v6e)."""
    try:
        phys = int(pltpu.get_tpu_info().vmem_capacity_bytes)
    except Exception:
        phys = 128 * 1024 * 1024
    return max(32 * 1024 * 1024, min(phys // 2, 96 * 1024 * 1024))


def _pick_tm(M, Kd, Cp, vmem_limit):
    """Rows per matmul tile: as big as the VMEM budget allows (bf16 patches +
    bf16 y, double-buffered, weight resident), capped at 2048, but small
    enough that the grid has >= 2 tiles when M allows (v7x megacore)."""
    budget = vmem_limit // 2
    per_row = 2 * 2 * (Kd + Cp)                 # bf16, two pipeline buffers
    tm = max(16, (budget - 4 * Kd * Cp) // per_row)
    tm = min(2048, tm, _round_up(pl.cdiv(M, 2), 16))
    if tm >= 256:
        tm = (tm // 256) * 256                  # keeps the in-kernel row chunks even
    else:
        tm = _round_up(tm, 16)                  # bf16 sublane packing
    return tm


def _pick_ta(M_pad, tm, Cp, vmem_limit):
    """Affine/activation tile: largest multiple of tm that divides M_pad and
    fits the VMEM budget (<=4096 rows), keeping >=2 grid tiles when possible."""
    cap = min(4096, max(tm, (vmem_limit // 2) // (8 * Cp)))
    ntiles = M_pad // tm
    ta = tm
    for k in range(1, ntiles + 1):
        if ntiles % k == 0 and tm * k <= cap and (ntiles // k >= 2 or ntiles < 2):
            ta = tm * k
    return ta


# ----------------------------------------------------------------------------
# Pallas kernels
# ----------------------------------------------------------------------------
def _make_matmul_stats_kernel(rows):
    """bf16 MXU matmul tile -> bf16 y + per-tile f32 per-column sum / sum-sq.
    The dot + epilogue is chunked over `rows`-row blocks (unrolled fori_loop)
    so the live f32 tile stays small; each chunk's bf16 is stored immediately."""
    def kernel(p_ref, w_ref, y_ref, sum_ref, sq_ref):
        cp = w_ref.shape[1]
        n_chunks = p_ref.shape[0] // rows

        def body(c, carry):
            s, q = carry
            r0 = pl.multiple_of(c * rows, rows)
            y = jnp.dot(p_ref[pl.ds(r0, rows), :], w_ref[...],
                        preferred_element_type=jnp.float32)
            y_ref[pl.ds(r0, rows), :] = y.astype(y_ref.dtype)
            return (s + jnp.sum(y, axis=0, keepdims=True),
                    q + jnp.sum(y * y, axis=0, keepdims=True))

        zero = jnp.zeros((1, cp), jnp.float32)
        s, q = lax.fori_loop(0, n_chunks, body, (zero, zero), unroll=True)
        sum_ref[...] = s[None]
        sq_ref[...] = q[None]
    return kernel


def _make_matmul_act_kernel(rows, act):
    """bf16 MXU matmul tile with the activation fused in the epilogue.  Used
    for the final (no-BatchNorm) layer: single pass, no stats outputs."""
    def kernel(p_ref, w_ref, y_ref):
        n_chunks = p_ref.shape[0] // rows

        def body(c, carry):
            r0 = pl.multiple_of(c * rows, rows)
            y = jnp.dot(p_ref[pl.ds(r0, rows), :], w_ref[...],
                        preferred_element_type=jnp.float32)
            if act == "tanh":
                y = jnp.tanh(y)
            elif act == "relu":
                y = jnp.maximum(y, 0.0)
            y_ref[pl.ds(r0, rows), :] = y.astype(y_ref.dtype)
            return carry

        lax.fori_loop(0, n_chunks, body, 0, unroll=True)
    return kernel


def _make_affine_act_kernel(act):
    def kernel(y_ref, scale_ref, shift_ref, o_ref):
        v = y_ref[...].astype(jnp.float32) * scale_ref[...] + shift_ref[...]
        if act == "relu":
            v = jnp.maximum(v, 0.0)
        elif act == "tanh":
            v = jnp.tanh(v)
        o_ref[...] = v.astype(o_ref.dtype)
    return kernel


def matmul_with_stats(lhs, wmat, tm, vmem_limit):
    M, Kd = lhs.shape
    Cp = wmat.shape[1]
    grid = M // tm
    rows = tm if tm < 256 else 256
    # TODO(synk): pipeline_mode=pl.Buffered(1) on the constant-index weight
    # BlockSpec would free one VMEM copy of the weight; left at the default
    # double-buffering for portability (the VMEM budget accounts for 2 copies).
    return pl.pallas_call(
        _make_matmul_stats_kernel(rows),
        out_shape=(
            jax.ShapeDtypeStruct((M, Cp), jnp.bfloat16),        # y (flat, lane padded)
            jax.ShapeDtypeStruct((grid, 1, Cp), jnp.float32),   # per-tile column sums
            jax.ShapeDtypeStruct((grid, 1, Cp), jnp.float32),   # per-tile column sum sq
        ),
        grid_spec=pltpu.PrefetchScalarGridSpec(
            num_scalar_prefetch=0,
            grid=(grid,),
            in_specs=[
                pl.BlockSpec((tm, Kd), lambda i: (i, 0)),
                pl.BlockSpec((Kd, Cp), lambda i: (0, 0)),
            ],
            out_specs=(
                pl.BlockSpec((tm, Cp), lambda i: (i, 0)),
                pl.BlockSpec((1, 1, Cp), lambda i: (i, 0, 0)),
                pl.BlockSpec((1, 1, Cp), lambda i: (i, 0, 0)),
            ),
        ),
        compiler_params=pltpu.CompilerParams(
            dimension_semantics=("parallel",),      # no shared accumulator
            vmem_limit_bytes=vmem_limit),
    )(lhs, wmat)


def matmul_act(lhs, wmat, tm, act, vmem_limit):
    M, Kd = lhs.shape
    Cp = wmat.shape[1]
    grid = M // tm
    rows = tm if tm < 256 else 256
    return pl.pallas_call(
        _make_matmul_act_kernel(rows, act),
        out_shape=jax.ShapeDtypeStruct((M, Cp), jnp.bfloat16),
        grid_spec=pltpu.PrefetchScalarGridSpec(
            num_scalar_prefetch=0,
            grid=(grid,),
            in_specs=[
                pl.BlockSpec((tm, Kd), lambda i: (i, 0)),
                pl.BlockSpec((Kd, Cp), lambda i: (0, 0)),
            ],
            out_specs=pl.BlockSpec((tm, Cp), lambda i: (i, 0)),
        ),
        compiler_params=pltpu.CompilerParams(
            dimension_semantics=("parallel",),
            vmem_limit_bytes=vmem_limit),
    )(lhs, wmat)


def affine_act(y, scale, shift, act, ta, vmem_limit):
    M, Cp = y.shape
    return pl.pallas_call(
        _make_affine_act_kernel(act),
        out_shape=jax.ShapeDtypeStruct((M, Cp), jnp.bfloat16),
        grid_spec=pltpu.PrefetchScalarGridSpec(
            num_scalar_prefetch=0,
            grid=(M // ta,),
            in_specs=[
                pl.BlockSpec((ta, Cp), lambda i: (i, 0)),
                pl.BlockSpec((1, Cp), lambda i: (0, 0)),
                pl.BlockSpec((1, Cp), lambda i: (0, 0)),
            ],
            out_specs=pl.BlockSpec((ta, Cp), lambda i: (i, 0)),
        ),
        compiler_params=pltpu.CompilerParams(
            dimension_semantics=("parallel",),
            vmem_limit_bytes=vmem_limit),
    )(y, scale, shift)


# ----------------------------------------------------------------------------
# JAX-side glue: ConvTranspose2d -> GEMM (sub-pixel / dense formulations)
# ----------------------------------------------------------------------------
def _subpixel_patches(x):
    """3x3 tap patches of the 1-padded UN-dilated NHWC input — the only taps
    that can be non-zero across the 4 stride-2 output phases.
    Returns (N*H*W, 9*Cin), tap order (rh, rw, cin)."""
    N, H, W, Cin = x.shape
    xp = jnp.pad(x, ((0, 0), (1, 1), (1, 1), (0, 0)))
    taps = [xp[:, rh:rh + H, rw:rw + W, :] for rh in range(3) for rw in range(3)]
    patches = jnp.stack(taps, axis=3)                        # (N, H, W, 9, Cin)
    return patches.reshape(N * H * W, 9 * Cin)


def _subpixel_weight_matrix(w):
    """PyTorch ConvTranspose2d weight (Cin, Cout, 4, 4), stride 2, padding 1 ->
    merged "sub-pixel" GEMM weight (9*Cin, 4*Cout): row order (rh, rw, cin),
    column order (ph, pw, cout).  For output phase (ph, pw) only the taps with
    rh-ph, rw-pw in {0, 1} contribute; the structural zeros of the dilated
    formulation are folded into the weight instead of the patches."""
    Cin, Cout, K, _ = w.shape
    assert K == 4
    zero = jnp.zeros((Cin, Cout), w.dtype)
    blocks = []
    for rh in range(3):
        for rw in range(3):
            phases = []
            for ph in range(2):
                for pw in range(2):
                    if 0 <= rh - ph <= 1 and 0 <= rw - pw <= 1:
                        phases.append(w[:, :, 3 - 2 * rh + ph, 3 - 2 * rw + pw])
                    else:
                        phases.append(zero)
            blocks.append(jnp.stack(phases, axis=1))          # (Cin, 4, Cout)
    return jnp.stack(blocks, axis=0).reshape(9 * Cin, 4 * Cout)


def _dense_weight_matrix(w):
    """ConvTranspose2d over a 1x1 input (stride 1, padding 0):
    y[oh, ow, cout] = sum_cin x[cin] * w[cin, cout, oh, ow]
    -> GEMM weight (Cin, K*K*Cout), column order (oh, ow, cout)."""
    Cin, Cout, K, _ = w.shape
    return jnp.transpose(w, (0, 2, 3, 1)).reshape(Cin, K * K * Cout)


def generator_layer(x_nhwc, w, K, s, p, gamma, beta, act, vmem_limit):
    N, Hin, Win, Cin = x_nhwc.shape
    Cout = w.shape[1]

    if s == 1:
        # First DCGAN layer: 1x1 latent -> KxK map, a single dense GEMM.
        assert Hin == 1 and Win == 1 and p == 0
        lhs = x_nhwc.reshape(N, Cin)
        wmat = _dense_weight_matrix(w)
        groups = K * K
        Ho = Wo = K
    else:
        assert s == 2 and K == 4 and p == 1
        lhs = _subpixel_patches(x_nhwc)
        wmat = _subpixel_weight_matrix(w)
        groups = 4
        Ho, Wo = 2 * Hin, 2 * Win

    Ct = groups * Cout
    Cp = _round_up(Ct, LANE)                       # lane-dense output columns
    wmat = jnp.pad(wmat, ((0, 0), (0, Cp - Ct))).astype(jnp.bfloat16)
    lhs = lhs.astype(jnp.bfloat16)

    M, Kd = lhs.shape
    tm = _pick_tm(M, Kd, Cp, vmem_limit)
    M_pad = _round_up(M, tm)
    if M_pad != M:
        lhs = jnp.pad(lhs, ((0, M_pad - M), (0, 0)))

    if gamma is None:
        # Final layer: no BatchNorm -> fuse tanh into the matmul epilogue,
        # skip stats, single pass over the largest activation.
        out_flat = matmul_act(lhs, wmat, tm, act, vmem_limit)
    else:
        y, psum, psq = matmul_with_stats(lhs, wmat, tm, vmem_limit)
        # Per-column partial sums -> per-channel batch stats (padded rows and
        # padded columns contribute exact zeros; divide by the real count).
        col_sum = jnp.sum(psum, axis=(0, 1))[:Ct].reshape(groups, Cout)
        col_sq = jnp.sum(psq, axis=(0, 1))[:Ct].reshape(groups, Cout)
        cnt = float(M * groups)                     # == N * Ho * Wo
        mean = col_sum.sum(0) / cnt
        var = jnp.maximum(col_sq.sum(0) / cnt - mean * mean, 0.0)
        ch_scale = gamma / jnp.sqrt(var + BN_EPS)
        ch_shift = beta - mean * ch_scale
        scale = jnp.zeros((Cp,), jnp.float32).at[:Ct].set(jnp.tile(ch_scale, groups))
        shift = jnp.zeros((Cp,), jnp.float32).at[:Ct].set(jnp.tile(ch_shift, groups))
        ta = _pick_ta(M_pad, tm, Cp, vmem_limit)
        out_flat = affine_act(y, scale[None, :], shift[None, :], act, ta, vmem_limit)

    # Drop row/lane padding and scatter the phase column groups back to NHWC.
    # TODO(synk): fold this un-pad + pixel-shuffle and the next layer's pad +
    # 3x3 patch extraction into a single fused producer (or move tap selection
    # into the matmul grid) to cut one more full-activation HBM round trip.
    out_flat = out_flat[:M, :Ct]
    if s == 1:
        return out_flat.reshape(N, Ho, Wo, Cout)
    y6 = out_flat.reshape(N, Hin, Win, 2, 2, Cout)          # (.., ph, pw, c)
    return y6.transpose(0, 1, 3, 2, 4, 5).reshape(N, Ho, Wo, Cout)


# ----------------------------------------------------------------------------
# Generator: params + forward
# ----------------------------------------------------------------------------
_CONV_CFG = [(4, 1, 0), (4, 2, 1), (4, 2, 1), (4, 2, 1), (4, 2, 1)]


def init_generator_params(key, nz, ngf, nc):
    chans = [(nz, ngf * 8), (ngf * 8, ngf * 4), (ngf * 4, ngf * 2),
             (ngf * 2, ngf), (ngf, nc)]
    params = []
    for i, (cin, cout) in enumerate(chans):
        key, k = jax.random.split(key)
        w = 0.02 * jax.random.normal(k, (cin, cout, 4, 4), jnp.float32)  # DCGAN init
        if i < 4:  # BatchNorm2d default affine params
            gamma = jnp.ones((cout,), jnp.float32)
            beta = jnp.zeros((cout,), jnp.float32)
        else:
            gamma = beta = None
        params.append((w, gamma, beta))
    return params


def generator_forward(params, z):
    vmem_limit = _vmem_limit_bytes()
    x = jnp.transpose(z, (0, 2, 3, 1)).astype(jnp.bfloat16)     # NCHW -> NHWC bf16
    for i, ((w, g, b), (K, s, p)) in enumerate(zip(params, _CONV_CFG)):
        act = "tanh" if i == len(params) - 1 else "relu"
        x = generator_layer(x, w, K, s, p, g, b, act, vmem_limit)
    return jnp.transpose(x, (0, 3, 1, 2)).astype(jnp.float32)   # back to NCHW f32


# Pure-JAX f32 reference (lax conv with lhs dilation == transposed conv).
def reference_forward(params, z):
    x = z
    for i, ((w, g, b), (K, s, p)) in enumerate(zip(params, _CONV_CFG)):
        rhs = jnp.transpose(w, (1, 0, 2, 3))[:, :, ::-1, ::-1]
        pad = K - 1 - p
        y = lax.conv_general_dilated(
            x, rhs, window_strides=(1, 1), padding=[(pad, pad), (pad, pad)],
            lhs_dilation=(s, s), dimension_numbers=("NCHW", "OIHW", "NCHW"))
        if g is not None:
            mean = jnp.mean(y, axis=(0, 2, 3), keepdims=True)
            var = jnp.mean((y - mean) ** 2, axis=(0, 2, 3), keepdims=True)
            y = (y - mean) / jnp.sqrt(var + BN_EPS)
            y = y * g[None, :, None, None] + b[None, :, None, None]
            y = jnp.maximum(y, 0.0)
        else:
            y = jnp.tanh(y)
        x = y
    return x


if __name__ == "__main__":
    nz, ngf, nc, batch = 8, 8, 3, 2
    key = jax.random.PRNGKey(0)
    key, kz = jax.random.split(key)
    z = jax.random.normal(kz, (batch, nz, 1, 1), jnp.float32)
    params = init_generator_params(key, nz, ngf, nc)

    fwd = jax.jit(functools.partial(generator_forward, params))
    out = fwd(z)
    jax.block_until_ready(out)
    assert out.shape == (batch, nc, 64, 64), out.shape

    ref = reference_forward(params, z)
    err = float(jnp.max(jnp.abs(out - ref)))
    assert err < 5e-2, f"max abs error vs reference: {err}"

    print("KERNEL_OK")
</pallas_src>

<mosaic_0001>
module attributes {stable_mosaic.version = 11 : i64} {
  func.func @kernel(%arg0: i32, %arg1: memref<16x8xbf16, #tpu.memory_space<vmem>>, %arg2: memref<8x1024xbf16, #tpu.memory_space<vmem>>, %arg3: memref<16x1024xbf16, #tpu.memory_space<vmem>>, %arg4: memref<1x1x1024xf32, #tpu.memory_space<vmem>>, %arg5: memref<1x1x1024xf32, #tpu.memory_space<vmem>>) attributes {dimension_semantics = [#tpu.dimension_semantics<parallel>], iteration_bounds = array<i64: 1>, scalar_prefetch = 0 : i64, scratch_operands = 0 : i64, tpu.core_type = #tpu.core_type<tc>, window_params = [{transform_indices = @transform_0, window_bounds = array<i64: 16, 8>}, {pipeline_mode = #tpu.pipeline_mode<synchronous>, transform_indices = @transform_1, window_bounds = array<i64: 8, 1024>}, {transform_indices = @transform_2, window_bounds = array<i64: 16, 1024>}, {transform_indices = @transform_3, window_bounds = array<i64: 1, 1, 1024>}, {transform_indices = @transform_4, window_bounds = array<i64: 1, 1, 1024>}]} {
    %cst = arith.constant 0.000000e+00 : f32
    %0 = vector.broadcast %cst : f32 to vector<1x1024xf32>
    %c0_i32 = arith.constant 0 : i32
    %c16_i32 = arith.constant 16 : i32
    %1 = arith.muli %c0_i32, %c16_i32 : i32
    %2 = tpu.assume_multiple %1, 16 : i32
    %3 = arith.index_cast %2 : i32 to index
    %c0 = arith.constant 0 : index
    %4 = vector.load %arg1[%3, %c0] : memref<16x8xbf16, #tpu.memory_space<vmem>>, vector<16x8xbf16>
    %c0_0 = arith.constant 0 : index
    %c0_1 = arith.constant 0 : index
    %5 = vector.load %arg2[%c0_0, %c0_1] : memref<8x1024xbf16, #tpu.memory_space<vmem>>, vector<8x1024xbf16>
    %cst_2 = arith.constant dense<0.000000e+00> : vector<16x1024xf32>
    %6 = tpu.matmul %4, %5, %cst_2 {dimension_numbers = #tpu.dot_dimension_numbers<[1], [0], [0], [1], [0, 0, 1, 1], [], []>} : vector<16x8xbf16>, vector<8x1024xbf16>, vector<16x1024xf32> -> vector<16x1024xf32>
    %7 = arith.truncf %6 : vector<16x1024xf32> to vector<16x1024xbf16>
    %8 = arith.index_cast %2 : i32 to index
    %c0_3 = arith.constant 0 : index
    %9 = vector.load %arg3[%8, %c0_3] : memref<16x1024xbf16, #tpu.memory_space<vmem>>, vector<16x1024xbf16>
    tpu.vector_store %arg3[%8, %c0_3], %7 {strides = array<i32>} : memref<16x1024xbf16, #tpu.memory_space<vmem>>, vector<16x1024xbf16>,
    %cst_4 = arith.constant dense<0.000000e+00> : vector<1024xf32>
    %10 = vector.multi_reduction <add>, %6, %cst_4 [0] : vector<16x1024xf32> to vector<1024xf32>
    %11 = vector.shape_cast %10 : vector<1024xf32> to vector<1x1024xf32>
    %12 = arith.addf %0, %11 : vector<1x1024xf32>
    %13 = arith.mulf %6, %6 : vector<16x1024xf32>
    %cst_5 = arith.constant dense<0.000000e+00> : vector<1024xf32>
    %14 = vector.multi_reduction <add>, %13, %cst_5 [0] : vector<16x1024xf32> to vector<1024xf32>
    %15 = vector.shape_cast %14 : vector<1024xf32> to vector<1x1024xf32>
    %16 = arith.addf %0, %15 : vector<1x1024xf32>
    %c1_i32 = arith.constant 1 : i32
    %17 = vector.shape_cast %12 : vector<1x1024xf32> to vector<1x1x1024xf32>
    %c0_6 = arith.constant 0 : index
    %c0_7 = arith.constant 0 : index
    %c0_8 = arith.constant 0 : index
    %18 = vector.load %arg4[%c0_6, %c0_7, %c0_8] : memref<1x1x1024xf32, #tpu.memory_space<vmem>>, vector<1x1x1024xf32>
    tpu.vector_store %arg4[%c0_6, %c0_7, %c0_8], %17 {strides = array<i32>} : memref<1x1x1024xf32, #tpu.memory_space<vmem>>, vector<1x1x1024xf32>,
    %19 = vector.shape_cast %16 : vector<1x1024xf32> to vector<1x1x1024xf32>
    %c0_9 = arith.constant 0 : index
    %c0_10 = arith.constant 0 : index
    %c0_11 = arith.constant 0 : index
    %20 = vector.load %arg5[%c0_9, %c0_10, %c0_11] : memref<1x1x1024xf32, #tpu.memory_space<vmem>>, vector<1x1x1024xf32>
    tpu.vector_store %arg5[%c0_9, %c0_10, %c0_11], %19 {strides = array<i32>} : memref<1x1x1024xf32, #tpu.memory_space<vmem>>, vector<1x1x1024xf32>,
    return
  }
  func.func @transform_0(%arg0: i32) -> (i32, i32) {
    %c0_i32 = arith.constant 0 : i32
    %c0_i32_0 = arith.constant 0 : i32
    return %arg0, %c0_i32 : i32, i32
  }
  func.func @transform_1(%arg0: i32) -> (i32, i32) {
    %c0_i32 = arith.constant 0 : i32
    %c0_i32_0 = arith.constant 0 : i32
    %c0_i32_1 = arith.constant 0 : i32
    return %c0_i32, %c0_i32_0 : i32, i32
  }
  func.func @transform_2(%arg0: i32) -> (i32, i32) {
    %c0_i32 = arith.constant 0 : i32
    %c0_i32_0 = arith.constant 0 : i32
    return %arg0, %c0_i32 : i32, i32
  }
  func.func @transform_3(%arg0: i32) -> (i32, i32, i32) {
    %c0_i32 = arith.constant 0 : i32
    %c0_i32_0 = arith.constant 0 : i32
    %c0_i32_1 = arith.constant 0 : i32
    return %arg0, %c0_i32, %c0_i32_0 : i32, i32, i32
  }
  func.func @transform_4(%arg0: i32) -> (i32, i32, i32) {
    %c0_i32 = arith.constant 0 : i32
    %c0_i32_0 = arith.constant 0 : i32
    %c0_i32_1 = arith.constant 0 : i32
    return %arg0, %c0_i32, %c0_i32_0 : i32, i32, i32
  }
}

module attributes {stable_mosaic.version = 11 : i64} {
  func.func @kernel(%arg0: i32, %arg1: memref<16x1024xbf16, #tpu.memory_space<vmem>>, %arg2: memref<1x1024xf32, #tpu.memory_space<vmem>>, %arg3: memref<1x1024xf32, #tpu.memory_space<vmem>>, %arg4: memref<16x1024xbf16, #tpu.memory_space<vmem>>) attributes {dimension_semantics = [#tpu.dimension_semantics<parallel>], iteration_bounds = array<i64: 1>, scalar_prefetch = 0 : i64, scratch_operands = 0 : i64, tpu.core_type = #tpu.core_type<tc>, window_params = [{transform_indices = @transform_0, window_bounds = array<i64: 16, 1024>}, {pipeline_mode = #tpu.pipeline_mode<synchronous>, transform_indices = @transform_1, window_bounds = array<i64: 1, 1024>}, {pipeline_mode = #tpu.pipeline_mode<synchronous>, transform_indices = @transform_2, window_bounds = array<i64: 1, 1024>}, {transform_indices = @transform_3, window_bounds = array<i64: 16, 1024>}]} {
    %c0 = arith.constant 0 : index
    %c0_0 = arith.constant 0 : index
    %0 = vector.load %arg1[%c0, %c0_0] : memref<16x1024xbf16, #tpu.memory_space<vmem>>, vector<16x1024xbf16>
    %1 = arith.extf %0 : vector<16x1024xbf16> to vector<16x1024xf32>
    %c0_1 = arith.constant 0 : index
    %c0_2 = arith.constant 0 : index
    %2 = vector.load %arg2[%c0_1, %c0_2] : memref<1x1024xf32, #tpu.memory_space<vmem>>, vector<1x1024xf32>
    %3 = vector.broadcast %2 : vector<1x1024xf32> to vector<16x1024xf32>
    %4 = arith.mulf %1, %3 : vector<16x1024xf32>
    %c0_3 = arith.constant 0 : index
    %c0_4 = arith.constant 0 : index
    %5 = vector.load %arg3[%c0_3, %c0_4] : memref<1x1024xf32, #tpu.memory_space<vmem>>, vector<1x1024xf32>
    %6 = vector.broadcast %5 : vector<1x1024xf32> to vector<16x1024xf32>
    %7 = arith.addf %4, %6 : vector<16x1024xf32>
    %cst = arith.constant 0.000000e+00 : f32
    %8 = vector.broadcast %cst : f32 to vector<16x1024xf32>
    %9 = arith.maximumf %7, %8 : vector<16x1024xf32>
    %10 = arith.truncf %9 : vector<16x1024xf32> to vector<16x1024xbf16>
    %c0_5 = arith.constant 0 : index
    %c0_6 = arith.constant 0 : index
    %11 = vector.load %arg4[%c0_5, %c0_6] : memref<16x1024xbf16, #tpu.memory_space<vmem>>, vector<16x1024xbf16>
    tpu.vector_store %arg4[%c0_5, %c0_6], %10 {strides = array<i32>} : memref<16x1024xbf16, #tpu.memory_space<vmem>>, vector<16x1024xbf16>,
    return
  }
  func.func @transform_0(%arg0: i32) -> (i32, i32) {
    %c0_i32 = arith.constant 0 : i32
    %c0_i32_0 = arith.constant 0 : i32
    return %arg0, %c0_i32 : i32, i32
  }
  func.func @transform_1(%arg0: i32) -> (i32, i32) {
    %c0_i32 = arith.constant 0 : i32
    %c0_i32_0 = arith.constant 0 : i32
    %c0_i32_1 = arith.constant 0 : i32
    return %c0_i32, %c0_i32_0 : i32, i32
  }
  func.func @transform_2(%arg0: i32) -> (i32, i32) {
    %c0_i32 = arith.constant 0 : i32
    %c0_i32_0 = arith.constant 0 : i32
    %c0_i32_1 = arith.constant 0 : i32
    return %c0_i32, %c0_i32_0 : i32, i32
  }
  func.func @transform_3(%arg0: i32) -> (i32, i32) {
    %c0_i32 = arith.constant 0 : i32
    %c0_i32_0 = arith.constant 0 : i32
    return %arg0, %c0_i32 : i32, i32
  }
}

module attributes {stable_mosaic.version = 11 : i64} {
  func.func @kernel(%arg0: i32, %arg1: memref<16x576xbf16, #tpu.memory_space<vmem>>, %arg2: memref<576x128xbf16, #tpu.memory_space<vmem>>, %arg3: memref<16x128xbf16, #tpu.memory_space<vmem>>, %arg4: memref<1x1x128xf32, #tpu.memory_space<vmem>>, %arg5: memref<1x1x128xf32, #tpu.memory_space<vmem>>) attributes {dimension_semantics = [#tpu.dimension_semantics<parallel>], iteration_bounds = array<i64: 2>, scalar_prefetch = 0 : i64, scratch_operands = 0 : i64, tpu.core_type = #tpu.core_type<tc>, window_params = [{transform_indices = @transform_0, window_bounds = array<i64: 16, 576>}, {pipeline_mode = #tpu.pipeline_mode<synchronous>, transform_indices = @transform_1, window_bounds = array<i64: 576, 128>}, {transform_indices = @transform_2, window_bounds = array<i64: 16, 128>}, {transform_indices = @transform_3, window_bounds = array<i64: 1, 1, 128>}, {transform_indices = @transform_4, window_bounds = array<i64: 1, 1, 128>}]} {
    %cst = arith.constant 0.000000e+00 : f32
    %0 = vector.broadcast %cst : f32 to vector<1x128xf32>
    %c0_i32 = arith.constant 0 : i32
    %c16_i32 = arith.constant 16 : i32
    %1 = arith.muli %c0_i32, %c16_i32 : i32
    %2 = tpu.assume_multiple %1, 16 : i32
    %3 = arith.index_cast %2 : i32 to index
    %c0 = arith.constant 0 : index
    %4 = vector.load %arg1[%3, %c0] : memref<16x576xbf16, #tpu.memory_space<vmem>>, vector<16x576xbf16>
    %c0_0 = arith.constant 0 : index
    %c0_1 = arith.constant 0 : index
    %5 = vector.load %arg2[%c0_0, %c0_1] : memref<576x128xbf16, #tpu.memory_space<vmem>>, vector<576x128xbf16>
    %cst_2 = arith.constant dense<0.000000e+00> : vector<16x128xf32>
    %6 = tpu.matmul %4, %5, %cst_2 {dimension_numbers = #tpu.dot_dimension_numbers<[1], [0], [0], [1], [0, 0, 1, 1], [], []>} : vector<16x576xbf16>, vector<576x128xbf16>, vector<16x128xf32> -> vector<16x128xf32>
    %7 = arith.truncf %6 : vector<16x128xf32> to vector<16x128xbf16>
    %8 = arith.index_cast %2 : i32 to index
    %c0_3 = arith.constant 0 : index
    %9 = vector.load %arg3[%8, %c0_3] : memref<16x128xbf16, #tpu.memory_space<vmem>>, vector<16x128xbf16>
    tpu.vector_store %arg3[%8, %c0_3], %7 {strides = array<i32>} : memref<16x128xbf16, #tpu.memory_space<vmem>>, vector<16x128xbf16>,
    %cst_4 = arith.constant dense<0.000000e+00> : vector<128xf32>
    %10 = vector.multi_reduction <add>, %6, %cst_4 [0] : vector<16x128xf32> to vector<128xf32>
    %11 = vector.shape_cast %10 : vector<128xf32> to vector<1x128xf32>
    %12 = arith.addf %0, %11 : vector<1x128xf32>
    %13 = arith.mulf %6, %6 : vector<16x128xf32>
    %cst_5 = arith.constant dense<0.000000e+00> : vector<128xf32>
    %14 = vector.multi_reduction <add>, %13, %cst_5 [0] : vector<16x128xf32> to vector<128xf32>
    %15 = vector.shape_cast %14 : vector<128xf32> to vector<1x128xf32>
    %16 = arith.addf %0, %15 : vector<1x128xf32>
    %c1_i32 = arith.constant 1 : i32
    %17 = vector.shape_cast %12 : vector<1x128xf32> to vector<1x1x128xf32>
    %c0_6 = arith.constant 0 : index
    %c0_7 = arith.constant 0 : index
    %c0_8 = arith.constant 0 : index
    %18 = vector.load %arg4[%c0_6, %c0_7, %c0_8] : memref<1x1x128xf32, #tpu.memory_space<vmem>>, vector<1x1x128xf32>
    tpu.vector_store %arg4[%c0_6, %c0_7, %c0_8], %17 {strides = array<i32>} : memref<1x1x128xf32, #tpu.memory_space<vmem>>, vector<1x1x128xf32>,
    %19 = vector.shape_cast %16 : vector<1x128xf32> to vector<1x1x128xf32>
    %c0_9 = arith.constant 0 : index
    %c0_10 = arith.constant 0 : index
    %c0_11 = arith.constant 0 : index
    %20 = vector.load %arg5[%c0_9, %c0_10, %c0_11] : memref<1x1x128xf32, #tpu.memory_space<vmem>>, vector<1x1x128xf32>
    tpu.vector_store %arg5[%c0_9, %c0_10, %c0_11], %19 {strides = array<i32>} : memref<1x1x128xf32, #tpu.memory_space<vmem>>, vector<1x1x128xf32>,
    return
  }
  func.func @transform_0(%arg0: i32) -> (i32, i32) {
    %c0_i32 = arith.constant 0 : i32
    %c0_i32_0 = arith.constant 0 : i32
    return %arg0, %c0_i32 : i32, i32
  }
  func.func @transform_1(%arg0: i32) -> (i32, i32) {
    %c0_i32 = arith.constant 0 : i32
    %c0_i32_0 = arith.constant 0 : i32
    %c0_i32_1 = arith.constant 0 : i32
    return %c0_i32, %c0_i32_0 : i32, i32
  }
  func.func @transform_2(%arg0: i32) -> (i32, i32) {
    %c0_i32 = arith.constant 0 : i32
    %c0_i32_0 = arith.constant 0 : i32
    return %arg0, %c0_i32 : i32, i32
  }
  func.func @transform_3(%arg0: i32) -> (i32, i32, i32) {
    %c0_i32 = arith.constant 0 : i32
    %c0_i32_0 = arith.constant 0 : i32
    %c0_i32_1 = arith.constant 0 : i32
    return %arg0, %c0_i32, %c0_i32_0 : i32, i32, i32
  }
  func.func @transform_4(%arg0: i32) -> (i32, i32, i32) {
    %c0_i32 = arith.constant 0 : i32
    %c0_i32_0 = arith.constant 0 : i32
    %c0_i32_1 = arith.constant 0 : i32
    return %arg0, %c0_i32, %c0_i32_0 : i32, i32, i32
  }
}

module attributes {stable_mosaic.version = 11 : i64} {
  func.func @kernel(%arg0: i32, %arg1: memref<16x128xbf16, #tpu.memory_space<vmem>>, %arg2: memref<1x128xf32, #tpu.memory_space<vmem>>, %arg3: memref<1x128xf32, #tpu.memory_space<vmem>>, %arg4: memref<16x128xbf16, #tpu.memory_space<vmem>>) attributes {dimension_semantics = [#tpu.dimension_semantics<parallel>], iteration_bounds = array<i64: 2>, scalar_prefetch = 0 : i64, scratch_operands = 0 : i64, tpu.core_type = #tpu.core_type<tc>, window_params = [{transform_indices = @transform_0, window_bounds = array<i64: 16, 128>}, {pipeline_mode = #tpu.pipeline_mode<synchronous>, transform_indices = @transform_1, window_bounds = array<i64: 1, 128>}, {pipeline_mode = #tpu.pipeline_mode<synchronous>, transform_indices = @transform_2, window_bounds = array<i64: 1, 128>}, {transform_indices = @transform_3, window_bounds = array<i64: 16, 128>}]} {
    %c0 = arith.constant 0 : index
    %c0_0 = arith.constant 0 : index
    %0 = vector.load %arg1[%c0, %c0_0] : memref<16x128xbf16, #tpu.memory_space<vmem>>, vector<16x128xbf16>
    %1 = arith.extf %0 : vector<16x128xbf16> to vector<16x128xf32>
    %c0_1 = arith.constant 0 : index
    %c0_2 = arith.constant 0 : index
    %2 = vector.load %arg2[%c0_1, %c0_2] : memref<1x128xf32, #tpu.memory_space<vmem>>, vector<1x128xf32>
    %3 = vector.broadcast %2 : vector<1x128xf32> to vector<16x128xf32>
    %4 = arith.mulf %1, %3 : vector<16x128xf32>
    %c0_3 = arith.constant 0 : index
    %c0_4 = arith.constant 0 : index
    %5 = vector.load %arg3[%c0_3, %c0_4] : memref<1x128xf32, #tpu.memory_space<vmem>>, vector<1x128xf32>
    %6 = vector.broadcast %5 : vector<1x128xf32> to vector<16x128xf32>
    %7 = arith.addf %4, %6 : vector<16x128xf32>
    %cst = arith.constant 0.000000e+00 : f32
    %8 = vector.broadcast %cst : f32 to vector<16x128xf32>
    %9 = arith.maximumf %7, %8 : vector<16x128xf32>
    %10 = arith.truncf %9 : vector<16x128xf32> to vector<16x128xbf16>
    %c0_5 = arith.constant 0 : index
    %c0_6 = arith.constant 0 : index
    %11 = vector.load %arg4[%c0_5, %c0_6] : memref<16x128xbf16, #tpu.memory_space<vmem>>, vector<16x128xbf16>
    tpu.vector_store %arg4[%c0_5, %c0_6], %10 {strides = array<i32>} : memref<16x128xbf16, #tpu.memory_space<vmem>>, vector<16x128xbf16>,
    return
  }
  func.func @transform_0(%arg0: i32) -> (i32, i32) {
    %c0_i32 = arith.constant 0 : i32
    %c0_i32_0 = arith.constant 0 : i32
    return %arg0, %c0_i32 : i32, i32
  }
  func.func @transform_1(%arg0: i32) -> (i32, i32) {
    %c0_i32 = arith.constant 0 : i32
    %c0_i32_0 = arith.constant 0 : i32
    %c0_i32_1 = arith.constant 0 : i32
    return %c0_i32, %c0_i32_0 : i32, i32
  }
  func.func @transform_2(%arg0: i32) -> (i32, i32) {
    %c0_i32 = arith.constant 0 : i32
    %c0_i32_0 = arith.constant 0 : i32
    %c0_i32_1 = arith.constant 0 : i32
    return %c0_i32, %c0_i32_0 : i32, i32
  }
  func.func @transform_3(%arg0: i32) -> (i32, i32) {
    %c0_i32 = arith.constant 0 : i32
    %c0_i32_0 = arith.constant 0 : i32
    return %arg0, %c0_i32 : i32, i32
  }
}

module attributes {stable_mosaic.version = 11 : i64} {
  func.func @kernel(%arg0: i32, %arg1: memref<64x288xbf16, #tpu.memory_space<vmem>>, %arg2: memref<288x128xbf16, #tpu.memory_space<vmem>>, %arg3: memref<64x128xbf16, #tpu.memory_space<vmem>>, %arg4: memref<1x1x128xf32, #tpu.memory_space<vmem>>, %arg5: memref<1x1x128xf32, #tpu.memory_space<vmem>>) attributes {dimension_semantics = [#tpu.dimension_semantics<parallel>], iteration_bounds = array<i64: 2>, scalar_prefetch = 0 : i64, scratch_operands = 0 : i64, tpu.core_type = #tpu.core_type<tc>, window_params = [{transform_indices = @transform_0, window_bounds = array<i64: 64, 288>}, {pipeline_mode = #tpu.pipeline_mode<synchronous>, transform_indices = @transform_1, window_bounds = array<i64: 288, 128>}, {transform_indices = @transform_2, window_bounds = array<i64: 64, 128>}, {transform_indices = @transform_3, window_bounds = array<i64: 1, 1, 128>}, {transform_indices = @transform_4, window_bounds = array<i64: 1, 1, 128>}]} {
    %cst = arith.constant 0.000000e+00 : f32
    %0 = vector.broadcast %cst : f32 to vector<1x128xf32>
    %c0_i32 = arith.constant 0 : i32
    %c64_i32 = arith.constant 64 : i32
    %1 = arith.muli %c0_i32, %c64_i32 : i32
    %2 = tpu.assume_multiple %1, 64 : i32
    %3 = arith.index_cast %2 : i32 to index
    %c0 = arith.constant 0 : index
    %4 = vector.load %arg1[%3, %c0] : memref<64x288xbf16, #tpu.memory_space<vmem>>, vector<64x288xbf16>
    %c0_0 = arith.constant 0 : index
    %c0_1 = arith.constant 0 : index
    %5 = vector.load %arg2[%c0_0, %c0_1] : memref<288x128xbf16, #tpu.memory_space<vmem>>, vector<288x128xbf16>
    %cst_2 = arith.constant dense<0.000000e+00> : vector<64x128xf32>
    %6 = tpu.matmul %4, %5, %cst_2 {dimension_numbers = #tpu.dot_dimension_numbers<[1], [0], [0], [1], [0, 0, 1, 1], [], []>} : vector<64x288xbf16>, vector<288x128xbf16>, vector<64x128xf32> -> vector<64x128xf32>
    %7 = arith.truncf %6 : vector<64x128xf32> to vector<64x128xbf16>
    %8 = arith.index_cast %2 : i32 to index
    %c0_3 = arith.constant 0 : index
    %9 = vector.load %arg3[%8, %c0_3] : memref<64x128xbf16, #tpu.memory_space<vmem>>, vector<64x128xbf16>
    tpu.vector_store %arg3[%8, %c0_3], %7 {strides = array<i32>} : memref<64x128xbf16, #tpu.memory_space<vmem>>, vector<64x128xbf16>,
    %cst_4 = arith.constant dense<0.000000e+00> : vector<128xf32>
    %10 = vector.multi_reduction <add>, %6, %cst_4 [0] : vector<64x128xf32> to vector<128xf32>
    %11 = vector.shape_cast %10 : vector<128xf32> to vector<1x128xf32>
    %12 = arith.addf %0, %11 : vector<1x128xf32>
    %13 = arith.mulf %6, %6 : vector<64x128xf32>
    %cst_5 = arith.constant dense<0.000000e+00> : vector<128xf32>
    %14 = vector.multi_reduction <add>, %13, %cst_5 [0] : vector<64x128xf32> to vector<128xf32>
    %15 = vector.shape_cast %14 : vector<128xf32> to vector<1x128xf32>
    %16 = arith.addf %0, %15 : vector<1x128xf32>
    %c1_i32 = arith.constant 1 : i32
    %17 = vector.shape_cast %12 : vector<1x128xf32> to vector<1x1x128xf32>
    %c0_6 = arith.constant 0 : index
    %c0_7 = arith.constant 0 : index
    %c0_8 = arith.constant 0 : index
    %18 = vector.load %arg4[%c0_6, %c0_7, %c0_8] : memref<1x1x128xf32, #tpu.memory_space<vmem>>, vector<1x1x128xf32>
    tpu.vector_store %arg4[%c0_6, %c0_7, %c0_8], %17 {strides = array<i32>} : memref<1x1x128xf32, #tpu.memory_space<vmem>>, vector<1x1x128xf32>,
    %19 = vector.shape_cast %16 : vector<1x128xf32> to vector<1x1x128xf32>
    %c0_9 = arith.constant 0 : index
    %c0_10 = arith.constant 0 : index
    %c0_11 = arith.constant 0 : index
    %20 = vector.load %arg5[%c0_9, %c0_10, %c0_11] : memref<1x1x128xf32, #tpu.memory_space<vmem>>, vector<1x1x128xf32>
    tpu.vector_store %arg5[%c0_9, %c0_10, %c0_11], %19 {strides = array<i32>} : memref<1x1x128xf32, #tpu.memory_space<vmem>>, vector<1x1x128xf32>,
    return
  }
  func.func @transform_0(%arg0: i32) -> (i32, i32) {
    %c0_i32 = arith.constant 0 : i32
    %c0_i32_0 = arith.constant 0 : i32
    return %arg0, %c0_i32 : i32, i32
  }
  func.func @transform_1(%arg0: i32) -> (i32, i32) {
    %c0_i32 = arith.constant 0 : i32
    %c0_i32_0 = arith.constant 0 : i32
    %c0_i32_1 = arith.constant 0 : i32
    return %c0_i32, %c0_i32_0 : i32, i32
  }
  func.func @transform_2(%arg0: i32) -> (i32, i32) {
    %c0_i32 = arith.constant 0 : i32
    %c0_i32_0 = arith.constant 0 : i32
    return %arg0, %c0_i32 : i32, i32
  }
  func.func @transform_3(%arg0: i32) -> (i32, i32, i32) {
    %c0_i32 = arith.constant 0 : i32
    %c0_i32_0 = arith.constant 0 : i32
    %c0_i32_1 = arith.constant 0 : i32
    return %arg0, %c0_i32, %c0_i32_0 : i32, i32, i32
  }
  func.func @transform_4(%arg0: i32) -> (i32, i32, i32) {
    %c0_i32 = arith.constant 0 : i32
    %c0_i32_0 = arith.constant 0 : i32
    %c0_i32_1 = arith.constant 0 : i32
    return %arg0, %c0_i32, %c0_i32_0 : i32, i32, i32
  }
}

module attributes {stable_mosaic.version = 11 : i64} {
  func.func @kernel(%arg0: i32, %arg1: memref<64x128xbf16, #tpu.memory_space<vmem>>, %arg2: memref<1x128xf32, #tpu.memory_space<vmem>>, %arg3: memref<1x128xf32, #tpu.memory_space<vmem>>, %arg4: memref<64x128xbf16, #tpu.memory_space<vmem>>) attributes {dimension_semantics = [#tpu.dimension_semantics<parallel>], iteration_bounds = array<i64: 2>, scalar_prefetch = 0 : i64, scratch_operands = 0 : i64, tpu.core_type = #tpu.core_type<tc>, window_params = [{transform_indices = @transform_0, window_bounds = array<i64: 64, 128>}, {pipeline_mode = #tpu.pipeline_mode<synchronous>, transform_indices = @transform_1, window_bounds = array<i64: 1, 128>}, {pipeline_mode = #tpu.pipeline_mode<synchronous>, transform_indices = @transform_2, window_bounds = array<i64: 1, 128>}, {transform_indices = @transform_3, window_bounds = array<i64: 64, 128>}]} {
    %c0 = arith.constant 0 : index
    %c0_0 = arith.constant 0 : index
    %0 = vector.load %arg1[%c0, %c0_0] : memref<64x128xbf16, #tpu.memory_space<vmem>>, vector<64x128xbf16>
    %1 = arith.extf %0 : vector<64x128xbf16> to vector<64x128xf32>
    %c0_1 = arith.constant 0 : index
    %c0_2 = arith.constant 0 : index
    %2 = vector.load %arg2[%c0_1, %c0_2] : memref<1x128xf32, #tpu.memory_space<vmem>>, vector<1x128xf32>
    %3 = vector.broadcast %2 : vector<1x128xf32> to vector<64x128xf32>
    %4 = arith.mulf %1, %3 : vector<64x128xf32>
    %c0_3 = arith.constant 0 : index
    %c0_4 = arith.constant 0 : index
    %5 = vector.load %arg3[%c0_3, %c0_4] : memref<1x128xf32, #tpu.memory_space<vmem>>, vector<1x128xf32>
    %6 = vector.broadcast %5 : vector<1x128xf32> to vector<64x128xf32>
    %7 = arith.addf %4, %6 : vector<64x128xf32>
    %cst = arith.constant 0.000000e+00 : f32
    %8 = vector.broadcast %cst : f32 to vector<64x128xf32>
    %9 = arith.maximumf %7, %8 : vector<64x128xf32>
    %10 = arith.truncf %9 : vector<64x128xf32> to vector<64x128xbf16>
    %c0_5 = arith.constant 0 : index
    %c0_6 = arith.constant 0 : index
    %11 = vector.load %arg4[%c0_5, %c0_6] : memref<64x128xbf16, #tpu.memory_space<vmem>>, vector<64x128xbf16>
    tpu.vector_store %arg4[%c0_5, %c0_6], %10 {strides = array<i32>} : memref<64x128xbf16, #tpu.memory_space<vmem>>, vector<64x128xbf16>,
    return
  }
  func.func @transform_0(%arg0: i32) -> (i32, i32) {
    %c0_i32 = arith.constant 0 : i32
    %c0_i32_0 = arith.constant 0 : i32
    return %arg0, %c0_i32 : i32, i32
  }
  func.func @transform_1(%arg0: i32) -> (i32, i32) {
    %c0_i32 = arith.constant 0 : i32
    %c0_i32_0 = arith.constant 0 : i32
    %c0_i32_1 = arith.constant 0 : i32
    return %c0_i32, %c0_i32_0 : i32, i32
  }
  func.func @transform_2(%arg0: i32) -> (i32, i32) {
    %c0_i32 = arith.constant 0 : i32
    %c0_i32_0 = arith.constant 0 : i32
    %c0_i32_1 = arith.constant 0 : i32
    return %c0_i32, %c0_i32_0 : i32, i32
  }
  func.func @transform_3(%arg0: i32) -> (i32, i32) {
    %c0_i32 = arith.constant 0 : i32
    %c0_i32_0 = arith.constant 0 : i32
    return %arg0, %c0_i32 : i32, i32
  }
}

module attributes {stable_mosaic.version = 11 : i64} {
  func.func @kernel(%arg0: i32, %arg1: memref<256x144xbf16, #tpu.memory_space<vmem>>, %arg2: memref<144x128xbf16, #tpu.memory_space<vmem>>, %arg3: memref<256x128xbf16, #tpu.memory_space<vmem>>, %arg4: memref<1x1x128xf32, #tpu.memory_space<vmem>>, %arg5: memref<1x1x128xf32, #tpu.memory_space<vmem>>) attributes {dimension_semantics = [#tpu.dimension_semantics<parallel>], iteration_bounds = array<i64: 2>, scalar_prefetch = 0 : i64, scratch_operands = 0 : i64, tpu.core_type = #tpu.core_type<tc>, window_params = [{transform_indices = @transform_0, window_bounds = array<i64: 256, 144>}, {pipeline_mode = #tpu.pipeline_mode<synchronous>, transform_indices = @transform_1, window_bounds = array<i64: 144, 128>}, {transform_indices = @transform_2, window_bounds = array<i64: 256, 128>}, {transform_indices = @transform_3, window_bounds = array<i64: 1, 1, 128>}, {transform_indices = @transform_4, window_bounds = array<i64: 1, 1, 128>}]} {
    %cst = arith.constant 0.000000e+00 : f32
    %0 = vector.broadcast %cst : f32 to vector<1x128xf32>
    %c0_i32 = arith.constant 0 : i32
    %c256_i32 = arith.constant 256 : i32
    %1 = arith.muli %c0_i32, %c256_i32 : i32
    %2 = tpu.assume_multiple %1, 256 : i32
    %3 = arith.index_cast %2 : i32 to index
    %c0 = arith.constant 0 : index
    %4 = vector.load %arg1[%3, %c0] : memref<256x144xbf16, #tpu.memory_space<vmem>>, vector<256x144xbf16>
    %c0_0 = arith.constant 0 : index
    %c0_1 = arith.constant 0 : index
    %5 = vector.load %arg2[%c0_0, %c0_1] : memref<144x128xbf16, #tpu.memory_space<vmem>>, vector<144x128xbf16>
    %cst_2 = arith.constant dense<0.000000e+00> : vector<256x128xf32>
    %6 = tpu.matmul %4, %5, %cst_2 {dimension_numbers = #tpu.dot_dimension_numbers<[1], [0], [0], [1], [0, 0, 1, 1], [], []>} : vector<256x144xbf16>, vector<144x128xbf16>, vector<256x128xf32> -> vector<256x128xf32>
    %7 = arith.truncf %6 : vector<256x128xf32> to vector<256x128xbf16>
    %8 = arith.index_cast %2 : i32 to index
    %c0_3 = arith.constant 0 : index
    %9 = vector.load %arg3[%8, %c0_3] : memref<256x128xbf16, #tpu.memory_space<vmem>>, vector<256x128xbf16>
    tpu.vector_store %arg3[%8, %c0_3], %7 {strides = array<i32>} : memref<256x128xbf16, #tpu.memory_space<vmem>>, vector<256x128xbf16>,
    %cst_4 = arith.constant dense<0.000000e+00> : vector<128xf32>
    %10 = vector.multi_reduction <add>, %6, %cst_4 [0] : vector<256x128xf32> to vector<128xf32>
    %11 = vector.shape_cast %10 : vector<128xf32> to vector<1x128xf32>
    %12 = arith.addf %0, %11 : vector<1x128xf32>
    %13 = arith.mulf %6, %6 : vector<256x128xf32>
    %cst_5 = arith.constant dense<0.000000e+00> : vector<128xf32>
    %14 = vector.multi_reduction <add>, %13, %cst_5 [0] : vector<256x128xf32> to vector<128xf32>
    %15 = vector.shape_cast %14 : vector<128xf32> to vector<1x128xf32>
    %16 = arith.addf %0, %15 : vector<1x128xf32>
    %c1_i32 = arith.constant 1 : i32
    %17 = vector.shape_cast %12 : vector<1x128xf32> to vector<1x1x128xf32>
    %c0_6 = arith.constant 0 : index
    %c0_7 = arith.constant 0 : index
    %c0_8 = arith.constant 0 : index
    %18 = vector.load %arg4[%c0_6, %c0_7, %c0_8] : memref<1x1x128xf32, #tpu.memory_space<vmem>>, vector<1x1x128xf32>
    tpu.vector_store %arg4[%c0_6, %c0_7, %c0_8], %17 {strides = array<i32>} : memref<1x1x128xf32, #tpu.memory_space<vmem>>, vector<1x1x128xf32>,
    %19 = vector.shape_cast %16 : vector<1x128xf32> to vector<1x1x128xf32>
    %c0_9 = arith.constant 0 : index
    %c0_10 = arith.constant 0 : index
    %c0_11 = arith.constant 0 : index
    %20 = vector.load %arg5[%c0_9, %c0_10, %c0_11] : memref<1x1x128xf32, #tpu.memory_space<vmem>>, vector<1x1x128xf32>
    tpu.vector_store %arg5[%c0_9, %c0_10, %c0_11], %19 {strides = array<i32>} : memref<1x1x128xf32, #tpu.memory_space<vmem>>, vector<1x1x128xf32>,
    return
  }
  func.func @transform_0(%arg0: i32) -> (i32, i32) {
    %c0_i32 = arith.constant 0 : i32
    %c0_i32_0 = arith.constant 0 : i32
    return %arg0, %c0_i32 : i32, i32
  }
  func.func @transform_1(%arg0: i32) -> (i32, i32) {
    %c0_i32 = arith.constant 0 : i32
    %c0_i32_0 = arith.constant 0 : i32
    %c0_i32_1 = arith.constant 0 : i32
    return %c0_i32, %c0_i32_0 : i32, i32
  }
  func.func @transform_2(%arg0: i32) -> (i32, i32) {
    %c0_i32 = arith.constant 0 : i32
    %c0_i32_0 = arith.constant 0 : i32
    return %arg0, %c0_i32 : i32, i32
  }
  func.func @transform_3(%arg0: i32) -> (i32, i32, i32) {
    %c0_i32 = arith.constant 0 : i32
    %c0_i32_0 = arith.constant 0 : i32
    %c0_i32_1 = arith.constant 0 : i32
    return %arg0, %c0_i32, %c0_i32_0 : i32, i32, i32
  }
  func.func @transform_4(%arg0: i32) -> (i32, i32, i32) {
    %c0_i32 = arith.constant 0 : i32
    %c0_i32_0 = arith.constant 0 : i32
    %c0_i32_1 = arith.constant 0 : i32
    return %arg0, %c0_i32, %c0_i32_0 : i32, i32, i32
  }
}

module attributes {stable_mosaic.version = 11 : i64} {
  func.func @kernel(%arg0: i32, %arg1: memref<256x128xbf16, #tpu.memory_space<vmem>>, %arg2: memref<1x128xf32, #tpu.memory_space<vmem>>, %arg3: memref<1x128xf32, #tpu.memory_space<vmem>>, %arg4: memref<256x128xbf16, #tpu.memory_space<vmem>>) attributes {dimension_semantics = [#tpu.dimension_semantics<parallel>], iteration_bounds = array<i64: 2>, scalar_prefetch = 0 : i64, scratch_operands = 0 : i64, tpu.core_type = #tpu.core_type<tc>, window_params = [{transform_indices = @transform_0, window_bounds = array<i64: 256, 128>}, {pipeline_mode = #tpu.pipeline_mode<synchronous>, transform_indices = @transform_1, window_bounds = array<i64: 1, 128>}, {pipeline_mode = #tpu.pipeline_mode<synchronous>, transform_indices = @transform_2, window_bounds = array<i64: 1, 128>}, {transform_indices = @transform_3, window_bounds = array<i64: 256, 128>}]} {
    %c0 = arith.constant 0 : index
    %c0_0 = arith.constant 0 : index
    %0 = vector.load %arg1[%c0, %c0_0] : memref<256x128xbf16, #tpu.memory_space<vmem>>, vector<256x128xbf16>
    %1 = arith.extf %0 : vector<256x128xbf16> to vector<256x128xf32>
    %c0_1 = arith.constant 0 : index
    %c0_2 = arith.constant 0 : index
    %2 = vector.load %arg2[%c0_1, %c0_2] : memref<1x128xf32, #tpu.memory_space<vmem>>, vector<1x128xf32>
    %3 = vector.broadcast %2 : vector<1x128xf32> to vector<256x128xf32>
    %4 = arith.mulf %1, %3 : vector<256x128xf32>
    %c0_3 = arith.constant 0 : index
    %c0_4 = arith.constant 0 : index
    %5 = vector.load %arg3[%c0_3, %c0_4] : memref<1x128xf32, #tpu.memory_space<vmem>>, vector<1x128xf32>
    %6 = vector.broadcast %5 : vector<1x128xf32> to vector<256x128xf32>
    %7 = arith.addf %4, %6 : vector<256x128xf32>
    %cst = arith.constant 0.000000e+00 : f32
    %8 = vector.broadcast %cst : f32 to vector<256x128xf32>
    %9 = arith.maximumf %7, %8 : vector<256x128xf32>
    %10 = arith.truncf %9 : vector<256x128xf32> to vector<256x128xbf16>
    %c0_5 = arith.constant 0 : index
    %c0_6 = arith.constant 0 : index
    %11 = vector.load %arg4[%c0_5, %c0_6] : memref<256x128xbf16, #tpu.memory_space<vmem>>, vector<256x128xbf16>
    tpu.vector_store %arg4[%c0_5, %c0_6], %10 {strides = array<i32>} : memref<256x128xbf16, #tpu.memory_space<vmem>>, vector<256x128xbf16>,
    return
  }
  func.func @transform_0(%arg0: i32) -> (i32, i32) {
    %c0_i32 = arith.constant 0 : i32
    %c0_i32_0 = arith.constant 0 : i32
    return %arg0, %c0_i32 : i32, i32
  }
  func.func @transform_1(%arg0: i32) -> (i32, i32) {
    %c0_i32 = arith.constant 0 : i32
    %c0_i32_0 = arith.constant 0 : i32
    %c0_i32_1 = arith.constant 0 : i32
    return %c0_i32, %c0_i32_0 : i32, i32
  }
  func.func @transform_2(%arg0: i32) -> (i32, i32) {
    %c0_i32 = arith.constant 0 : i32
    %c0_i32_0 = arith.constant 0 : i32
    %c0_i32_1 = arith.constant 0 : i32
    return %c0_i32, %c0_i32_0 : i32, i32
  }
  func.func @transform_3(%arg0: i32) -> (i32, i32) {
    %c0_i32 = arith.constant 0 : i32
    %c0_i32_0 = arith.constant 0 : i32
    return %arg0, %c0_i32 : i32, i32
  }
}

module attributes {stable_mosaic.version = 11 : i64} {
  func.func @kernel(%arg0: i32, %arg1: memref<1024x72xbf16, #tpu.memory_space<vmem>>, %arg2: memref<72x128xbf16, #tpu.memory_space<vmem>>, %arg3: memref<1024x128xbf16, #tpu.memory_space<vmem>>) attributes {dimension_semantics = [#tpu.dimension_semantics<parallel>], iteration_bounds = array<i64: 2>, scalar_prefetch = 0 : i64, scratch_operands = 0 : i64, tpu.core_type = #tpu.core_type<tc>, window_params = [{transform_indices = @transform_0, window_bounds = array<i64: 1024, 72>}, {pipeline_mode = #tpu.pipeline_mode<synchronous>, transform_indices = @transform_1, window_bounds = array<i64: 72, 128>}, {transform_indices = @transform_2, window_bounds = array<i64: 1024, 128>}]} {
    %c0_i32 = arith.constant 0 : i32
    %c256_i32 = arith.constant 256 : i32
    %0 = arith.muli %c0_i32, %c256_i32 : i32
    %1 = tpu.assume_multiple %0, 256 : i32
    %2 = arith.index_cast %1 : i32 to index
    %c0 = arith.constant 0 : index
    %3 = vector.load %arg1[%2, %c0] : memref<1024x72xbf16, #tpu.memory_space<vmem>>, vector<256x72xbf16>
    %c0_0 = arith.constant 0 : index
    %c0_1 = arith.constant 0 : index
    %4 = vector.load %arg2[%c0_0, %c0_1] : memref<72x128xbf16, #tpu.memory_space<vmem>>, vector<72x128xbf16>
    %cst = arith.constant dense<0.000000e+00> : vector<256x128xf32>
    %5 = tpu.matmul %3, %4, %cst {dimension_numbers = #tpu.dot_dimension_numbers<[1], [0], [0], [1], [0, 0, 1, 1], [], []>} : vector<256x72xbf16>, vector<72x128xbf16>, vector<256x128xf32> -> vector<256x128xf32>
    %6 = math.tanh %5 : vector<256x128xf32>
    %7 = arith.truncf %6 : vector<256x128xf32> to vector<256x128xbf16>
    %8 = arith.index_cast %1 : i32 to index
    %c0_2 = arith.constant 0 : index
    %9 = vector.load %arg3[%8, %c0_2] : memref<1024x128xbf16, #tpu.memory_space<vmem>>, vector<256x128xbf16>
    tpu.vector_store %arg3[%8, %c0_2], %7 {strides = array<i32>} : memref<1024x128xbf16, #tpu.memory_space<vmem>>, vector<256x128xbf16>,
    %c1_i32 = arith.constant 1 : i32
    %c256_i32_3 = arith.constant 256 : i32
    %10 = arith.muli %c1_i32, %c256_i32_3 : i32
    %11 = tpu.assume_multiple %10, 256 : i32
    %12 = arith.index_cast %11 : i32 to index
    %c0_4 = arith.constant 0 : index
    %13 = vector.load %arg1[%12, %c0_4] : memref<1024x72xbf16, #tpu.memory_space<vmem>>, vector<256x72xbf16>
    %c0_5 = arith.constant 0 : index
    %c0_6 = arith.constant 0 : index
    %14 = vector.load %arg2[%c0_5, %c0_6] : memref<72x128xbf16, #tpu.memory_space<vmem>>, vector<72x128xbf16>
    %cst_7 = arith.constant dense<0.000000e+00> : vector<256x128xf32>
    %15 = tpu.matmul %13, %14, %cst_7 {dimension_numbers = #tpu.dot_dimension_numbers<[1], [0], [0], [1], [0, 0, 1, 1], [], []>} : vector<256x72xbf16>, vector<72x128xbf16>, vector<256x128xf32> -> vector<256x128xf32>
    %16 = math.tanh %15 : vector<256x128xf32>
    %17 = arith.truncf %16 : vector<256x128xf32> to vector<256x128xbf16>
    %18 = arith.index_cast %11 : i32 to index
    %c0_8 = arith.constant 0 : index
    %19 = vector.load %arg3[%18, %c0_8] : memref<1024x128xbf16, #tpu.memory_space<vmem>>, vector<256x128xbf16>
    tpu.vector_store %arg3[%18, %c0_8], %17 {strides = array<i32>} : memref<1024x128xbf16, #tpu.memory_space<vmem>>, vector<256x128xbf16>,
    %c2_i32 = arith.constant 2 : i32
    %c256_i32_9 = arith.constant 256 : i32
    %20 = arith.muli %c2_i32, %c256_i32_9 : i32
    %21 = tpu.assume_multiple %20, 256 : i32
    %22 = arith.index_cast %21 : i32 to index
    %c0_10 = arith.constant 0 : index
    %23 = vector.load %arg1[%22, %c0_10] : memref<1024x72xbf16, #tpu.memory_space<vmem>>, vector<256x72xbf16>
    %c0_11 = arith.constant 0 : index
    %c0_12 = arith.constant 0 : index
    %24 = vector.load %arg2[%c0_11, %c0_12] : memref<72x128xbf16, #tpu.memory_space<vmem>>, vector<72x128xbf16>
    %cst_13 = arith.constant dense<0.000000e+00> : vector<256x128xf32>
    %25 = tpu.matmul %23, %24, %cst_13 {dimension_numbers = #tpu.dot_dimension_numbers<[1], [0], [0], [1], [0, 0, 1, 1], [], []>} : vector<256x72xbf16>, vector<72x128xbf16>, vector<256x128xf32> -> vector<256x128xf32>
    %26 = math.tanh %25 : vector<256x128xf32>
    %27 = arith.truncf %26 : vector<256x128xf32> to vector<256x128xbf16>
    %28 = arith.index_cast %21 : i32 to index
    %c0_14 = arith.constant 0 : index
    %29 = vector.load %arg3[%28, %c0_14] : memref<1024x128xbf16, #tpu.memory_space<vmem>>, vector<256x128xbf16>
    tpu.vector_store %arg3[%28, %c0_14], %27 {strides = array<i32>} : memref<1024x128xbf16, #tpu.memory_space<vmem>>, vector<256x128xbf16>,
    %c3_i32 = arith.constant 3 : i32
    %c256_i32_15 = arith.constant 256 : i32
    %30 = arith.muli %c3_i32, %c256_i32_15 : i32
    %31 = tpu.assume_multiple %30, 256 : i32
    %32 = arith.index_cast %31 : i32 to index
    %c0_16 = arith.constant 0 : index
    %33 = vector.load %arg1[%32, %c0_16] : memref<1024x72xbf16, #tpu.memory_space<vmem>>, vector<256x72xbf16>
    %c0_17 = arith.constant 0 : index
    %c0_18 = arith.constant 0 : index
    %34 = vector.load %arg2[%c0_17, %c0_18] : memref<72x128xbf16, #tpu.memory_space<vmem>>, vector<72x128xbf16>
    %cst_19 = arith.constant dense<0.000000e+00> : vector<256x128xf32>
    %35 = tpu.matmul %33, %34, %cst_19 {dimension_numbers = #tpu.dot_dimension_numbers<[1], [0], [0], [1], [0, 0, 1, 1], [], []>} : vector<256x72xbf16>, vector<72x128xbf16>, vector<256x128xf32> -> vector<256x128xf32>
    %36 = math.tanh %35 : vector<256x128xf32>
    %37 = arith.truncf %36 : vector<256x128xf32> to vector<256x128xbf16>
    %38 = arith.index_cast %31 : i32 to index
    %c0_20 = arith.constant 0 : index
    %39 = vector.load %arg3[%38, %c0_20] : memref<1024x128xbf16, #tpu.memory_space<vmem>>, vector<256x128xbf16>
    tpu.vector_store %arg3[%38, %c0_20], %37 {strides = array<i32>} : memref<1024x128xbf16, #tpu.memory_space<vmem>>, vector<256x128xbf16>,
    %c4_i32 = arith.constant 4 : i32
    return
  }
  func.func @transform_0(%arg0: i32) -> (i32, i32) {
    %c0_i32 = arith.constant 0 : i32
    %c0_i32_0 = arith.constant 0 : i32
    return %arg0, %c0_i32 : i32, i32
  }
  func.func @transform_1(%arg0: i32) -> (i32, i32) {
    %c0_i32 = arith.constant 0 : i32
    %c0_i32_0 = arith.constant 0 : i32
    %c0_i32_1 = arith.constant 0 : i32
    return %c0_i32, %c0_i32_0 : i32, i32
  }
  func.func @transform_2(%arg0: i32) -> (i32, i32) {
    %c0_i32 = arith.constant 0 : i32
    %c0_i32_0 = arith.constant 0 : i32
    return %arg0, %c0_i32 : i32, i32
  }
}

</mosaic_0001>

<llo_original>
// kernel: tile.48
$region0: #{tile.48}
  #allocation0 [shape = 's32[1]{0}', space=sflag, size = 0x4, scoped, tag = 'scoped memory for tile.48']
  %s0 = inlined_call_operand.vmem [shape: f32[64], index: 0, kind: input, shape index: {}]
  %s1 = inlined_call_operand.vmem [shape: f32[16,64], index: 1, kind: output, shape index: {}]
  // Predicated region
  $region2: #{tile.48} parent=0 // pred_check
    _
  $region3: #{tile.48} parent=0 // pred_check_branch
    %3 = sbr.rel (0) target = $region5
  $region4: #{tile.48} parent=0 // pred_region
    _
  $region5: #{tile.48} parent=0 // pred_fallthru
    _
  %v4 = vld [vmem:[%s0] ss:$0 sm:$0xff]
  %5 = vst [vmem:[%s1] sm:$0xff] %v4
  %s6 = scalar_lea.vmem %s1, 8
  %7 = vst [vmem:[%s6] sm:$0xff] %v4

// kernel: generator_forward.9
$region0: #{generator_forward.9}
  #allocation0 [shape = 'u32[]', space=smem, size = 0x4, offset = 0x4, fixed_abs, tag = 'smem constant byte address 0x4 - core index']
  #allocation1 [shape = 'u32[72,128]{1,0:T(1,128)}', space=vmem, size = 0x9000, scoped, tag = 'internal scratch']
  %s0 = inlined_call_operand.vmem [shape: bf16[16,8], index: 0, kind: input, shape index: {}]
  %s1 = inlined_call_operand.hbm [shape: bf16[8,1024], index: 1, kind: input, shape index: {}]
  %s2 = inlined_call_operand.vmem [shape: bf16[16,1024], index: 2, kind: output, shape index: {0}]
  %s3 = inlined_call_operand.vmem [shape: f32[1,1,1024], index: 3, kind: output, shape index: {1}]
  %s4 = inlined_call_operand.vmem [shape: f32[1,1,1024], index: 4, kind: output, shape index: {2}]
  %5 = xla_tuple %s2, %s3, %s4
  %s6 = sld [smem:[#allocation0]]
  $region38: #{generator_forward.9} parent=0
    _
  %s8 = ssub.s32 1, %s6
  %s9 = scalar_select 0, %s8, %s6
  $region1: #{generator_forward.9} parent=0
    #allocation2 [shape = 'u8[16384]{0}', space=vmem, size = 0x4000, scoped, tag = 'input window, operand 1, single buffered']
    #allocation3 [shape = 's32[1]{0}', space=sflag, size = 0x4, scoped, tag = 'scoped memory for generator_forward.9']
    %10 = vsyncpa [#allocation3], 0
    // Predicated region
    $region2: #{generator_forward.9} parent=1 // pred_check
      _
    $region3: #{generator_forward.9} parent=1 // pred_check_branch
      %12 = sbr.rel (0) target = $region5
    $region4: #{generator_forward.9} parent=1 // pred_region
      _
    $region5: #{generator_forward.9} parent=1 // pred_fallthru
      _
    // Predicated region
    $region6: #{generator_forward.9} parent=1 // pred_check
      _
    $region7: #{generator_forward.9} parent=1 // pred_check_branch
      %14 = sbr.rel (0) target = $region9
    $region8: #{generator_forward.9} parent=1 // pred_region
      %16 = vsyncadd [#allocation3], 0
      %s18 = sshll.u32 %s1, 4
      %s19 = int_to_ptr.hbm [resolvable:$true] %s18
      %s20 = sshll.u32 [#allocation2], 4
      %s21 = int_to_ptr.vmem [resolvable:$true] %s20
      %23 = dma.hbm_to_vmem [thread:$0]  %s19, 512, %s21, [#allocation3]
    $region9: #{generator_forward.9} parent=1 // pred_fallthru
      _
    // Predicated region
    $region10: #{generator_forward.9} parent=1 // pred_check
      _
    $region11: #{generator_forward.9} parent=1 // pred_check_branch
      %25 = sbr.rel (0) target = $region13
    $region12: #{generator_forward.9} parent=1 // pred_region
      %27 = dma.done [#allocation3], 512
    $region13: #{generator_forward.9} parent=1 // pred_fallthru
      _
    %v29 = vld [vmem:[%s0] sm:$0xf]
    %v30 = vld [vmem:[%s0 + $0x4] sm:$0xf]
    %v31 = vld [vmem:[#allocation2] sm:$0xff]
    %v32 = vld [vmem:[#allocation2 + $0x8] sm:$0xff]
    %v33 = vld [vmem:[#allocation2 + $0x10] sm:$0xff]
    %v34 = vld [vmem:[#allocation2 + $0x18] sm:$0xff]
    %v37 = vunpack.c.l.b16 %v29
    %v38 = vunpack.c.l.b16 %v30
    %v39 = vpack.c.b16 %v38, %v37
    %v44 = vunpack.c.l.b16 %v31
    %v45 = vunpack.c.h.b16 %v31
    %v46 = vunpack.c.l.b16 %v32
    %v47 = vunpack.c.h.b16 %v32
    %v48 = vunpack.c.l.b16 %v33
    %v49 = vunpack.c.h.b16 %v33
    %v50 = vunpack.c.l.b16 %v34
    %v51 = vunpack.c.h.b16 %v34
    %v52 = vpack.c.b16 %v44, %v44
    %v53 = vpack.c.b16 %v45, %v45
    %v54 = vpack.c.b16 %v46, %v46
    %v55 = vpack.c.b16 %v47, %v47
    %v56 = vpack.c.b16 %v48, %v48
    %v57 = vpack.c.b16 %v49, %v49
    %v58 = vpack.c.b16 %v50, %v50
    %v59 = vpack.c.b16 %v51, %v51
    %vm60 = vcmask 64512
    %v62 = vsel %vm60, %v39, 0
    %vm64 = vcmask 1043456
    %v66 = vsel %vm64, %v52, 0
    %v69 = vsel %vm64, %v53, 0
    %v72 = vsel %vm64, %v54, 0
    %v75 = vsel %vm64, %v55, 0
    %v78 = vsel %vm64, %v56, 0
    %v81 = vsel %vm64, %v57, 0
    %v84 = vsel %vm64, %v58, 0
    %v87 = vsel %vm64, %v59, 0
    %89 = vmatpush.bf16.msra.mxu0 0
    %90 = vmatpush.bf16.msra.mxu0 0
    %91 = vmatpush.bf16.msra.mxu0 0
    %92 = vmatpush.bf16.msra.mxu0 0
    %93 = vmatpush.bf16.msra.mxu0 0
    %94 = vmatpush.bf16.msra.mxu0 0
    %95 = vmatpush.bf16.msra.mxu0 0
    %96 = vmatpush.bf16.msra.mxu0 %v66
    %97 = vmatmul.bf16.gmra.mxu0 %v62
    %v98 = vpop.f32.mrf.mxu0
    %v99 = vadd.f32 0.0, %v98
    %v100 = vpop.f32.mrf.mxu0
    %v101 = vadd.f32 0.0, %v100
    %102 = vdwg.mxu0
    %103 = vmatpush.bf16.msra.mxu0 0
    %104 = vmatpush.bf16.msra.mxu0 0
    %105 = vmatpush.bf16.msra.mxu0 0
    %106 = vmatpush.bf16.msra.mxu0 0
    %107 = vmatpush.bf16.msra.mxu0 0
    %108 = vmatpush.bf16.msra.mxu0 0
    %109 = vmatpush.bf16.msra.mxu0 0
    %110 = vmatpush.bf16.msra.mxu0 %v69
    %111 = vmatmul.bf16.gmra.mxu0 %v62
    %v112 = vpop.f32.mrf.mxu0
    %v113 = vadd.f32 0.0, %v112
    %v114 = vpop.f32.mrf.mxu0
    %v115 = vadd.f32 0.0, %v114
    %116 = vdwg.mxu0
    %117 = vmatpush.bf16.msra.mxu0 0
    %118 = vmatpush.bf16.msra.mxu0 0
    %119 = vmatpush.bf16.msra.mxu0 0
    %120 = vmatpush.bf16.msra.mxu0 0
    %121 = vmatpush.bf16.msra.mxu0 0
    %122 = vmatpush.bf16.msra.mxu0 0
    %123 = vmatpush.bf16.msra.mxu0 0
    %124 = vmatpush.bf16.msra.mxu0 %v72
    %125 = vmatmul.bf16.gmra.mxu0 %v62
    %v126 = vpop.f32.mrf.mxu0
    %v127 = vadd.f32 0.0, %v126
    %v128 = vpop.f32.mrf.mxu0
    %v129 = vadd.f32 0.0, %v128
    %130 = vdwg.mxu0
    %131 = vmatpush.bf16.msra.mxu0 0
    %132 = vmatpush.bf16.msra.mxu0 0
    %133 = vmatpush.bf16.msra.mxu0 0
    %134 = vmatpush.bf16.msra.mxu0 0
    %135 = vmatpush.bf16.msra.mxu0 0
    %136 = vmatpush.bf16.msra.mxu0 0
    %137 = vmatpush.bf16.msra.mxu0 0
    %138 = vmatpush.bf16.msra.mxu0 %v75
    %139 = vmatmul.bf16.gmra.mxu0 %v62
    %v140 = vpop.f32.mrf.mxu0
    %v141 = vadd.f32 0.0, %v140
    %v142 = vpop.f32.mrf.mxu0
    %v143 = vadd.f32 0.0, %v142
    %144 = vdwg.mxu0
    %145 = vmatpush.bf16.msra.mxu0 0
    %146 = vmatpush.bf16.msra.mxu0 0
    %147 = vmatpush.bf16.msra.mxu0 0
    %148 = vmatpush.bf16.msra.mxu0 0
    %149 = vmatpush.bf16.msra.mxu0 0
    %150 = vmatpush.bf16.msra.mxu0 0
    %151 = vmatpush.bf16.msra.mxu0 0
    %152 = vmatpush.bf16.msra.mxu0 %v78
    %153 = vmatmul.bf16.gmra.mxu0 %v62
    %v154 = vpop.f32.mrf.mxu0
    %v155 = vadd.f32 0.0, %v154
    %v156 = vpop.f32.mrf.mxu0
    %v157 = vadd.f32 0.0, %v156
    %158 = vdwg.mxu0
    %159 = vmatpush.bf16.msra.mxu0 0
    %160 = vmatpush.bf16.msra.mxu0 0
    %161 = vmatpush.bf16.msra.mxu0 0
    %162 = vmatpush.bf16.msra.mxu0 0
    %163 = vmatpush.bf16.msra.mxu0 0
    %164 = vmatpush.bf16.msra.mxu0 0
    %165 = vmatpush.bf16.msra.mxu0 0
    %166 = vmatpush.bf16.msra.mxu0 %v81
    %167 = vmatmul.bf16.gmra.mxu0 %v62
    %v168 = vpop.f32.mrf.mxu0
    %v169 = vadd.f32 0.0, %v168
    %v170 = vpop.f32.mrf.mxu0
    %v171 = vadd.f32 0.0, %v170
    %172 = vdwg.mxu0
    %173 = vmatpush.bf16.msra.mxu0 0
    %174 = vmatpush.bf16.msra.mxu0 0
    %175 = vmatpush.bf16.msra.mxu0 0
    %176 = vmatpush.bf16.msra.mxu0 0
    %177 = vmatpush.bf16.msra.mxu0 0
    %178 = vmatpush.bf16.msra.mxu0 0
    %179 = vmatpush.bf16.msra.mxu0 0
    %180 = vmatpush.bf16.msra.mxu0 %v84
    %181 = vmatmul.bf16.gmra.mxu0 %v62
    %v182 = vpop.f32.mrf.mxu0
    %v183 = vadd.f32 0.0, %v182
    %v184 = vpop.f32.mrf.mxu0
    %v185 = vadd.f32 0.0, %v184
    %186 = vdwg.mxu0
    %187 = vmatpush.bf16.msra.mxu0 0
    %188 = vmatpush.bf16.msra.mxu0 0
    %189 = vmatpush.bf16.msra.mxu0 0
    %190 = vmatpush.bf16.msra.mxu0 0
    %191 = vmatpush.bf16.msra.mxu0 0
    %192 = vmatpush.bf16.msra.mxu0 0
    %193 = vmatpush.bf16.msra.mxu0 0
    %194 = vmatpush.bf16.msra.mxu0 %v87
    %195 = vmatmul.bf16.gmra.mxu0 %v62
    %v196 = vpop.f32.mrf.mxu0
    %v197 = vadd.f32 0.0, %v196
    %v198 = vpop.f32.mrf.mxu0
    %v199 = vadd.f32 0.0, %v198
    %200 = vdwg.mxu0
    %v201 = vpack.c.bf16 %v113, %v99
    %v202 = vpack.c.bf16 %v141, %v127
    %v203 = vpack.c.bf16 %v169, %v155
    %v204 = vpack.c.bf16 %v197, %v183
    %v205 = vpack.c.bf16 %v115, %v101
    %v206 = vpack.c.bf16 %v143, %v129
    %v207 = vpack.c.bf16 %v171, %v157
    %v208 = vpack.c.bf16 %v199, %v185
    %s209 = smul.u32 0, 8
    %s210 = smul.addr %s209, 4
    %s211 = scalar_lea.vmem %s2, %s210
    %212 = vst [vmem:[%s211] sm:$0xff] %v201
    %213 = vst [vmem:[%s211 + $0x8] sm:$0xff] %v202
    %214 = vst [vmem:[%s211 + $0x10] sm:$0xff] %v203
    %215 = vst [vmem:[%s211 + $0x18] sm:$0xff] %v204
    %216 = vst [vmem:[%s211 + $0x20] sm:$0xff] %v205
    %217 = vst [vmem:[%s211 + $0x28] sm:$0xff] %v206
    %218 = vst [vmem:[%s211 + $0x30] sm:$0xff] %v207
    %219 = vst [vmem:[%s211 + $0x38] sm:$0xff] %v208
    %v220 = vadd.f32 %v99, %v101
    %v221 = vrot.slane %v220, 4
    %v222 = vadd.f32 %v220, %v221
    %v223 = vrot.slane %v222, 2
    %v224 = vadd.f32 %v222, %v223
    %v225 = vrot.slane %v224, 1
    %v226 = vadd.f32 %v224, %v225
    %v227 = vadd.f32 %v113, %v115
    %v228 = vrot.slane %v227, 4
    %v229 = vadd.f32 %v227, %v228
    %v230 = vrot.slane %v229, 2
    %v231 = vadd.f32 %v229, %v230
    %v232 = vrot.slane %v231, 1
    %v233 = vadd.f32 %v231, %v232
    %v234 = vadd.f32 %v127, %v129
    %v235 = vrot.slane %v234, 4
    %v236 = vadd.f32 %v234, %v235
    %v237 = vrot.slane %v236, 2
    %v238 = vadd.f32 %v236, %v237
    %v239 = vrot.slane %v238, 1
    %v240 = vadd.f32 %v238, %v239
    %v241 = vadd.f32 %v141, %v143
    %v242 = vrot.slane %v241, 4
    %v243 = vadd.f32 %v241, %v242
    %v244 = vrot.slane %v243, 2
    %v245 = vadd.f32 %v243, %v244
    %v246 = vrot.slane %v245, 1
    %v247 = vadd.f32 %v245, %v246
    %v248 = vadd.f32 %v155, %v157
    %v249 = vrot.slane %v248, 4
    %v250 = vadd.f32 %v248, %v249
    %v251 = vrot.slane %v250, 2
    %v252 = vadd.f32 %v250, %v251
    %v253 = vrot.slane %v252, 1
    %v254 = vadd.f32 %v252, %v253
    %v255 = vadd.f32 %v169, %v171
    %v256 = vrot.slane %v255, 4
    %v257 = vadd.f32 %v255, %v256
    %v258 = vrot.slane %v257, 2
    %v259 = vadd.f32 %v257, %v258
    %v260 = vrot.slane %v259, 1
    %v261 = vadd.f32 %v259, %v260
    %v262 = vadd.f32 %v183, %v185
    %v263 = vrot.slane %v262, 4
    %v264 = vadd.f32 %v262, %v263
    %v265 = vrot.slane %v264, 2
    %v266 = vadd.f32 %v264, %v265
    %v267 = vrot.slane %v266, 1
    %v268 = vadd.f32 %v266, %v267
    %v269 = vadd.f32 %v197, %v199
    %v270 = vrot.slane %v269, 4
    %v271 = vadd.f32 %v269, %v270
    %v272 = vrot.slane %v271, 2
    %v273 = vadd.f32 %v271, %v272
    %v274 = vrot.slane %v273, 1
    %v275 = vadd.f32 %v273, %v274
    %v276 = vadd.f32 %v226, 0.0
    %v277 = vadd.f32 %v233, 0.0
    %v278 = vadd.f32 %v240, 0.0
    %v279 = vadd.f32 %v247, 0.0
    %v280 = vadd.f32 %v254, 0.0
    %v281 = vadd.f32 %v261, 0.0
    %v282 = vadd.f32 %v268, 0.0
    %v283 = vadd.f32 %v275, 0.0
    %v284 = vmul.f32 %v99, %v99
    %v285 = vmul.f32 %v113, %v113
    %v286 = vmul.f32 %v127, %v127
    %v287 = vmul.f32 %v141, %v141
    %v288 = vmul.f32 %v155, %v155
    %v289 = vmul.f32 %v169, %v169
    %v290 = vmul.f32 %v183, %v183
    %v291 = vmul.f32 %v197, %v197
    %v292 = vmul.f32 %v101, %v101
    %v293 = vmul.f32 %v115, %v115
    %v294 = vmul.f32 %v129, %v129
    %v295 = vmul.f32 %v143, %v143
    %v296 = vmul.f32 %v157, %v157
    %v297 = vmul.f32 %v171, %v171
    %v298 = vmul.f32 %v185, %v185
    %v299 = vmul.f32 %v199, %v199
    %v300 = vadd.f32 %v284, %v292
    %v301 = vrot.slane %v300, 4
    %v302 = vadd.f32 %v300, %v301
    %v303 = vrot.slane %v302, 2
    %v304 = vadd.f32 %v302, %v303
    %v305 = vrot.slane %v304, 1
    %v306 = vadd.f32 %v304, %v305
    %v307 = vadd.f32 %v285, %v293
    %v308 = vrot.slane %v307, 4
    %v309 = vadd.f32 %v307, %v308
    %v310 = vrot.slane %v309, 2
    %v311 = vadd.f32 %v309, %v310
    %v312 = vrot.slane %v311, 1
    %v313 = vadd.f32 %v311, %v312
    %v314 = vadd.f32 %v286, %v294
    %v315 = vrot.slane %v314, 4
    %v316 = vadd.f32 %v314, %v315
    %v317 = vrot.slane %v316, 2
    %v318 = vadd.f32 %v316, %v317
    %v319 = vrot.slane %v318, 1
    %v320 = vadd.f32 %v318, %v319
    %v321 = vadd.f32 %v287, %v295
    %v322 = vrot.slane %v321, 4
    %v323 = vadd.f32 %v321, %v322
    %v324 = vrot.slane %v323, 2
    %v325 = vadd.f32 %v323, %v324
    %v326 = vrot.slane %v325, 1
    %v327 = vadd.f32 %v325, %v326
    %v328 = vadd.f32 %v288, %v296
    %v329 = vrot.slane %v328, 4
    %v330 = vadd.f32 %v328, %v329
    %v331 = vrot.slane %v330, 2
    %v332 = vadd.f32 %v330, %v331
    %v333 = vrot.slane %v332, 1
    %v334 = vadd.f32 %v332, %v333
    %v335 = vadd.f32 %v289, %v297
    %v336 = vrot.slane %v335, 4
    %v337 = vadd.f32 %v335, %v336
    %v338 = vrot.slane %v337, 2
    %v339 = vadd.f32 %v337, %v338
    %v340 = vrot.slane %v339, 1
    %v341 = vadd.f32 %v339, %v340
    %v342 = vadd.f32 %v290, %v298
    %v343 = vrot.slane %v342, 4
    %v344 = vadd.f32 %v342, %v343
    %v345 = vrot.slane %v344, 2
    %v346 = vadd.f32 %v344, %v345
    %v347 = vrot.slane %v346, 1
    %v348 = vadd.f32 %v346, %v347
    %v349 = vadd.f32 %v291, %v299
    %v350 = vrot.slane %v349, 4
    %v351 = vadd.f32 %v349, %v350
    %v352 = vrot.slane %v351, 2
    %v353 = vadd.f32 %v351, %v352
    %v354 = vrot.slane %v353, 1
    %v355 = vadd.f32 %v353, %v354
    %v356 = vadd.f32 %v306, 0.0
    %v357 = vadd.f32 %v313, 0.0
    %v358 = vadd.f32 %v320, 0.0
    %v359 = vadd.f32 %v327, 0.0
    %v360 = vadd.f32 %v334, 0.0
    %v361 = vadd.f32 %v341, 0.0
    %v362 = vadd.f32 %v348, 0.0
    %v363 = vadd.f32 %v355, 0.0
    %v372 = vrot.slane %v277, 7
    %v373 = vrot.slane %v278, 6
    %v374 = vrot.slane %v279, 5
    %v375 = vrot.slane %v280, 4
    %v376 = vrot.slane %v281, 3
    %v377 = vrot.slane %v282, 2
    %v378 = vrot.slane %v283, 1
    %vm379 = vcmask 1040384
    %v380 = vsel %vm379, %v276, %v372
    %vm381 = vcmask 1042434
    %v382 = vsel %vm381, %v373, %v374
    %vm383 = vcmask 1041408
    %v384 = vsel %vm383, %v380, %v382
    %vm385 = vcmask 1044484
    %v386 = vsel %vm385, %v375, %v376
    %vm387 = vcmask 1046534
    %v388 = vsel %vm387, %v377, %v378
    %vm389 = vcmask 1045508
    %v390 = vsel %vm389, %v386, %v388
    %v391 = vsel %vm64, %v384, %v390
    %393 = vst [vmem:[%s3] sm:$0xff] %v391
    %v402 = vrot.slane %v357, 7
    %v403 = vrot.slane %v358, 6
    %v404 = vrot.slane %v359, 5
    %v405 = vrot.slane %v360, 4
    %v406 = vrot.slane %v361, 3
    %v407 = vrot.slane %v362, 2
    %v408 = vrot.slane %v363, 1
    %v409 = vsel %vm379, %v356, %v402
    %v410 = vsel %vm381, %v403, %v404
    %v411 = vsel %vm383, %v409, %v410
    %v412 = vsel %vm385, %v405, %v406
    %v413 = vsel %vm387, %v407, %v408
    %v414 = vsel %vm389, %v412, %v413
    %v415 = vsel %vm64, %v411, %v414
    %417 = vst [vmem:[%s4] sm:$0xff] %v415
    // Predicated region
    $region14: #{generator_forward.9} parent=1 // pred_check
      _
    $region15: #{generator_forward.9} parent=1 // pred_check_branch
      %419 = sbr.rel (0) target = $region17
    $region16: #{generator_forward.9} parent=1 // pred_region
      _
    $region17: #{generator_forward.9} parent=1 // pred_fallthru
      _
    // Predicated region
    $region18: #{generator_forward.9} parent=1 // pred_check
      _
    $region19: #{generator_forward.9} parent=1 // pred_check_branch
      %421 = sbr.rel (0) target = $region21
    $region20: #{generator_forward.9} parent=1 // pred_region
      _
    $region21: #{generator_forward.9} parent=1 // pred_fallthru
      _
    // Predicated region
    $region22: #{generator_forward.9} parent=1 // pred_check
      _
    $region23: #{generator_forward.9} parent=1 // pred_check_branch
      %423 = sbr.rel (0) target = $region25
    $region24: #{generator_forward.9} parent=1 // pred_region
      _
    $region25: #{generator_forward.9} parent=1 // pred_fallthru
      _
    // Predicated region
    $region26: #{generator_forward.9} parent=1 // pred_check
      _
    $region27: #{generator_forward.9} parent=1 // pred_check_branch
      %425 = sbr.rel (0) target = $region29
    $region28: #{generator_forward.9} parent=1 // pred_region
      _
    $region29: #{generator_forward.9} parent=1 // pred_fallthru
      _
    // Predicated region
    $region30: #{generator_forward.9} parent=1 // pred_check
      _
    $region31: #{generator_forward.9} parent=1 // pred_check_branch
      %427 = sbr.rel (0) target = $region33
    $region32: #{generator_forward.9} parent=1 // pred_region
      _
    $region33: #{generator_forward.9} parent=1 // pred_fallthru
      _
    // Predicated region
    $region34: #{generator_forward.9} parent=1 // pred_check
      _
    $region35: #{generator_forward.9} parent=1 // pred_check_branch
      %429 = sbr.rel (0) target = $region37
    $region36: #{generator_forward.9} parent=1 // pred_region
      _
    $region37: #{generator_forward.9} parent=1 // pred_fallthru
      _
    %430 = vsyncpa [#allocation3], 1

// kernel: generator_forward.10
$region0: #{generator_forward.10}
  #allocation0 [shape = 'u32[]', space=smem, size = 0x4, offset = 0x4, fixed_abs, tag = 'smem constant byte address 0x4 - core index']
  #allocation1 [shape = 'u32[72,128]{1,0:T(1,128)}', space=vmem, size = 0x9000, scoped, tag = 'internal scratch']
  %s0 = inlined_call_operand.vmem [shape: bf16[16,1024], index: 0, kind: input, shape index: {}]
  %s1 = inlined_call_operand.vmem [shape: f32[1,1024], index: 1, kind: input, shape index: {}]
  %s2 = inlined_call_operand.vmem [shape: f32[1,1024], index: 2, kind: input, shape index: {}]
  %s3 = inlined_call_operand.vmem [shape: bf16[16,1024], index: 3, kind: output, shape index: {}]
  %s4 = sld [smem:[#allocation0]]
  $region22: #{generator_forward.10} parent=0
    _
  %s6 = ssub.s32 1, %s4
  %s7 = scalar_select 0, %s6, %s4
  // Predicated region
  $region2: #{generator_forward.10} parent=0 // pred_check
    _
  $region3: #{generator_forward.10} parent=0 // pred_check_branch
    %9 = sbr.rel (0) target = $region5
  $region4: #{generator_forward.10} parent=0 // pred_region
    _
  $region5: #{generator_forward.10} parent=0 // pred_fallthru
    _
  // Predicated region
  $region6: #{generator_forward.10} parent=0 // pred_check
    _
  $region7: #{generator_forward.10} parent=0 // pred_check_branch
    %11 = sbr.rel (0) target = $region9
  $region8: #{generator_forward.10} parent=0 // pred_region
    _
  $region9: #{generator_forward.10} parent=0 // pred_fallthru
    _
  // Predicated region
  $region10: #{generator_forward.10} parent=0 // pred_check
    _
  $region11: #{generator_forward.10} parent=0 // pred_check_branch
    %13 = sbr.rel (0) target = $region13
  $region12: #{generator_forward.10} parent=0 // pred_region
    _
  $region13: #{generator_forward.10} parent=0 // pred_fallthru
    _
  %v14 = vld [vmem:[%s0] sm:$0xff]
  %v15 = vld [vmem:[%s0 + $0x8] sm:$0xff]
  %v16 = vld [vmem:[%s0 + $0x10] sm:$0xff]
  %v17 = vld [vmem:[%s0 + $0x18] sm:$0xff]
  %v18 = vld [vmem:[%s0 + $0x20] sm:$0xff]
  %v19 = vld [vmem:[%s0 + $0x28] sm:$0xff]
  %v20 = vld [vmem:[%s0 + $0x30] sm:$0xff]
  %v21 = vld [vmem:[%s0 + $0x38] sm:$0xff]
  %v22 = vunpack.c.l.bf16 %v14
  %v23 = vunpack.c.h.bf16 %v14
  %v24 = vunpack.c.l.bf16 %v15
  %v25 = vunpack.c.h.bf16 %v15
  %v26 = vunpack.c.l.bf16 %v16
  %v27 = vunpack.c.h.bf16 %v16
  %v28 = vunpack.c.l.bf16 %v17
  %v29 = vunpack.c.h.bf16 %v17
  %v30 = vunpack.c.l.bf16 %v18
  %v31 = vunpack.c.h.bf16 %v18
  %v32 = vunpack.c.l.bf16 %v19
  %v33 = vunpack.c.h.bf16 %v19
  %v34 = vunpack.c.l.bf16 %v20
  %v35 = vunpack.c.h.bf16 %v20
  %v36 = vunpack.c.l.bf16 %v21
  %v37 = vunpack.c.h.bf16 %v21
  %v38 = vld [vmem:[%s1] sm:$0xff]
  %v40 = vperm.slane %v38, 0
  %v41 = vperm.slane %v38, 1
  %v42 = vperm.slane %v38, 2
  %v43 = vperm.slane %v38, 3
  %v44 = vperm.slane %v38, 4
  %v45 = vperm.slane %v38, 5
  %v46 = vperm.slane %v38, 6
  %v47 = vperm.slane %v38, 7
  %v56 = vmul.f32 %v22, %v40
  %v57 = vmul.f32 %v23, %v41
  %v58 = vmul.f32 %v24, %v42
  %v59 = vmul.f32 %v25, %v43
  %v60 = vmul.f32 %v26, %v44
  %v61 = vmul.f32 %v27, %v45
  %v62 = vmul.f32 %v28, %v46
  %v63 = vmul.f32 %v29, %v47
  %v64 = vmul.f32 %v30, %v40
  %v65 = vmul.f32 %v31, %v41
  %v66 = vmul.f32 %v32, %v42
  %v67 = vmul.f32 %v33, %v43
  %v68 = vmul.f32 %v34, %v44
  %v69 = vmul.f32 %v35, %v45
  %v70 = vmul.f32 %v36, %v46
  %v71 = vmul.f32 %v37, %v47
  %v72 = vld [vmem:[%s2] sm:$0xff]
  %v74 = vperm.slane %v72, 0
  %v75 = vperm.slane %v72, 1
  %v76 = vperm.slane %v72, 2
  %v77 = vperm.slane %v72, 3
  %v78 = vperm.slane %v72, 4
  %v79 = vperm.slane %v72, 5
  %v80 = vperm.slane %v72, 6
  %v81 = vperm.slane %v72, 7
  %v90 = vadd.f32 %v56, %v74
  %v91 = vadd.f32 %v57, %v75
  %v92 = vadd.f32 %v58, %v76
  %v93 = vadd.f32 %v59, %v77
  %v94 = vadd.f32 %v60, %v78
  %v95 = vadd.f32 %v61, %v79
  %v96 = vadd.f32 %v62, %v80
  %v97 = vadd.f32 %v63, %v81
  %v98 = vadd.f32 %v64, %v74
  %v99 = vadd.f32 %v65, %v75
  %v100 = vadd.f32 %v66, %v76
  %v101 = vadd.f32 %v67, %v77
  %v102 = vadd.f32 %v68, %v78
  %v103 = vadd.f32 %v69, %v79
  %v104 = vadd.f32 %v70, %v80
  %v105 = vadd.f32 %v71, %v81
  %v106 = vmax.f32 %v90, 0.0
  %v107 = vmax.f32 %v91, 0.0
  %v108 = vmax.f32 %v92, 0.0
  %v109 = vmax.f32 %v93, 0.0
  %v110 = vmax.f32 %v94, 0.0
  %v111 = vmax.f32 %v95, 0.0
  %v112 = vmax.f32 %v96, 0.0
  %v113 = vmax.f32 %v97, 0.0
  %v114 = vmax.f32 %v98, 0.0
  %v115 = vmax.f32 %v99, 0.0
  %v116 = vmax.f32 %v100, 0.0
  %v117 = vmax.f32 %v101, 0.0
  %v118 = vmax.f32 %v102, 0.0
  %v119 = vmax.f32 %v103, 0.0
  %v120 = vmax.f32 %v104, 0.0
  %v121 = vmax.f32 %v105, 0.0
  %v122 = vpack.c.bf16 %v107, %v106
  %v123 = vpack.c.bf16 %v109, %v108
  %v124 = vpack.c.bf16 %v111, %v110
  %v125 = vpack.c.bf16 %v113, %v112
  %v126 = vpack.c.bf16 %v115, %v114
  %v127 = vpack.c.bf16 %v117, %v116
  %v128 = vpack.c.bf16 %v119, %v118
  %v129 = vpack.c.bf16 %v121, %v120
  %130 = vst [vmem:[%s3] sm:$0xff] %v122
  %131 = vst [vmem:[%s3 + $0x8] sm:$0xff] %v123
  %132 = vst [vmem:[%s3 + $0x10] sm:$0xff] %v124
  %133 = vst [vmem:[%s3 + $0x18] sm:$0xff] %v125
  %134 = vst [vmem:[%s3 + $0x20] sm:$0xff] %v126
  %135 = vst [vmem:[%s3 + $0x28] sm:$0xff] %v127
  %136 = vst [vmem:[%s3 + $0x30] sm:$0xff] %v128
  %137 = vst [vmem:[%s3 + $0x38] sm:$0xff] %v129
  // Predicated region
  $region14: #{generator_forward.10} parent=0 // pred_check
    _
  $region15: #{generator_forward.10} parent=0 // pred_check_branch
    %139 = sbr.rel (0) target = $region17
  $region16: #{generator_forward.10} parent=0 // pred_region
    _
  $region17: #{generator_forward.10} parent=0 // pred_fallthru
    _
  // Predicated region
  $region18: #{generator_forward.10} parent=0 // pred_check
    _
  $region19: #{generator_forward.10} parent=0 // pred_check_branch
    %141 = sbr.rel (0) target = $region21
  $region20: #{generator_forward.10} parent=0 // pred_region
    _
  $region21: #{generator_forward.10} parent=0 // pred_fallthru
    _

// kernel: tile.58
$region0: #{tile.58}
  #allocation0 [shape = 's32[1]{0}', space=sflag, size = 0x4, scoped, tag = 'scoped memory for tile.58']
  %s0 = inlined_call_operand.vmem [shape: f32[32], index: 0, kind: input, shape index: {}]
  %s1 = inlined_call_operand.vmem [shape: f32[4,32], index: 1, kind: output, shape index: {}]
  // Predicated region
  $region2: #{tile.58} parent=0 // pred_check
    _
  $region3: #{tile.58} parent=0 // pred_check_branch
    %3 = sbr.rel (0) target = $region5
  $region4: #{tile.58} parent=0 // pred_region
    _
  $region5: #{tile.58} parent=0 // pred_fallthru
    _
  %v4 = vld [vmem:[%s0] ss:$0 sm:$0xff]
  %5 = vst [vmem:[%s1] sm:$0xf] %v4

// kernel: generator_forward.12
$region0: #{generator_forward.12}
  #allocation0 [shape = 'u32[]', space=smem, size = 0x4, offset = 0x4, fixed_abs, tag = 'smem constant byte address 0x4 - core index']
  #allocation1 [shape = 'u32[72,128]{1,0:T(1,128)}', space=vmem, size = 0x9000, scoped, tag = 'internal scratch']
  %s0 = inlined_call_operand.vmem [shape: bf16[32,128], index: 0, kind: input, shape index: {}]
  %s1 = inlined_call_operand.vmem [shape: f32[1,128], index: 1, kind: input, shape index: {}]
  %s2 = inlined_call_operand.vmem [shape: f32[1,128], index: 2, kind: input, shape index: {}]
  %s3 = inlined_call_operand.vmem [shape: bf16[32,128], index: 3, kind: output, shape index: {}]
  %s4 = sld [smem:[#allocation0]]
  $region45: #{generator_forward.12} parent=0
    _
  %s6 = ssub.s32 1, %s4
  %s7 = scalar_select 0, %s6, %s4
  loop: start=0, step=1, limit=4
  $region2: #{generator_forward.12} parent=0 // loop_pre_header
    _
  $region3: #{generator_forward.12} parent=0 // loop_header
    %s9 = sphi 0, %s13
    %p10 = scmp.ge.s32.totalorder %s9, 4
    %s19 = sphi 0, %s21
    %s22 = sphi 0, %s19
    %s23 = sphi 0, %s22
    %s39 = sphi 0, %s23
    %s43 = sphi 0, %s43
    %s45 = sphi 0, %s43
    %s46 = sphi 0, %s45
    %s60 = sphi 0, %s46
    %s64 = sphi 0, %s64
    %s66 = sphi 0, %s64
    %s67 = sphi 0, %s66
    %s81 = sphi 0, %s67
    %s87 = sphi 0, %s89
    %s90 = sphi 0, %s87
    %s91 = sphi 0, %s90
    %s107 = sphi 0, %s91
  $region4: #{generator_forward.12} parent=0 // loop_header_branch
    %12 = sbr.rel (%p10) target = $region8
  $region5: #{generator_forward.12} parent=0 // loop_body
    %s14 = ssub.s32 %s9, 1
    %s15 = ssub.s32 %s9, 2
    %s16 = sadd.s32 %s9, 1
    %s17 = ssub.s32 %s9, %s16
    %p18 = scmp.eq.s32.totalorder %s17, 0
    %s20 = sadd.s32 %s19, 1
    %s21 = scalar_select %p18, %s19, %s20
    %p24 = pneg %p18
    %p25 = scmp.eq.s32.totalorder %s9, 1
    %p26 = por %p24, %p25
    %p27 = scmp.ne.s32.totalorder %s19, %s22
    %p28 = scmp.eq.s32.totalorder %s9, 0
    %p29 = por %p27, %p28
    %p30 = scmp.ne.s32.totalorder %s19, %s22
    %p31 = scmp.eq.s32.totalorder %s14, 1
    %p32 = por %p30, %p31
    %p33 = scmp.ne.s32.totalorder %s22, %s23
    %p34 = scmp.eq.s32.totalorder %s14, 0
    %p35 = por %p33, %p34
    %p36 = scmp.ne.s32.totalorder %s22, %s23
    %p37 = scmp.eq.s32.totalorder %s15, 1
    %p38 = por %p36, %p37
    %p40 = scmp.ne.s32.totalorder %s23, %s39
    %p41 = scmp.eq.s32.totalorder %s15, 0
    %p42 = por %p40, %p41
    %s44 = sadd.s32 %s43, 1
    %p47 = scmp.eq.s32.totalorder %s9, 1
    %p48 = scmp.ne.s32.totalorder %s43, %s45
    %p49 = scmp.eq.s32.totalorder %s9, 0
    %p50 = por %p48, %p49
    %p51 = scmp.ne.s32.totalorder %s43, %s45
    %p52 = scmp.eq.s32.totalorder %s14, 1
    %p53 = por %p51, %p52
    %p54 = scmp.ne.s32.totalorder %s45, %s46
    %p55 = scmp.eq.s32.totalorder %s14, 0
    %p56 = por %p54, %p55
    %p57 = scmp.ne.s32.totalorder %s45, %s46
    %p58 = scmp.eq.s32.totalorder %s15, 1
    %p59 = por %p57, %p58
    %p61 = scmp.ne.s32.totalorder %s46, %s60
    %p62 = scmp.eq.s32.totalorder %s15, 0
    %p63 = por %p61, %p62
    %s65 = sadd.s32 %s64, 1
    %p68 = scmp.eq.s32.totalorder %s9, 1
    %p69 = scmp.ne.s32.totalorder %s64, %s66
    %p70 = scmp.eq.s32.totalorder %s9, 0
    %p71 = por %p69, %p70
    %p72 = scmp.ne.s32.totalorder %s64, %s66
    %p73 = scmp.eq.s32.totalorder %s14, 1
    %p74 = por %p72, %p73
    %p75 = scmp.ne.s32.totalorder %s66, %s67
    %p76 = scmp.eq.s32.totalorder %s14, 0
    %p77 = por %p75, %p76
    %p78 = scmp.ne.s32.totalorder %s66, %s67
    %p79 = scmp.eq.s32.totalorder %s15, 1
    %p80 = por %p78, %p79
    %p82 = scmp.ne.s32.totalorder %s67, %s81
    %p83 = scmp.eq.s32.totalorder %s15, 0
    %p84 = por %p82, %p83
    %s85 = ssub.s32 %s9, %s16
    %p86 = scmp.eq.s32.totalorder %s85, 0
    %s88 = sadd.s32 %s87, 1
    %s89 = scalar_select %p86, %s87, %s88
    %p92 = pneg %p86
    %p93 = scmp.eq.s32.totalorder %s9, 1
    %p94 = por %p92, %p93
    %p95 = scmp.ne.s32.totalorder %s87, %s90
    %p96 = scmp.eq.s32.totalorder %s9, 0
    %p97 = por %p95, %p96
    %p98 = scmp.ne.s32.totalorder %s87, %s90
    %p99 = scmp.eq.s32.totalorder %s14, 1
    %p100 = por %p98, %p99
    %p101 = scmp.ne.s32.totalorder %s90, %s91
    %p102 = scmp.eq.s32.totalorder %s14, 0
    %p103 = por %p101, %p102
    %p104 = scmp.ne.s32.totalorder %s90, %s91
    %p105 = scmp.eq.s32.totalorder %s15, 1
    %p106 = por %p104, %p105
    %p108 = scmp.ne.s32.totalorder %s91, %s107
    %p109 = scmp.eq.s32.totalorder %s15, 0
    %p110 = por %p108, %p109
    %p111 = scmp.le.s32.totalorder 1, %s9
    %p112 = scmp.lt.s32.totalorder %s9, 3
    %p113 = pnand %p111, %p112
    %p114 = pneg %p113
    // Predicated region
    $region9: #{generator_forward.12} parent=5 // pred_check
      _
    $region10: #{generator_forward.12} parent=5 // pred_check_branch
      %116 = sbr.rel (%p113) target = $region12
    $region11: #{generator_forward.12} parent=5 // pred_region
      %s117 = ssub.s32 %s9, 1
      // Predicated region
      $region13: #{generator_forward.12} parent=11 // pred_check
        %p118 = pneg %p56
      $region14: #{generator_forward.12} parent=11 // pred_check_branch
        %120 = sbr.rel (%p118) target = $region16
      $region15: #{generator_forward.12} parent=11 // pred_region
        _
      $region16: #{generator_forward.12} parent=11 // pred_fallthru
        _
      // Predicated region
      $region17: #{generator_forward.12} parent=11 // pred_check
        %p121 = pneg %p77
      $region18: #{generator_forward.12} parent=11 // pred_check_branch
        %123 = sbr.rel (%p121) target = $region20
      $region19: #{generator_forward.12} parent=11 // pred_region
        _
      $region20: #{generator_forward.12} parent=11 // pred_fallthru
        _
    $region12: #{generator_forward.12} parent=5 // pred_fallthru
      _
    %p124 = scmp.lt.s32.totalorder %s9, 2
    // Predicated region
    $region21: #{generator_forward.12} parent=5 // pred_check
      %p125 = pneg %p124
    $region22: #{generator_forward.12} parent=5 // pred_check_branch
      %127 = sbr.rel (%p125) target = $region24
    $region23: #{generator_forward.12} parent=5 // pred_region
      // Predicated region
      $region25: #{generator_forward.12} parent=23 // pred_check
        %p128 = pneg %p29
      $region26: #{generator_forward.12} parent=23 // pred_check_branch
        %130 = sbr.rel (%p128) target = $region28
      $region27: #{generator_forward.12} parent=23 // pred_region
        %s131 = smul.u32 2, %s9
        %p132 = scmp.lt.s32.totalorder %s131, 3
        %s133 = scalar_select %p132, %s131, 3
        %s134 = smul.addr %s133, 4
        %s135 = scalar_lea.vmem %s0, %s134
        %s136 = smul.u32 2, %s9
      $region28: #{generator_forward.12} parent=23 // pred_fallthru
        _
    $region24: #{generator_forward.12} parent=5 // pred_fallthru
      _
    %p137 = scmp.le.s32.totalorder 1, %s9
    %p138 = scmp.lt.s32.totalorder %s9, 3
    %p139 = pnand %p137, %p138
    %p140 = pneg %p139
    // Predicated region
    $region29: #{generator_forward.12} parent=5 // pred_check
      _
    $region30: #{generator_forward.12} parent=5 // pred_check_branch
      %142 = sbr.rel (%p139) target = $region32
    $region31: #{generator_forward.12} parent=5 // pred_region
      %s143 = ssub.s32 %s9, 1
      %s144 = smul.u32 2, %s14
      %p145 = scmp.lt.s32.totalorder %s144, 3
      %s146 = scalar_select %p145, %s144, 3
      %s147 = smul.addr %s146, 4
      %s148 = scalar_lea.vmem %s0, %s147
      %p149 = pneg %p35
      %p150 = pneg %p32
      %p151 = pneg %p56
      %p152 = pneg %p53
      %p153 = pneg %p77
      %p154 = pneg %p74
      %p155 = pneg %p103
      %p156 = pneg %p100
      %s157 = smul.u32 2, %s14
      %p158 = scmp.lt.s32.totalorder %s157, 3
      %s159 = scalar_select %p158, %s157, 3
      %s160 = smul.addr %s159, 4
      %s161 = scalar_lea.vmem %s3, %s160
      %s162 = smul.u32 2, %s14
      %p163 = scmp.lt.s32.totalorder %s162, 3
      %s164 = scalar_select %p163, %s162, 3
      %s165 = smul.addr %s164, 4
      %s166 = scalar_lea.vmem %s0, %s165
      %s167 = smul.u32 2, %s14
      %s168 = smul.u32 2, %s14
      %p169 = scmp.lt.s32.totalorder %s168, 3
      %s170 = scalar_select %p169, %s168, 3
      %s171 = smul.addr %s170, 4
      %s172 = scalar_lea.vmem %s3, %s171
      %s173 = smul.u32 2, %s14
      %v174 = vld [vmem:[%s166] sm:$0xf]
      %v175 = vld [vmem:[%s166 + $0x4] sm:$0xf]
      %v176 = vunpack.c.l.bf16 %v174
      %v177 = vunpack.c.l.bf16 %v175
      %v178 = vld [vmem:[%s1] sm:$0x1]
      %v180 = vperm.slane %v178, 0
      %v182 = vmul.f32 %v176, %v180
      %v183 = vmul.f32 %v177, %v180
      %v184 = vld [vmem:[%s2] sm:$0x1]
      %v186 = vperm.slane %v184, 0
      %v188 = vadd.f32 %v182, %v186
      %v189 = vadd.f32 %v183, %v186
      %v190 = vmax.f32 %v188, 0.0
      %v191 = vmax.f32 %v189, 0.0
      %v192 = vpack.c.bf16 %v190, %v190
      %v193 = vpack.c.bf16 %v191, %v191
      %194 = vst [vmem:[%s172] sm:$0xf] %v192
      %195 = vst [vmem:[%s172 + $0x4] sm:$0xf] %v193
      %s196 = smul.u32 2, %s14
      %p197 = scmp.lt.s32.totalorder %s196, 3
      %s198 = scalar_select %p197, %s196, 3
      %s199 = smul.addr %s198, 4
      %s200 = scalar_lea.vmem %s3, %s199
      // Predicated region
      $region33: #{generator_forward.12} parent=31 // pred_check
        %p201 = pneg %p100
      $region34: #{generator_forward.12} parent=31 // pred_check_branch
        %203 = sbr.rel (%p201) target = $region36
      $region35: #{generator_forward.12} parent=31 // pred_region
        %s204 = smul.u32 2, %s14
      $region36: #{generator_forward.12} parent=31 // pred_fallthru
        _
    $region32: #{generator_forward.12} parent=5 // pred_fallthru
      _
    %p205 = scmp.le.s32.totalorder 2, %s9
    // Predicated region
    $region37: #{generator_forward.12} parent=5 // pred_check
      %p206 = pneg %p205
    $region38: #{generator_forward.12} parent=5 // pred_check_branch
      %208 = sbr.rel (%p206) target = $region40
    $region39: #{generator_forward.12} parent=5 // pred_region
      %s209 = ssub.s32 %s9, 2
      // Predicated region
      $region41: #{generator_forward.12} parent=39 // pred_check
        %p210 = pneg %p106
      $region42: #{generator_forward.12} parent=39 // pred_check_branch
        %212 = sbr.rel (%p210) target = $region44
      $region43: #{generator_forward.12} parent=39 // pred_region
        %s213 = smul.u32 2, %s15
        %p214 = scmp.lt.s32.totalorder %s213, 3
        %s215 = scalar_select %p214, %s213, 3
        %s216 = smul.addr %s215, 4
        %s217 = scalar_lea.vmem %s3, %s216
      $region44: #{generator_forward.12} parent=39 // pred_fallthru
        _
    $region40: #{generator_forward.12} parent=5 // pred_fallthru
      _
  $region6: #{generator_forward.12} parent=0 // loop_footer
    %s13 = sadd.s32 1, %s9
  $region7: #{generator_forward.12} parent=0 // loop_footer_branch
    %8 = sbr.rel target = $region3
  $region8: #{generator_forward.12} parent=0 // loop_exit
    _

// kernel: generator_forward.11
$region0: #{generator_forward.11}
  #allocation0 [shape = 'u32[]', space=smem, size = 0x4, offset = 0x4, fixed_abs, tag = 'smem constant byte address 0x4 - core index']
  #allocation1 [shape = 'u32[72,128]{1,0:T(1,128)}', space=vmem, size = 0x9000, scoped, tag = 'internal scratch']
  %s0 = inlined_call_operand.vmem [shape: bf16[32,576], index: 0, kind: input, shape index: {}]
  %s1 = inlined_call_operand.hbm [shape: bf16[576,128], index: 1, kind: input, shape index: {}]
  %s2 = inlined_call_operand.vmem [shape: bf16[32,128], index: 2, kind: output, shape index: {0}]
  %s3 = inlined_call_operand.vmem [shape: f32[2,1,128], index: 3, kind: output, shape index: {1}]
  %s4 = inlined_call_operand.vmem [shape: f32[2,1,128], index: 4, kind: output, shape index: {2}]
  %5 = xla_tuple %s2, %s3, %s4
  %s6 = sld [smem:[#allocation0]]
  $region61: #{generator_forward.11} parent=0
    _
  %s8 = ssub.s32 1, %s6
  %s9 = scalar_select 0, %s8, %s6
  $region1: #{generator_forward.11} parent=0
    #allocation2 [shape = 'u8[147456]{0}', space=vmem, size = 0x24000, scoped, tag = 'input window, operand 1, single buffered']
    #allocation3 [shape = 's32[2]{0}', space=sflag, size = 0x8, scoped, tag = 'scoped memory for generator_forward.11']
    %10 = vsyncpa [#allocation3], 0
    loop: start=0, step=1, limit=4
    $region2: #{generator_forward.11} parent=1 // loop_pre_header
      _
    $region3: #{generator_forward.11} parent=1 // loop_header
      %s12 = sphi 0, %s16
      %p13 = scmp.ge.s32.totalorder %s12, 4
      %s22 = sphi 0, %s24
      %s25 = sphi 0, %s22
      %s26 = sphi 0, %s25
      %s42 = sphi 0, %s26
      %s46 = sphi 0, %s46
      %s48 = sphi 0, %s46
      %s49 = sphi 0, %s48
      %s63 = sphi 0, %s49
      %s69 = sphi 0, %s71
      %s72 = sphi 0, %s69
      %s73 = sphi 0, %s72
      %s89 = sphi 0, %s73
      %s95 = sphi 0, %s97
      %s98 = sphi 0, %s95
      %s99 = sphi 0, %s98
      %s115 = sphi 0, %s99
      %s121 = sphi 0, %s123
      %s124 = sphi 0, %s121
      %s125 = sphi 0, %s124
      %s141 = sphi 0, %s125
    $region4: #{generator_forward.11} parent=1 // loop_header_branch
      %15 = sbr.rel (%p13) target = $region8
    $region5: #{generator_forward.11} parent=1 // loop_body
      %s17 = ssub.s32 %s12, 1
      %s18 = ssub.s32 %s12, 2
      %s19 = sadd.s32 %s12, 1
      %s20 = ssub.s32 %s12, %s19
      %p21 = scmp.eq.s32.totalorder %s20, 0
      %s23 = sadd.s32 %s22, 1
      %s24 = scalar_select %p21, %s22, %s23
      %p27 = pneg %p21
      %p28 = scmp.eq.s32.totalorder %s12, 1
      %p29 = por %p27, %p28
      %p30 = scmp.ne.s32.totalorder %s22, %s25
      %p31 = scmp.eq.s32.totalorder %s12, 0
      %p32 = por %p30, %p31
      %p33 = scmp.ne.s32.totalorder %s22, %s25
      %p34 = scmp.eq.s32.totalorder %s17, 1
      %p35 = por %p33, %p34
      %p36 = scmp.ne.s32.totalorder %s25, %s26
      %p37 = scmp.eq.s32.totalorder %s17, 0
      %p38 = por %p36, %p37
      %p39 = scmp.ne.s32.totalorder %s25, %s26
      %p40 = scmp.eq.s32.totalorder %s18, 1
      %p41 = por %p39, %p40
      %p43 = scmp.ne.s32.totalorder %s26, %s42
      %p44 = scmp.eq.s32.totalorder %s18, 0
      %p45 = por %p43, %p44
      %s47 = sadd.s32 %s46, 1
      %p50 = scmp.eq.s32.totalorder %s12, 1
      %p51 = scmp.ne.s32.totalorder %s46, %s48
      %p52 = scmp.eq.s32.totalorder %s12, 0
      %p53 = por %p51, %p52
      %p54 = scmp.ne.s32.totalorder %s46, %s48
      %p55 = scmp.eq.s32.totalorder %s17, 1
      %p56 = por %p54, %p55
      %p57 = scmp.ne.s32.totalorder %s48, %s49
      %p58 = scmp.eq.s32.totalorder %s17, 0
      %p59 = por %p57, %p58
      %p60 = scmp.ne.s32.totalorder %s48, %s49
      %p61 = scmp.eq.s32.totalorder %s18, 1
      %p62 = por %p60, %p61
      %p64 = scmp.ne.s32.totalorder %s49, %s63
      %p65 = scmp.eq.s32.totalorder %s18, 0
      %p66 = por %p64, %p65
      %s67 = ssub.s32 %s12, %s19
      %p68 = scmp.eq.s32.totalorder %s67, 0
      %s70 = sadd.s32 %s69, 1
      %s71 = scalar_select %p68, %s69, %s70
      %p74 = pneg %p68
      %p75 = scmp.eq.s32.totalorder %s12, 1
      %p76 = por %p74, %p75
      %p77 = scmp.ne.s32.totalorder %s69, %s72
      %p78 = scmp.eq.s32.totalorder %s12, 0
      %p79 = por %p77, %p78
      %p80 = scmp.ne.s32.totalorder %s69, %s72
      %p81 = scmp.eq.s32.totalorder %s17, 1
      %p82 = por %p80, %p81
      %p83 = scmp.ne.s32.totalorder %s72, %s73
      %p84 = scmp.eq.s32.totalorder %s17, 0
      %p85 = por %p83, %p84
      %p86 = scmp.ne.s32.totalorder %s72, %s73
      %p87 = scmp.eq.s32.totalorder %s18, 1
      %p88 = por %p86, %p87
      %p90 = scmp.ne.s32.totalorder %s73, %s89
      %p91 = scmp.eq.s32.totalorder %s18, 0
      %p92 = por %p90, %p91
      %s93 = ssub.s32 %s12, %s19
      %p94 = scmp.eq.s32.totalorder %s93, 0
      %s96 = sadd.s32 %s95, 1
      %s97 = scalar_select %p94, %s95, %s96
      %p100 = pneg %p94
      %p101 = scmp.eq.s32.totalorder %s12, 1
      %p102 = por %p100, %p101
      %p103 = scmp.ne.s32.totalorder %s95, %s98
      %p104 = scmp.eq.s32.totalorder %s12, 0
      %p105 = por %p103, %p104
      %p106 = scmp.ne.s32.totalorder %s95, %s98
      %p107 = scmp.eq.s32.totalorder %s17, 1
      %p108 = por %p106, %p107
      %p109 = scmp.ne.s32.totalorder %s98, %s99
      %p110 = scmp.eq.s32.totalorder %s17, 0
      %p111 = por %p109, %p110
      %p112 = scmp.ne.s32.totalorder %s98, %s99
      %p113 = scmp.eq.s32.totalorder %s18, 1
      %p114 = por %p112, %p113
      %p116 = scmp.ne.s32.totalorder %s99, %s115
      %p117 = scmp.eq.s32.totalorder %s18, 0
      %p118 = por %p116, %p117
      %s119 = ssub.s32 %s12, %s19
      %p120 = scmp.eq.s32.totalorder %s119, 0
      %s122 = sadd.s32 %s121, 1
      %s123 = scalar_select %p120, %s121, %s122
      %p126 = pneg %p120
      %p127 = scmp.eq.s32.totalorder %s12, 1
      %p128 = por %p126, %p127
      %p129 = scmp.ne.s32.totalorder %s121, %s124
      %p130 = scmp.eq.s32.totalorder %s12, 0
      %p131 = por %p129, %p130
      %p132 = scmp.ne.s32.totalorder %s121, %s124
      %p133 = scmp.eq.s32.totalorder %s17, 1
      %p134 = por %p132, %p133
      %p135 = scmp.ne.s32.totalorder %s124, %s125
      %p136 = scmp.eq.s32.totalorder %s17, 0
      %p137 = por %p135, %p136
      %p138 = scmp.ne.s32.totalorder %s124, %s125
      %p139 = scmp.eq.s32.totalorder %s18, 1
      %p140 = por %p138, %p139
      %p142 = scmp.ne.s32.totalorder %s125, %s141
      %p143 = scmp.eq.s32.totalorder %s18, 0
      %p144 = por %p142, %p143
      %p145 = scmp.le.s32.totalorder 1, %s12
      %p146 = scmp.lt.s32.totalorder %s12, 3
      %p147 = pnand %p145, %p146
      %p148 = pneg %p147
      // Predicated region
      $region9: #{generator_forward.11} parent=5 // pred_check
        _
      $region10: #{generator_forward.11} parent=5 // pred_check_branch
        %150 = sbr.rel (%p147) target = $region12
      $region11: #{generator_forward.11} parent=5 // pred_region
        %s151 = ssub.s32 %s12, 1
        // Predicated region
        $region13: #{generator_forward.11} parent=11 // pred_check
          %p152 = pneg %p59
        $region14: #{generator_forward.11} parent=11 // pred_check_branch
          %154 = sbr.rel (%p152) target = $region16
        $region15: #{generator_forward.11} parent=11 // pred_region
          %156 = vsyncadd [#allocation3], 0
          %s157 = sshll.u32 %s1, 4
          %s158 = int_to_ptr.hbm [resolvable:$true] %s157
          %s159 = sshll.u32 [#allocation2], 4
          %s160 = int_to_ptr.vmem [resolvable:$true] %s159
          %165 = dma.hbm_to_vmem [thread:$0]  %s158, 4608, %s160, [#allocation3], 64, 64, 4
        $region16: #{generator_forward.11} parent=11 // pred_fallthru
          _
      $region12: #{generator_forward.11} parent=5 // pred_fallthru
        _
      %p166 = scmp.lt.s32.totalorder %s12, 2
      // Predicated region
      $region17: #{generator_forward.11} parent=5 // pred_check
        %p167 = pneg %p166
      $region18: #{generator_forward.11} parent=5 // pred_check_branch
        %169 = sbr.rel (%p167) target = $region20
      $region19: #{generator_forward.11} parent=5 // pred_region
        // Predicated region
        $region21: #{generator_forward.11} parent=19 // pred_check
          %p170 = pneg %p32
        $region22: #{generator_forward.11} parent=19 // pred_check_branch
          %172 = sbr.rel (%p170) target = $region24
        $region23: #{generator_forward.11} parent=19 // pred_region
          %s173 = smul.u32 2, %s12
          %p174 = scmp.lt.s32.totalorder %s173, 3
          %s175 = scalar_select %p174, %s173, 3
          %s176 = smul.addr %s175, 5
          %s177 = smul.addr %s176, 4
          %s178 = scalar_lea.vmem %s0, %s177
          %s179 = smul.u32 2, %s12
        $region24: #{generator_forward.11} parent=19 // pred_fallthru
          _
      $region20: #{generator_forward.11} parent=5 // pred_fallthru
        _
      %p180 = scmp.le.s32.totalorder 1, %s12
      %p181 = scmp.lt.s32.totalorder %s12, 3
      %p182 = pnand %p180, %p181
      %p183 = pneg %p182
      // Predicated region
      $region25: #{generator_forward.11} parent=5 // pred_check
        _
      $region26: #{generator_forward.11} parent=5 // pred_check_branch
        %185 = sbr.rel (%p182) target = $region28
      $region27: #{generator_forward.11} parent=5 // pred_region
        %s186 = ssub.s32 %s12, 1
        // Predicated region
        $region29: #{generator_forward.11} parent=27 // pred_check
          %p187 = pneg %p59
        $region30: #{generator_forward.11} parent=27 // pred_check_branch
          %189 = sbr.rel (%p187) target = $region32
        $region31: #{generator_forward.11} parent=27 // pred_region
          %191 = dma.done [#allocation3], 4608
        $region32: #{generator_forward.11} parent=27 // pred_fallthru
          _
        %s192 = smul.u32 2, %s17
        %p193 = scmp.lt.s32.totalorder %s192, 3
        %s194 = scalar_select %p193, %s192, 3
        %s195 = smul.addr %s194, 5
        %s196 = smul.addr %s195, 4
        %s197 = scalar_lea.vmem %s0, %s196
        %p198 = pneg %p38
        %p199 = pneg %p35
        %p200 = pneg %p59
        %p201 = pneg %p56
        %p202 = pneg %p85
        %p203 = pneg %p82
        %s204 = smul.u32 2, %s17
        %p205 = scmp.lt.s32.totalorder %s204, 3
        %s206 = scalar_select %p205, %s204, 3
        %s207 = smul.addr %s206, 4
        %s208 = scalar_lea.vmem %s2, %s207
        %p209 = pneg %p111
        %p210 = pneg %p108
        %p211 = scmp.lt.s32.totalorder %s17, 1
        %s212 = scalar_select %p211, %s17, 1
        %s213 = scalar_lea.vmem %s3, %s212
        %p214 = pneg %p137
        %p215 = pneg %p134
        %p216 = scmp.lt.s32.totalorder %s17, 1
        %s217 = scalar_select %p216, %s17, 1
        %s218 = scalar_lea.vmem %s4, %s217
        %s219 = smul.u32 2, %s17
        %p220 = scmp.lt.s32.totalorder %s219, 3
        %s221 = scalar_select %p220, %s219, 3
        %s222 = smul.addr %s221, 5
        %s223 = smul.addr %s222, 4
        %s224 = scalar_lea.vmem %s0, %s223
        %s225 = smul.u32 2, %s17
        %s226 = smul.u32 2, %s17
        %p227 = scmp.lt.s32.totalorder %s226, 3
        %s228 = scalar_select %p227, %s226, 3
        %s229 = smul.addr %s228, 4
        %s230 = scalar_lea.vmem %s2, %s229
        %s231 = smul.u32 2, %s17
        %p232 = scmp.lt.s32.totalorder %s17, 1
        %s233 = scalar_select %p232, %s17, 1
        %s234 = scalar_lea.vmem %s3, %s233
        %p235 = scmp.lt.s32.totalorder %s17, 1
        %s236 = scalar_select %p235, %s17, 1
        %s237 = scalar_lea.vmem %s4, %s236
        %s239 = smul.u32 0, 5
        %s240 = smul.addr %s239, 4
        %s241 = scalar_lea.vmem %s224, %s240
        %v242 = vld [vmem:[%s241] sm:$0xff]
        %v243 = vld [vmem:[%s241 + $0x8] sm:$0xff]
        %v244 = vld [vmem:[%s241 + $0x10] sm:$0xf]
        %v245 = vld [vmem:[%s241 + $0x14] sm:$0xff]
        %v246 = vld [vmem:[%s241 + $0x1c] sm:$0xff]
        %v247 = vld [vmem:[%s241 + $0x24] sm:$0xf]
        %v248 = vld [vmem:[#allocation2] sm:$0xf]
        %v249 = vld [vmem:[#allocation2 + $0x4] sm:$0xf]
        %v250 = vld [vmem:[#allocation2 + $0x8] sm:$0xf]
        %v251 = vld [vmem:[#allocation2 + $0xc] sm:$0xf]
        %v252 = vld [vmem:[#allocation2 + $0x10] sm:$0xf]
        %v253 = vld [vmem:[#allocation2 + $0x14] sm:$0xf]
        %v254 = vld [vmem:[#allocation2 + $0x18] sm:$0xf]
        %v255 = vld [vmem:[#allocation2 + $0x1c] sm:$0xf]
        %v256 = vld [vmem:[#allocation2 + $0x20] sm:$0xf]
        %v257 = vld [vmem:[#allocation2 + $0x24] sm:$0xf]
        %v258 = vld [vmem:[#allocation2 + $0x28] sm:$0xf]
        %v259 = vld [vmem:[#allocation2 + $0x2c] sm:$0xf]
        %v260 = vld [vmem:[#allocation2 + $0x30] sm:$0xf]
        %v261 = vld [vmem:[#allocation2 + $0x34] sm:$0xf]
        %v262 = vld [vmem:[#allocation2 + $0x38] sm:$0xf]
        %v263 = vld [vmem:[#allocation2 + $0x3c] sm:$0xf]
        %v264 = vld [vmem:[#allocation2 + $0x40] sm:$0xf]
        %v265 = vld [vmem:[#allocation2 + $0x44] sm:$0xf]
        %v266 = vld [vmem:[#allocation2 + $0x48] sm:$0xf]
        %v267 = vld [vmem:[#allocation2 + $0x4c] sm:$0xf]
        %v268 = vld [vmem:[#allocation2 + $0x50] sm:$0xf]
        %v269 = vld [vmem:[#allocation2 + $0x54] sm:$0xf]
        %v270 = vld [vmem:[#allocation2 + $0x58] sm:$0xf]
        %v271 = vld [vmem:[#allocation2 + $0x5c] sm:$0xf]
        %v272 = vld [vmem:[#allocation2 + $0x60] sm:$0xf]
        %v273 = vld [vmem:[#allocation2 + $0x64] sm:$0xf]
        %v274 = vld [vmem:[#allocation2 + $0x68] sm:$0xf]
        %v275 = vld [vmem:[#allocation2 + $0x6c] sm:$0xf]
        %v276 = vld [vmem:[#allocation2 + $0x70] sm:$0xf]
        %v277 = vld [vmem:[#allocation2 + $0x74] sm:$0xf]
        %v278 = vld [vmem:[#allocation2 + $0x78] sm:$0xf]
        %v279 = vld [vmem:[#allocation2 + $0x7c] sm:$0xf]
        %v280 = vld [vmem:[#allocation2 + $0x80] sm:$0xf]
        %v281 = vld [vmem:[#allocation2 + $0x84] sm:$0xf]
        %v282 = vld [vmem:[#allocation2 + $0x88] sm:$0xf]
        %v283 = vld [vmem:[#allocation2 + $0x8c] sm:$0xf]
        %v284 = vld [vmem:[#allocation2 + $0x90] sm:$0xf]
        %v285 = vld [vmem:[#allocation2 + $0x94] sm:$0xf]
        %v286 = vld [vmem:[#allocation2 + $0x98] sm:$0xf]
        %v287 = vld [vmem:[#allocation2 + $0x9c] sm:$0xf]
        %v288 = vld [vmem:[#allocation2 + $0xa0] sm:$0xf]
        %v289 = vld [vmem:[#allocation2 + $0xa4] sm:$0xf]
        %v290 = vld [vmem:[#allocation2 + $0xa8] sm:$0xf]
        %v291 = vld [vmem:[#allocation2 + $0xac] sm:$0xf]
        %v292 = vld [vmem:[#allocation2 + $0xb0] sm:$0xf]
        %v293 = vld [vmem:[#allocation2 + $0xb4] sm:$0xf]
        %v294 = vld [vmem:[#allocation2 + $0xb8] sm:$0xf]
        %v295 = vld [vmem:[#allocation2 + $0xbc] sm:$0xf]
        %v296 = vld [vmem:[#allocation2 + $0xc0] sm:$0xf]
        %v297 = vld [vmem:[#allocation2 + $0xc4] sm:$0xf]
        %v298 = vld [vmem:[#allocation2 + $0xc8] sm:$0xf]
        %v299 = vld [vmem:[#allocation2 + $0xcc] sm:$0xf]
        %v300 = vld [vmem:[#allocation2 + $0xd0] sm:$0xf]
        %v301 = vld [vmem:[#allocation2 + $0xd4] sm:$0xf]
        %v302 = vld [vmem:[#allocation2 + $0xd8] sm:$0xf]
        %v303 = vld [vmem:[#allocation2 + $0xdc] sm:$0xf]
        %v304 = vld [vmem:[#allocation2 + $0xe0] sm:$0xf]
        %v305 = vld [vmem:[#allocation2 + $0xe4] sm:$0xf]
        %v306 = vld [vmem:[#allocation2 + $0xe8] sm:$0xf]
        %v307 = vld [vmem:[#allocation2 + $0xec] sm:$0xf]
        %v308 = vld [vmem:[#allocation2 + $0xf0] sm:$0xf]
        %v309 = vld [vmem:[#allocation2 + $0xf4] sm:$0xf]
        %v310 = vld [vmem:[#allocation2 + $0xf8] sm:$0xf]
        %v311 = vld [vmem:[#allocation2 + $0xfc] sm:$0xf]
        %v312 = vld [vmem:[#allocation2 + $0x100] sm:$0xf]
        %v313 = vld [vmem:[#allocation2 + $0x104] sm:$0xf]
        %v314 = vld [vmem:[#allocation2 + $0x108] sm:$0xf]
        %v315 = vld [vmem:[#allocation2 + $0x10c] sm:$0xf]
        %v316 = vld [vmem:[#allocation2 + $0x110] sm:$0xf]
        %v317 = vld [vmem:[#allocation2 + $0x114] sm:$0xf]
        %v318 = vld [vmem:[#allocation2 + $0x118] sm:$0xf]
        %v319 = vld [vmem:[#allocation2 + $0x11c] sm:$0xf]
        %v326 = vunpack.c.l.b16 %v242
        %v327 = vunpack.c.h.b16 %v242
        %v328 = vunpack.c.l.b16 %v243
        %v329 = vunpack.c.h.b16 %v243
        %v330 = vunpack.c.l.b16 %v244
        %v331 = vunpack.c.l.b16 %v245
        %v332 = vunpack.c.h.b16 %v245
        %v333 = vunpack.c.l.b16 %v246
        %v334 = vunpack.c.h.b16 %v246
        %v335 = vunpack.c.l.b16 %v247
        %v336 = vpack.c.b16 %v331, %v326
        %v337 = vpack.c.b16 %v332, %v327
        %v338 = vpack.c.b16 %v333, %v328
        %v339 = vpack.c.b16 %v334, %v329
        %v340 = vpack.c.b16 %v335, %v330
        %v417 = vunpack.c.l.b16 %v248
        %v418 = vunpack.c.l.b16 %v249
        %v419 = vunpack.c.l.b16 %v250
        %v420 = vunpack.c.l.b16 %v251
        %v421 = vunpack.c.l.b16 %v252
        %v422 = vunpack.c.l.b16 %v253
        %v423 = vunpack.c.l.b16 %v254
        %v424 = vunpack.c.l.b16 %v255
        %v425 = vunpack.c.l.b16 %v256
        %v426 = vunpack.c.l.b16 %v257
        %v427 = vunpack.c.l.b16 %v258
        %v428 = vunpack.c.l.b16 %v259
        %v429 = vunpack.c.l.b16 %v260
        %v430 = vunpack.c.l.b16 %v261
        %v431 = vunpack.c.l.b16 %v262
        %v432 = vunpack.c.l.b16 %v263
        %v433 = vunpack.c.l.b16 %v264
        %v434 = vunpack.c.l.b16 %v265
        %v435 = vunpack.c.l.b16 %v266
        %v436 = vunpack.c.l.b16 %v267
        %v437 = vunpack.c.l.b16 %v268
        %v438 = vunpack.c.l.b16 %v269
        %v439 = vunpack.c.l.b16 %v270
        %v440 = vunpack.c.l.b16 %v271
        %v441 = vunpack.c.l.b16 %v272
        %v442 = vunpack.c.l.b16 %v273
        %v443 = vunpack.c.l.b16 %v274
        %v444 = vunpack.c.l.b16 %v275
        %v445 = vunpack.c.l.b16 %v276
        %v446 = vunpack.c.l.b16 %v277
        %v447 = vunpack.c.l.b16 %v278
        %v448 = vunpack.c.l.b16 %v279
        %v449 = vunpack.c.l.b16 %v280
        %v450 = vunpack.c.l.b16 %v281
        %v451 = vunpack.c.l.b16 %v282
        %v452 = vunpack.c.l.b16 %v283
        %v453 = vunpack.c.l.b16 %v284
        %v454 = vunpack.c.l.b16 %v285
        %v455 = vunpack.c.l.b16 %v286
        %v456 = vunpack.c.l.b16 %v287
        %v457 = vunpack.c.l.b16 %v288
        %v458 = vunpack.c.l.b16 %v289
        %v459 = vunpack.c.l.b16 %v290
        %v460 = vunpack.c.l.b16 %v291
        %v461 = vunpack.c.l.b16 %v292
        %v462 = vunpack.c.l.b16 %v293
        %v463 = vunpack.c.l.b16 %v294
        %v464 = vunpack.c.l.b16 %v295
        %v465 = vunpack.c.l.b16 %v296
        %v466 = vunpack.c.l.b16 %v297
        %v467 = vunpack.c.l.b16 %v298
        %v468 = vunpack.c.l.b16 %v299
        %v469 = vunpack.c.l.b16 %v300
        %v470 = vunpack.c.l.b16 %v301
        %v471 = vunpack.c.l.b16 %v302
        %v472 = vunpack.c.l.b16 %v303
        %v473 = vunpack.c.l.b16 %v304
        %v474 = vunpack.c.l.b16 %v305
        %v475 = vunpack.c.l.b16 %v306
        %v476 = vunpack.c.l.b16 %v307
        %v477 = vunpack.c.l.b16 %v308
        %v478 = vunpack.c.l.b16 %v309
        %v479 = vunpack.c.l.b16 %v310
        %v480 = vunpack.c.l.b16 %v311
        %v481 = vunpack.c.l.b16 %v312
        %v482 = vunpack.c.l.b16 %v313
        %v483 = vunpack.c.l.b16 %v314
        %v484 = vunpack.c.l.b16 %v315
        %v485 = vunpack.c.l.b16 %v316
        %v486 = vunpack.c.l.b16 %v317
        %v487 = vunpack.c.l.b16 %v318
        %v488 = vunpack.c.l.b16 %v319
        %v489 = vpack.c.b16 %v418, %v417
        %v490 = vpack.c.b16 %v420, %v419
        %v491 = vpack.c.b16 %v422, %v421
        %v492 = vpack.c.b16 %v424, %v423
        %v493 = vpack.c.b16 %v426, %v425
        %v494 = vpack.c.b16 %v428, %v427
        %v495 = vpack.c.b16 %v430, %v429
        %v496 = vpack.c.b16 %v432, %v431
        %v497 = vpack.c.b16 %v434, %v433
        %v498 = vpack.c.b16 %v436, %v435
        %v499 = vpack.c.b16 %v438, %v437
        %v500 = vpack.c.b16 %v440, %v439
        %v501 = vpack.c.b16 %v442, %v441
        %v502 = vpack.c.b16 %v444, %v443
        %v503 = vpack.c.b16 %v446, %v445
        %v504 = vpack.c.b16 %v448, %v447
        %v505 = vpack.c.b16 %v450, %v449
        %v506 = vpack.c.b16 %v452, %v451
        %v507 = vpack.c.b16 %v454, %v453
        %v508 = vpack.c.b16 %v456, %v455
        %v509 = vpack.c.b16 %v458, %v457
        %v510 = vpack.c.b16 %v460, %v459
        %v511 = vpack.c.b16 %v462, %v461
        %v512 = vpack.c.b16 %v464, %v463
        %v513 = vpack.c.b16 %v466, %v465
        %v514 = vpack.c.b16 %v468, %v467
        %v515 = vpack.c.b16 %v470, %v469
        %v516 = vpack.c.b16 %v472, %v471
        %v517 = vpack.c.b16 %v474, %v473
        %v518 = vpack.c.b16 %v476, %v475
        %v519 = vpack.c.b16 %v478, %v477
        %v520 = vpack.c.b16 %v480, %v479
        %v521 = vpack.c.b16 %v482, %v481
        %v522 = vpack.c.b16 %v484, %v483
        %v523 = vpack.c.b16 %v486, %v485
        %v524 = vpack.c.b16 %v488, %v487
        %vm561 = vcmask 523264
        %v563 = vsel %vm561, %v340, 0
        %565 = vmatpush.bf16.msra.mxu0 %v496
        %566 = vmatpush.bf16.msra.mxu0 %v495
        %567 = vmatpush.bf16.msra.mxu0 %v494
        %568 = vmatpush.bf16.msra.mxu0 %v493
        %569 = vmatpush.bf16.msra.mxu0 %v492
        %570 = vmatpush.bf16.msra.mxu0 %v491
        %571 = vmatpush.bf16.msra.mxu0 %v490
        %572 = vmatpush.bf16.msra.mxu0 %v489
        %573 = vmatmul.bf16.gmra.mxu0 %v336
        %v574 = vpop.f32.mrf.mxu0
        %v575 = vadd.f32 0.0, %v574
        %v576 = vpop.f32.mrf.mxu0
        %v577 = vadd.f32 0.0, %v576
        %578 = vdwg.mxu0
        %579 = vmatpush.bf16.msra.mxu0 %v504
        %580 = vmatpush.bf16.msra.mxu0 %v503
        %581 = vmatpush.bf16.msra.mxu0 %v502
        %582 = vmatpush.bf16.msra.mxu0 %v501
        %583 = vmatpush.bf16.msra.mxu0 %v500
        %584 = vmatpush.bf16.msra.mxu0 %v499
        %585 = vmatpush.bf16.msra.mxu0 %v498
        %586 = vmatpush.bf16.msra.mxu0 %v497
        %587 = vmatmul.bf16.gmra.mxu0 %v337
        %v588 = vpop.f32.mrf.mxu0
        %v589 = vadd.f32 %v575, %v588
        %v590 = vpop.f32.mrf.mxu0
        %v591 = vadd.f32 %v577, %v590
        %592 = vdwg.mxu0
        %593 = vmatpush.bf16.msra.mxu0 %v512
        %594 = vmatpush.bf16.msra.mxu0 %v511
        %595 = vmatpush.bf16.msra.mxu0 %v510
        %596 = vmatpush.bf16.msra.mxu0 %v509
        %597 = vmatpush.bf16.msra.mxu0 %v508
        %598 = vmatpush.bf16.msra.mxu0 %v507
        %599 = vmatpush.bf16.msra.mxu0 %v506
        %600 = vmatpush.bf16.msra.mxu0 %v505
        %601 = vmatmul.bf16.gmra.mxu0 %v338
        %v602 = vpop.f32.mrf.mxu0
        %v603 = vadd.f32 %v589, %v602
        %v604 = vpop.f32.mrf.mxu0
        %v605 = vadd.f32 %v591, %v604
        %606 = vdwg.mxu0
        %607 = vmatpush.bf16.msra.mxu0 %v520
        %608 = vmatpush.bf16.msra.mxu0 %v519
        %609 = vmatpush.bf16.msra.mxu0 %v518
        %610 = vmatpush.bf16.msra.mxu0 %v517
        %611 = vmatpush.bf16.msra.mxu0 %v516
        %612 = vmatpush.bf16.msra.mxu0 %v515
        %613 = vmatpush.bf16.msra.mxu0 %v514
        %614 = vmatpush.bf16.msra.mxu0 %v513
        %615 = vmatmul.bf16.gmra.mxu0 %v339
        %v616 = vpop.f32.mrf.mxu0
        %v617 = vadd.f32 %v603, %v616
        %v618 = vpop.f32.mrf.mxu0
        %v619 = vadd.f32 %v605, %v618
        %620 = vdwg.mxu0
        %621 = vmatpush.bf16.msra.mxu0 0
        %622 = vmatpush.bf16.msra.mxu0 0
        %623 = vmatpush.bf16.msra.mxu0 0
        %624 = vmatpush.bf16.msra.mxu0 0
        %625 = vmatpush.bf16.msra.mxu0 %v524
        %626 = vmatpush.bf16.msra.mxu0 %v523
        %627 = vmatpush.bf16.msra.mxu0 %v522
        %628 = vmatpush.bf16.msra.mxu0 %v521
        %629 = vmatmul.bf16.gmra.mxu0 %v563
        %v630 = vpop.f32.mrf.mxu0
        %v631 = vadd.f32 %v617, %v630
        %v632 = vpop.f32.mrf.mxu0
        %v633 = vadd.f32 %v619, %v632
        %634 = vdwg.mxu0
        %v635 = vpack.c.bf16 %v631, %v631
        %v636 = vpack.c.bf16 %v633, %v633
        %637 = vst [vmem:[%s230] sm:$0xf] %v635
        %638 = vst [vmem:[%s230 + $0x4] sm:$0xf] %v636
        %v639 = vadd.f32 %v631, %v633
        %v640 = vrot.slane %v639, 4
        %v641 = vadd.f32 %v639, %v640
        %v642 = vrot.slane %v641, 2
        %v643 = vadd.f32 %v641, %v642
        %v644 = vrot.slane %v643, 1
        %v645 = vadd.f32 %v643, %v644
        %v646 = vadd.f32 %v645, 0.0
        %v647 = vmul.f32 %v631, %v631
        %v648 = vmul.f32 %v633, %v633
        %v649 = vadd.f32 %v647, %v648
        %v650 = vrot.slane %v649, 4
        %v651 = vadd.f32 %v649, %v650
        %v652 = vrot.slane %v651, 2
        %v653 = vadd.f32 %v651, %v652
        %v654 = vrot.slane %v653, 1
        %v655 = vadd.f32 %v653, %v654
        %v656 = vadd.f32 %v655, 0.0
        %657 = vst [vmem:[%s234] sm:$0x1] %v646
        %658 = vst [vmem:[%s237] sm:$0x1] %v656
        %s659 = smul.u32 2, %s17
        %p660 = scmp.lt.s32.totalorder %s659, 3
        %s661 = scalar_select %p660, %s659, 3
        %s662 = smul.addr %s661, 4
        %s663 = scalar_lea.vmem %s2, %s662
        %p664 = scmp.lt.s32.totalorder %s17, 1
        %s665 = scalar_select %p664, %s17, 1
        %s666 = scalar_lea.vmem %s3, %s665
        %p667 = scmp.lt.s32.totalorder %s17, 1
        %s668 = scalar_select %p667, %s17, 1
        %s669 = scalar_lea.vmem %s4, %s668
        // Predicated region
        $region33: #{generator_forward.11} parent=27 // pred_check
          %p670 = pneg %p82
        $region34: #{generator_forward.11} parent=27 // pred_check_branch
          %672 = sbr.rel (%p670) target = $region36
        $region35: #{generator_forward.11} parent=27 // pred_region
          %s673 = smul.u32 2, %s17
        $region36: #{generator_forward.11} parent=27 // pred_fallthru
          _
        // Predicated region
        $region37: #{generator_forward.11} parent=27 // pred_check
          %p674 = pneg %p108
        $region38: #{generator_forward.11} parent=27 // pred_check_branch
          %676 = sbr.rel (%p674) target = $region40
        $region39: #{generator_forward.11} parent=27 // pred_region
          _
        $region40: #{generator_forward.11} parent=27 // pred_fallthru
          _
        // Predicated region
        $region41: #{generator_forward.11} parent=27 // pred_check
          %p677 = pneg %p134
        $region42: #{generator_forward.11} parent=27 // pred_check_branch
          %679 = sbr.rel (%p677) target = $region44
        $region43: #{generator_forward.11} parent=27 // pred_region
          _
        $region44: #{generator_forward.11} parent=27 // pred_fallthru
          _
      $region28: #{generator_forward.11} parent=5 // pred_fallthru
        _
      %p680 = scmp.le.s32.totalorder 2, %s12
      // Predicated region
      $region45: #{generator_forward.11} parent=5 // pred_check
        %p681 = pneg %p680
      $region46: #{generator_forward.11} parent=5 // pred_check_branch
        %683 = sbr.rel (%p681) target = $region48
      $region47: #{generator_forward.11} parent=5 // pred_region
        %s684 = ssub.s32 %s12, 2
        // Predicated region
        $region49: #{generator_forward.11} parent=47 // pred_check
          %p685 = pneg %p88
        $region50: #{generator_forward.11} parent=47 // pred_check_branch
          %687 = sbr.rel (%p685) target = $region52
        $region51: #{generator_forward.11} parent=47 // pred_region
          %s688 = smul.u32 2, %s18
          %p689 = scmp.lt.s32.totalorder %s688, 3
          %s690 = scalar_select %p689, %s688, 3
          %s691 = smul.addr %s690, 4
          %s692 = scalar_lea.vmem %s2, %s691
        $region52: #{generator_forward.11} parent=47 // pred_fallthru
          _
        // Predicated region
        $region53: #{generator_forward.11} parent=47 // pred_check
          %p693 = pneg %p114
        $region54: #{generator_forward.11} parent=47 // pred_check_branch
          %695 = sbr.rel (%p693) target = $region56
        $region55: #{generator_forward.11} parent=47 // pred_region
          %p696 = scmp.lt.s32.totalorder %s18, 1
          %s697 = scalar_select %p696, %s18, 1
          %s698 = scalar_lea.vmem %s3, %s697
        $region56: #{generator_forward.11} parent=47 // pred_fallthru
          _
        // Predicated region
        $region57: #{generator_forward.11} parent=47 // pred_check
          %p699 = pneg %p140
        $region58: #{generator_forward.11} parent=47 // pred_check_branch
          %701 = sbr.rel (%p699) target = $region60
        $region59: #{generator_forward.11} parent=47 // pred_region
          %p702 = scmp.lt.s32.totalorder %s18, 1
          %s703 = scalar_select %p702, %s18, 1
          %s704 = scalar_lea.vmem %s4, %s703
        $region60: #{generator_forward.11} parent=47 // pred_fallthru
          _
      $region48: #{generator_forward.11} parent=5 // pred_fallthru
        _
    $region6: #{generator_forward.11} parent=1 // loop_footer
      %s16 = sadd.s32 1, %s12
    $region7: #{generator_forward.11} parent=1 // loop_footer_branch
      %11 = sbr.rel target = $region3
    $region8: #{generator_forward.11} parent=1 // loop_exit
      _
    %705 = vsyncpa [#allocation3], 1
    %s706 = scalar_lea.sflag [#allocation3], 1
    %707 = vsyncpa %s706, 1

// kernel: tile.68
$region0: #{tile.68}
  #allocation0 [shape = 's32[1]{0}', space=sflag, size = 0x4, scoped, tag = 'scoped memory for tile.68']
  %s0 = inlined_call_operand.vmem [shape: f32[16], index: 0, kind: input, shape index: {}]
  %s1 = inlined_call_operand.vmem [shape: f32[4,16], index: 1, kind: output, shape index: {}]
  // Predicated region
  $region2: #{tile.68} parent=0 // pred_check
    _
  $region3: #{tile.68} parent=0 // pred_check_branch
    %3 = sbr.rel (0) target = $region5
  $region4: #{tile.68} parent=0 // pred_region
    _
  $region5: #{tile.68} parent=0 // pred_fallthru
    _
  %v4 = vld [vmem:[%s0] ss:$0 sm:$0xff]
  %5 = vst [vmem:[%s1] sm:$0xf] %v4

// kernel: generator_forward.13
$region0: #{generator_forward.13}
  #allocation0 [shape = 'u32[]', space=smem, size = 0x4, offset = 0x4, fixed_abs, tag = 'smem constant byte address 0x4 - core index']
  #allocation1 [shape = 'u32[72,128]{1,0:T(1,128)}', space=vmem, size = 0x9000, scoped, tag = 'internal scratch']
  %s0 = inlined_call_operand.vmem [shape: bf16[128,288], index: 0, kind: input, shape index: {}]
  %s1 = inlined_call_operand.vmem [shape: bf16[288,128], index: 1, kind: input, shape index: {}]
  %s2 = inlined_call_operand.vmem [shape: bf16[128,128], index: 2, kind: output, shape index: {0}]
  %s3 = inlined_call_operand.vmem [shape: f32[2,1,128], index: 3, kind: output, shape index: {1}]
  %s4 = inlined_call_operand.vmem [shape: f32[2,1,128], index: 4, kind: output, shape index: {2}]
  %5 = xla_tuple %s2, %s3, %s4
  %s6 = sld [smem:[#allocation0]]
  $region57: #{generator_forward.13} parent=0
    _
  %s8 = ssub.s32 1, %s6
  %s9 = scalar_select 0, %s8, %s6
  loop: start=0, step=1, limit=4
  $region2: #{generator_forward.13} parent=0 // loop_pre_header
    _
  $region3: #{generator_forward.13} parent=0 // loop_header
    %s11 = sphi 0, %s15
    %p12 = scmp.ge.s32.totalorder %s11, 4
    %s21 = sphi 0, %s23
    %s24 = sphi 0, %s21
    %s25 = sphi 0, %s24
    %s41 = sphi 0, %s25
    %s45 = sphi 0, %s45
    %s47 = sphi 0, %s45
    %s48 = sphi 0, %s47
    %s62 = sphi 0, %s48
    %s68 = sphi 0, %s70
    %s71 = sphi 0, %s68
    %s72 = sphi 0, %s71
    %s88 = sphi 0, %s72
    %s94 = sphi 0, %s96
    %s97 = sphi 0, %s94
    %s98 = sphi 0, %s97
    %s114 = sphi 0, %s98
    %s120 = sphi 0, %s122
    %s123 = sphi 0, %s120
    %s124 = sphi 0, %s123
    %s140 = sphi 0, %s124
  $region4: #{generator_forward.13} parent=0 // loop_header_branch
    %14 = sbr.rel (%p12) target = $region8
  $region5: #{generator_forward.13} parent=0 // loop_body
    %s16 = ssub.s32 %s11, 1
    %s17 = ssub.s32 %s11, 2
    %s18 = sadd.s32 %s11, 1
    %s19 = ssub.s32 %s11, %s18
    %p20 = scmp.eq.s32.totalorder %s19, 0
    %s22 = sadd.s32 %s21, 1
    %s23 = scalar_select %p20, %s21, %s22
    %p26 = pneg %p20
    %p27 = scmp.eq.s32.totalorder %s11, 1
    %p28 = por %p26, %p27
    %p29 = scmp.ne.s32.totalorder %s21, %s24
    %p30 = scmp.eq.s32.totalorder %s11, 0
    %p31 = por %p29, %p30
    %p32 = scmp.ne.s32.totalorder %s21, %s24
    %p33 = scmp.eq.s32.totalorder %s16, 1
    %p34 = por %p32, %p33
    %p35 = scmp.ne.s32.totalorder %s24, %s25
    %p36 = scmp.eq.s32.totalorder %s16, 0
    %p37 = por %p35, %p36
    %p38 = scmp.ne.s32.totalorder %s24, %s25
    %p39 = scmp.eq.s32.totalorder %s17, 1
    %p40 = por %p38, %p39
    %p42 = scmp.ne.s32.totalorder %s25, %s41
    %p43 = scmp.eq.s32.totalorder %s17, 0
    %p44 = por %p42, %p43
    %s46 = sadd.s32 %s45, 1
    %p49 = scmp.eq.s32.totalorder %s11, 1
    %p50 = scmp.ne.s32.totalorder %s45, %s47
    %p51 = scmp.eq.s32.totalorder %s11, 0
    %p52 = por %p50, %p51
    %p53 = scmp.ne.s32.totalorder %s45, %s47
    %p54 = scmp.eq.s32.totalorder %s16, 1
    %p55 = por %p53, %p54
    %p56 = scmp.ne.s32.totalorder %s47, %s48
    %p57 = scmp.eq.s32.totalorder %s16, 0
    %p58 = por %p56, %p57
    %p59 = scmp.ne.s32.totalorder %s47, %s48
    %p60 = scmp.eq.s32.totalorder %s17, 1
    %p61 = por %p59, %p60
    %p63 = scmp.ne.s32.totalorder %s48, %s62
    %p64 = scmp.eq.s32.totalorder %s17, 0
    %p65 = por %p63, %p64
    %s66 = ssub.s32 %s11, %s18
    %p67 = scmp.eq.s32.totalorder %s66, 0
    %s69 = sadd.s32 %s68, 1
    %s70 = scalar_select %p67, %s68, %s69
    %p73 = pneg %p67
    %p74 = scmp.eq.s32.totalorder %s11, 1
    %p75 = por %p73, %p74
    %p76 = scmp.ne.s32.totalorder %s68, %s71
    %p77 = scmp.eq.s32.totalorder %s11, 0
    %p78 = por %p76, %p77
    %p79 = scmp.ne.s32.totalorder %s68, %s71
    %p80 = scmp.eq.s32.totalorder %s16, 1
    %p81 = por %p79, %p80
    %p82 = scmp.ne.s32.totalorder %s71, %s72
    %p83 = scmp.eq.s32.totalorder %s16, 0
    %p84 = por %p82, %p83
    %p85 = scmp.ne.s32.totalorder %s71, %s72
    %p86 = scmp.eq.s32.totalorder %s17, 1
    %p87 = por %p85, %p86
    %p89 = scmp.ne.s32.totalorder %s72, %s88
    %p90 = scmp.eq.s32.totalorder %s17, 0
    %p91 = por %p89, %p90
    %s92 = ssub.s32 %s11, %s18
    %p93 = scmp.eq.s32.totalorder %s92, 0
    %s95 = sadd.s32 %s94, 1
    %s96 = scalar_select %p93, %s94, %s95
    %p99 = pneg %p93
    %p100 = scmp.eq.s32.totalorder %s11, 1
    %p101 = por %p99, %p100
    %p102 = scmp.ne.s32.totalorder %s94, %s97
    %p103 = scmp.eq.s32.totalorder %s11, 0
    %p104 = por %p102, %p103
    %p105 = scmp.ne.s32.totalorder %s94, %s97
    %p106 = scmp.eq.s32.totalorder %s16, 1
    %p107 = por %p105, %p106
    %p108 = scmp.ne.s32.totalorder %s97, %s98
    %p109 = scmp.eq.s32.totalorder %s16, 0
    %p110 = por %p108, %p109
    %p111 = scmp.ne.s32.totalorder %s97, %s98
    %p112 = scmp.eq.s32.totalorder %s17, 1
    %p113 = por %p111, %p112
    %p115 = scmp.ne.s32.totalorder %s98, %s114
    %p116 = scmp.eq.s32.totalorder %s17, 0
    %p117 = por %p115, %p116
    %s118 = ssub.s32 %s11, %s18
    %p119 = scmp.eq.s32.totalorder %s118, 0
    %s121 = sadd.s32 %s120, 1
    %s122 = scalar_select %p119, %s120, %s121
    %p125 = pneg %p119
    %p126 = scmp.eq.s32.totalorder %s11, 1
    %p127 = por %p125, %p126
    %p128 = scmp.ne.s32.totalorder %s120, %s123
    %p129 = scmp.eq.s32.totalorder %s11, 0
    %p130 = por %p128, %p129
    %p131 = scmp.ne.s32.totalorder %s120, %s123
    %p132 = scmp.eq.s32.totalorder %s16, 1
    %p133 = por %p131, %p132
    %p134 = scmp.ne.s32.totalorder %s123, %s124
    %p135 = scmp.eq.s32.totalorder %s16, 0
    %p136 = por %p134, %p135
    %p137 = scmp.ne.s32.totalorder %s123, %s124
    %p138 = scmp.eq.s32.totalorder %s17, 1
    %p139 = por %p137, %p138
    %p141 = scmp.ne.s32.totalorder %s124, %s140
    %p142 = scmp.eq.s32.totalorder %s17, 0
    %p143 = por %p141, %p142
    %p144 = scmp.le.s32.totalorder 1, %s11
    %p145 = scmp.lt.s32.totalorder %s11, 3
    %p146 = pnand %p144, %p145
    %p147 = pneg %p146
    // Predicated region
    $region9: #{generator_forward.13} parent=5 // pred_check
      _
    $region10: #{generator_forward.13} parent=5 // pred_check_branch
      %149 = sbr.rel (%p146) target = $region12
    $region11: #{generator_forward.13} parent=5 // pred_region
      %s150 = ssub.s32 %s11, 1
      // Predicated region
      $region13: #{generator_forward.13} parent=11 // pred_check
        %p151 = pneg %p58
      $region14: #{generator_forward.13} parent=11 // pred_check_branch
        %153 = sbr.rel (%p151) target = $region16
      $region15: #{generator_forward.13} parent=11 // pred_region
        _
      $region16: #{generator_forward.13} parent=11 // pred_fallthru
        _
    $region12: #{generator_forward.13} parent=5 // pred_fallthru
      _
    %p154 = scmp.lt.s32.totalorder %s11, 2
    // Predicated region
    $region17: #{generator_forward.13} parent=5 // pred_check
      %p155 = pneg %p154
    $region18: #{generator_forward.13} parent=5 // pred_check_branch
      %157 = sbr.rel (%p155) target = $region20
    $region19: #{generator_forward.13} parent=5 // pred_region
      // Predicated region
      $region21: #{generator_forward.13} parent=19 // pred_check
        %p158 = pneg %p31
      $region22: #{generator_forward.13} parent=19 // pred_check_branch
        %160 = sbr.rel (%p158) target = $region24
      $region23: #{generator_forward.13} parent=19 // pred_region
        %s161 = smul.u32 8, %s11
        %p162 = scmp.lt.s32.totalorder %s161, 15
        %s163 = scalar_select %p162, %s161, 15
        %s164 = smul.addr %s163, 3
        %s165 = smul.addr %s164, 4
        %s166 = scalar_lea.vmem %s0, %s165
        %s167 = smul.u32 8, %s11
      $region24: #{generator_forward.13} parent=19 // pred_fallthru
        _
    $region20: #{generator_forward.13} parent=5 // pred_fallthru
      _
    %p168 = scmp.le.s32.totalorder 1, %s11
    %p169 = scmp.lt.s32.totalorder %s11, 3
    %p170 = pnand %p168, %p169
    %p171 = pneg %p170
    // Predicated region
    $region25: #{generator_forward.13} parent=5 // pred_check
      _
    $region26: #{generator_forward.13} parent=5 // pred_check_branch
      %173 = sbr.rel (%p170) target = $region28
    $region27: #{generator_forward.13} parent=5 // pred_region
      %s174 = ssub.s32 %s11, 1
      %s175 = smul.u32 8, %s16
      %p176 = scmp.lt.s32.totalorder %s175, 15
      %s177 = scalar_select %p176, %s175, 15
      %s178 = smul.addr %s177, 3
      %s179 = smul.addr %s178, 4
      %s180 = scalar_lea.vmem %s0, %s179
      %p181 = pneg %p37
      %p182 = pneg %p34
      %p183 = pneg %p58
      %p184 = pneg %p55
      %p185 = pneg %p84
      %p186 = pneg %p81
      %s187 = smul.u32 8, %s16
      %p188 = scmp.lt.s32.totalorder %s187, 15
      %s189 = scalar_select %p188, %s187, 15
      %s190 = smul.addr %s189, 4
      %s191 = scalar_lea.vmem %s2, %s190
      %p192 = pneg %p110
      %p193 = pneg %p107
      %p194 = scmp.lt.s32.totalorder %s16, 1
      %s195 = scalar_select %p194, %s16, 1
      %s196 = scalar_lea.vmem %s3, %s195
      %p197 = pneg %p136
      %p198 = pneg %p133
      %p199 = scmp.lt.s32.totalorder %s16, 1
      %s200 = scalar_select %p199, %s16, 1
      %s201 = scalar_lea.vmem %s4, %s200
      %s202 = smul.u32 8, %s16
      %p203 = scmp.lt.s32.totalorder %s202, 15
      %s204 = scalar_select %p203, %s202, 15
      %s205 = smul.addr %s204, 3
      %s206 = smul.addr %s205, 4
      %s207 = scalar_lea.vmem %s0, %s206
      %s208 = smul.u32 8, %s16
      %s209 = smul.u32 8, %s16
      %p210 = scmp.lt.s32.totalorder %s209, 15
      %s211 = scalar_select %p210, %s209, 15
      %s212 = smul.addr %s211, 4
      %s213 = scalar_lea.vmem %s2, %s212
      %s214 = smul.u32 8, %s16
      %p215 = scmp.lt.s32.totalorder %s16, 1
      %s216 = scalar_select %p215, %s16, 1
      %s217 = scalar_lea.vmem %s3, %s216
      %p218 = scmp.lt.s32.totalorder %s16, 1
      %s219 = scalar_select %p218, %s16, 1
      %s220 = scalar_lea.vmem %s4, %s219
      %s222 = smul.u32 0, 3
      %s223 = smul.addr %s222, 4
      %s224 = scalar_lea.vmem %s207, %s223
      %v225 = vld [vmem:[%s224] sm:$0xff]
      %v226 = vld [vmem:[%s224 + $0x8] sm:$0xf]
      %v227 = vld [vmem:[%s224 + $0xc] sm:$0xff]
      %v228 = vld [vmem:[%s224 + $0x14] sm:$0xf]
      %v229 = vld [vmem:[%s224 + $0x18] sm:$0xff]
      %v230 = vld [vmem:[%s224 + $0x20] sm:$0xf]
      %v231 = vld [vmem:[%s224 + $0x24] sm:$0xff]
      %v232 = vld [vmem:[%s224 + $0x2c] sm:$0xf]
      %v233 = vld [vmem:[%s224 + $0x30] sm:$0xff]
      %v234 = vld [vmem:[%s224 + $0x38] sm:$0xf]
      %v235 = vld [vmem:[%s224 + $0x3c] sm:$0xff]
      %v236 = vld [vmem:[%s224 + $0x44] sm:$0xf]
      %v237 = vld [vmem:[%s224 + $0x48] sm:$0xff]
      %v238 = vld [vmem:[%s224 + $0x50] sm:$0xf]
      %v239 = vld [vmem:[%s224 + $0x54] sm:$0xff]
      %v240 = vld [vmem:[%s224 + $0x5c] sm:$0xf]
      %v241 = vld [vmem:[%s1] sm:$0xf]
      %v242 = vld [vmem:[%s1 + $0x4] sm:$0xf]
      %v243 = vld [vmem:[%s1 + $0x8] sm:$0xf]
      %v244 = vld [vmem:[%s1 + $0xc] sm:$0xf]
      %v245 = vld [vmem:[%s1 + $0x10] sm:$0xf]
      %v246 = vld [vmem:[%s1 + $0x14] sm:$0xf]
      %v247 = vld [vmem:[%s1 + $0x18] sm:$0xf]
      %v248 = vld [vmem:[%s1 + $0x1c] sm:$0xf]
      %v249 = vld [vmem:[%s1 + $0x20] sm:$0xf]
      %v250 = vld [vmem:[%s1 + $0x24] sm:$0xf]
      %v251 = vld [vmem:[%s1 + $0x28] sm:$0xf]
      %v252 = vld [vmem:[%s1 + $0x2c] sm:$0xf]
      %v253 = vld [vmem:[%s1 + $0x30] sm:$0xf]
      %v254 = vld [vmem:[%s1 + $0x34] sm:$0xf]
      %v255 = vld [vmem:[%s1 + $0x38] sm:$0xf]
      %v256 = vld [vmem:[%s1 + $0x3c] sm:$0xf]
      %v257 = vld [vmem:[%s1 + $0x40] sm:$0xf]
      %v258 = vld [vmem:[%s1 + $0x44] sm:$0xf]
      %v259 = vld [vmem:[%s1 + $0x48] sm:$0xf]
      %v260 = vld [vmem:[%s1 + $0x4c] sm:$0xf]
      %v261 = vld [vmem:[%s1 + $0x50] sm:$0xf]
      %v262 = vld [vmem:[%s1 + $0x54] sm:$0xf]
      %v263 = vld [vmem:[%s1 + $0x58] sm:$0xf]
      %v264 = vld [vmem:[%s1 + $0x5c] sm:$0xf]
      %v265 = vld [vmem:[%s1 + $0x60] sm:$0xf]
      %v266 = vld [vmem:[%s1 + $0x64] sm:$0xf]
      %v267 = vld [vmem:[%s1 + $0x68] sm:$0xf]
      %v268 = vld [vmem:[%s1 + $0x6c] sm:$0xf]
      %v269 = vld [vmem:[%s1 + $0x70] sm:$0xf]
      %v270 = vld [vmem:[%s1 + $0x74] sm:$0xf]
      %v271 = vld [vmem:[%s1 + $0x78] sm:$0xf]
      %v272 = vld [vmem:[%s1 + $0x7c] sm:$0xf]
      %v273 = vld [vmem:[%s1 + $0x80] sm:$0xf]
      %v274 = vld [vmem:[%s1 + $0x84] sm:$0xf]
      %v275 = vld [vmem:[%s1 + $0x88] sm:$0xf]
      %v276 = vld [vmem:[%s1 + $0x8c] sm:$0xf]
      %v293 = vunpack.c.l.b16 %v225
      %v294 = vunpack.c.h.b16 %v225
      %v295 = vunpack.c.l.b16 %v226
      %v296 = vunpack.c.l.b16 %v227
      %v297 = vunpack.c.h.b16 %v227
      %v298 = vunpack.c.l.b16 %v228
      %v299 = vunpack.c.l.b16 %v229
      %v300 = vunpack.c.h.b16 %v229
      %v301 = vunpack.c.l.b16 %v230
      %v302 = vunpack.c.l.b16 %v231
      %v303 = vunpack.c.h.b16 %v231
      %v304 = vunpack.c.l.b16 %v232
      %v305 = vunpack.c.l.b16 %v233
      %v306 = vunpack.c.h.b16 %v233
      %v307 = vunpack.c.l.b16 %v234
      %v308 = vunpack.c.l.b16 %v235
      %v309 = vunpack.c.h.b16 %v235
      %v310 = vunpack.c.l.b16 %v236
      %v311 = vunpack.c.l.b16 %v237
      %v312 = vunpack.c.h.b16 %v237
      %v313 = vunpack.c.l.b16 %v238
      %v314 = vunpack.c.l.b16 %v239
      %v315 = vunpack.c.h.b16 %v239
      %v316 = vunpack.c.l.b16 %v240
      %v317 = vpack.c.b16 %v296, %v293
      %v318 = vpack.c.b16 %v297, %v294
      %v319 = vpack.c.b16 %v298, %v295
      %v320 = vpack.c.b16 %v302, %v299
      %v321 = vpack.c.b16 %v303, %v300
      %v322 = vpack.c.b16 %v304, %v301
      %v323 = vpack.c.b16 %v308, %v305
      %v324 = vpack.c.b16 %v309, %v306
      %v325 = vpack.c.b16 %v310, %v307
      %v326 = vpack.c.b16 %v314, %v311
      %v327 = vpack.c.b16 %v315, %v312
      %v328 = vpack.c.b16 %v316, %v313
      %v373 = vunpack.c.l.b16 %v241
      %v374 = vunpack.c.l.b16 %v242
      %v375 = vunpack.c.l.b16 %v243
      %v376 = vunpack.c.l.b16 %v244
      %v377 = vunpack.c.l.b16 %v245
      %v378 = vunpack.c.l.b16 %v246
      %v379 = vunpack.c.l.b16 %v247
      %v380 = vunpack.c.l.b16 %v248
      %v381 = vunpack.c.l.b16 %v249
      %v382 = vunpack.c.l.b16 %v250
      %v383 = vunpack.c.l.b16 %v251
      %v384 = vunpack.c.l.b16 %v252
      %v385 = vunpack.c.l.b16 %v253
      %v386 = vunpack.c.l.b16 %v254
      %v387 = vunpack.c.l.b16 %v255
      %v388 = vunpack.c.l.b16 %v256
      %v389 = vunpack.c.l.b16 %v257
      %v390 = vunpack.c.l.b16 %v258
      %v391 = vunpack.c.l.b16 %v259
      %v392 = vunpack.c.l.b16 %v260
      %v393 = vunpack.c.l.b16 %v261
      %v394 = vunpack.c.l.b16 %v262
      %v395 = vunpack.c.l.b16 %v263
      %v396 = vunpack.c.l.b16 %v264
      %v397 = vunpack.c.l.b16 %v265
      %v398 = vunpack.c.l.b16 %v266
      %v399 = vunpack.c.l.b16 %v267
      %v400 = vunpack.c.l.b16 %v268
      %v401 = vunpack.c.l.b16 %v269
      %v402 = vunpack.c.l.b16 %v270
      %v403 = vunpack.c.l.b16 %v271
      %v404 = vunpack.c.l.b16 %v272
      %v405 = vunpack.c.l.b16 %v273
      %v406 = vunpack.c.l.b16 %v274
      %v407 = vunpack.c.l.b16 %v275
      %v408 = vunpack.c.l.b16 %v276
      %v409 = vpack.c.b16 %v374, %v373
      %v410 = vpack.c.b16 %v376, %v375
      %v411 = vpack.c.b16 %v378, %v377
      %v412 = vpack.c.b16 %v380, %v379
      %v413 = vpack.c.b16 %v382, %v381
      %v414 = vpack.c.b16 %v384, %v383
      %v415 = vpack.c.b16 %v386, %v385
      %v416 = vpack.c.b16 %v388, %v387
      %v417 = vpack.c.b16 %v390, %v389
      %v418 = vpack.c.b16 %v392, %v391
      %v419 = vpack.c.b16 %v394, %v393
      %v420 = vpack.c.b16 %v396, %v395
      %v421 = vpack.c.b16 %v398, %v397
      %v422 = vpack.c.b16 %v400, %v399
      %v423 = vpack.c.b16 %v402, %v401
      %v424 = vpack.c.b16 %v404, %v403
      %v425 = vpack.c.b16 %v406, %v405
      %v426 = vpack.c.b16 %v408, %v407
      %vm445 = vcmask 261120
      %v447 = vsel %vm445, %v319, 0
      %v450 = vsel %vm445, %v322, 0
      %v453 = vsel %vm445, %v325, 0
      %v456 = vsel %vm445, %v328, 0
      %458 = vmatpush.bf16.msra.mxu0 %v416
      %459 = vmatpush.bf16.msra.mxu0 %v415
      %460 = vmatpush.bf16.msra.mxu0 %v414
      %461 = vmatpush.bf16.msra.mxu0 %v413
      %462 = vmatpush.bf16.msra.mxu0 %v412
      %463 = vmatpush.bf16.msra.mxu0 %v411
      %464 = vmatpush.bf16.msra.mxu0 %v410
      %465 = vmatpush.bf16.msra.mxu0 %v409
      %466 = vmatmul.bf16.gmra.mxu0 %v317
      %v467 = vpop.f32.mrf.mxu0
      %v468 = vadd.f32 0.0, %v467
      %v469 = vpop.f32.mrf.mxu0
      %v470 = vadd.f32 0.0, %v469
      %471 = vmatmul.bf16.gmra.mxu0 %v320
      %v472 = vpop.f32.mrf.mxu0
      %v473 = vadd.f32 0.0, %v472
      %v474 = vpop.f32.mrf.mxu0
      %v475 = vadd.f32 0.0, %v474
      %476 = vmatmul.bf16.gmra.mxu0 %v323
      %v477 = vpop.f32.mrf.mxu0
      %v478 = vadd.f32 0.0, %v477
      %v479 = vpop.f32.mrf.mxu0
      %v480 = vadd.f32 0.0, %v479
      %481 = vmatmul.bf16.gmra.mxu0 %v326
      %v482 = vpop.f32.mrf.mxu0
      %v483 = vadd.f32 0.0, %v482
      %v484 = vpop.f32.mrf.mxu0
      %v485 = vadd.f32 0.0, %v484
      %486 = vdwg.mxu0
      %487 = vmatpush.bf16.msra.mxu0 %v424
      %488 = vmatpush.bf16.msra.mxu0 %v423
      %489 = vmatpush.bf16.msra.mxu0 %v422
      %490 = vmatpush.bf16.msra.mxu0 %v421
      %491 = vmatpush.bf16.msra.mxu0 %v420
      %492 = vmatpush.bf16.msra.mxu0 %v419
      %493 = vmatpush.bf16.msra.mxu0 %v418
      %494 = vmatpush.bf16.msra.mxu0 %v417
      %495 = vmatmul.bf16.gmra.mxu0 %v318
      %v496 = vpop.f32.mrf.mxu0
      %v497 = vadd.f32 %v468, %v496
      %v498 = vpop.f32.mrf.mxu0
      %v499 = vadd.f32 %v470, %v498
      %500 = vmatmul.bf16.gmra.mxu0 %v321
      %v501 = vpop.f32.mrf.mxu0
      %v502 = vadd.f32 %v473, %v501
      %v503 = vpop.f32.mrf.mxu0
      %v504 = vadd.f32 %v475, %v503
      %505 = vmatmul.bf16.gmra.mxu0 %v324
      %v506 = vpop.f32.mrf.mxu0
      %v507 = vadd.f32 %v478, %v506
      %v508 = vpop.f32.mrf.mxu0
      %v509 = vadd.f32 %v480, %v508
      %510 = vmatmul.bf16.gmra.mxu0 %v327
      %v511 = vpop.f32.mrf.mxu0
      %v512 = vadd.f32 %v483, %v511
      %v513 = vpop.f32.mrf.mxu0
      %v514 = vadd.f32 %v485, %v513
      %515 = vdwg.mxu0
      %516 = vmatpush.bf16.msra.mxu0 0
      %517 = vmatpush.bf16.msra.mxu0 0
      %518 = vmatpush.bf16.msra.mxu0 0
      %519 = vmatpush.bf16.msra.mxu0 0
      %520 = vmatpush.bf16.msra.mxu0 0
      %521 = vmatpush.bf16.msra.mxu0 0
      %522 = vmatpush.bf16.msra.mxu0 %v426
      %523 = vmatpush.bf16.msra.mxu0 %v425
      %524 = vmatmul.bf16.gmra.mxu0 %v447
      %v525 = vpop.f32.mrf.mxu0
      %v526 = vadd.f32 %v497, %v525
      %v527 = vpop.f32.mrf.mxu0
      %v528 = vadd.f32 %v499, %v527
      %529 = vmatmul.bf16.gmra.mxu0 %v450
      %v530 = vpop.f32.mrf.mxu0
      %v531 = vadd.f32 %v502, %v530
      %v532 = vpop.f32.mrf.mxu0
      %v533 = vadd.f32 %v504, %v532
      %534 = vmatmul.bf16.gmra.mxu0 %v453
      %v535 = vpop.f32.mrf.mxu0
      %v536 = vadd.f32 %v507, %v535
      %v537 = vpop.f32.mrf.mxu0
      %v538 = vadd.f32 %v509, %v537
      %539 = vmatmul.bf16.gmra.mxu0 %v456
      %v540 = vpop.f32.mrf.mxu0
      %v541 = vadd.f32 %v512, %v540
      %v542 = vpop.f32.mrf.mxu0
      %v543 = vadd.f32 %v514, %v542
      %544 = vdwg.mxu0
      %v545 = vpack.c.bf16 %v526, %v526
      %v546 = vpack.c.bf16 %v528, %v528
      %v547 = vpack.c.bf16 %v531, %v531
      %v548 = vpack.c.bf16 %v533, %v533
      %v549 = vpack.c.bf16 %v536, %v536
      %v550 = vpack.c.bf16 %v538, %v538
      %v551 = vpack.c.bf16 %v541, %v541
      %v552 = vpack.c.bf16 %v543, %v543
      %553 = vst [vmem:[%s213] sm:$0xf] %v545
      %554 = vst [vmem:[%s213 + $0x4] sm:$0xf] %v546
      %555 = vst [vmem:[%s213 + $0x8] sm:$0xf] %v547
      %556 = vst [vmem:[%s213 + $0xc] sm:$0xf] %v548
      %557 = vst [vmem:[%s213 + $0x10] sm:$0xf] %v549
      %558 = vst [vmem:[%s213 + $0x14] sm:$0xf] %v550
      %559 = vst [vmem:[%s213 + $0x18] sm:$0xf] %v551
      %560 = vst [vmem:[%s213 + $0x1c] sm:$0xf] %v552
      %v561 = vadd.f32 %v526, %v528
      %v562 = vadd.f32 %v561, %v531
      %v563 = vadd.f32 %v562, %v533
      %v564 = vadd.f32 %v563, %v536
      %v565 = vadd.f32 %v564, %v538
      %v566 = vadd.f32 %v565, %v541
      %v567 = vadd.f32 %v566, %v543
      %v568 = vrot.slane %v567, 4
      %v569 = vadd.f32 %v567, %v568
      %v570 = vrot.slane %v569, 2
      %v571 = vadd.f32 %v569, %v570
      %v572 = vrot.slane %v571, 1
      %v573 = vadd.f32 %v571, %v572
      %v574 = vadd.f32 %v573, 0.0
      %v575 = vmul.f32 %v526, %v526
      %v576 = vmul.f32 %v528, %v528
      %v577 = vmul.f32 %v531, %v531
      %v578 = vmul.f32 %v533, %v533
      %v579 = vmul.f32 %v536, %v536
      %v580 = vmul.f32 %v538, %v538
      %v581 = vmul.f32 %v541, %v541
      %v582 = vmul.f32 %v543, %v543
      %v583 = vadd.f32 %v575, %v576
      %v584 = vadd.f32 %v583, %v577
      %v585 = vadd.f32 %v584, %v578
      %v586 = vadd.f32 %v585, %v579
      %v587 = vadd.f32 %v586, %v580
      %v588 = vadd.f32 %v587, %v581
      %v589 = vadd.f32 %v588, %v582
      %v590 = vrot.slane %v589, 4
      %v591 = vadd.f32 %v589, %v590
      %v592 = vrot.slane %v591, 2
      %v593 = vadd.f32 %v591, %v592
      %v594 = vrot.slane %v593, 1
      %v595 = vadd.f32 %v593, %v594
      %v596 = vadd.f32 %v595, 0.0
      %597 = vst [vmem:[%s217] sm:$0x1] %v574
      %598 = vst [vmem:[%s220] sm:$0x1] %v596
      %s599 = smul.u32 8, %s16
      %p600 = scmp.lt.s32.totalorder %s599, 15
      %s601 = scalar_select %p600, %s599, 15
      %s602 = smul.addr %s601, 4
      %s603 = scalar_lea.vmem %s2, %s602
      %p604 = scmp.lt.s32.totalorder %s16, 1
      %s605 = scalar_select %p604, %s16, 1
      %s606 = scalar_lea.vmem %s3, %s605
      %p607 = scmp.lt.s32.totalorder %s16, 1
      %s608 = scalar_select %p607, %s16, 1
      %s609 = scalar_lea.vmem %s4, %s608
      // Predicated region
      $region29: #{generator_forward.13} parent=27 // pred_check
        %p610 = pneg %p81
      $region30: #{generator_forward.13} parent=27 // pred_check_branch
        %612 = sbr.rel (%p610) target = $region32
      $region31: #{generator_forward.13} parent=27 // pred_region
        %s613 = smul.u32 8, %s16
      $region32: #{generator_forward.13} parent=27 // pred_fallthru
        _
      // Predicated region
      $region33: #{generator_forward.13} parent=27 // pred_check
        %p614 = pneg %p107
      $region34: #{generator_forward.13} parent=27 // pred_check_branch
        %616 = sbr.rel (%p614) target = $region36
      $region35: #{generator_forward.13} parent=27 // pred_region
        _
      $region36: #{generator_forward.13} parent=27 // pred_fallthru
        _
      // Predicated region
      $region37: #{generator_forward.13} parent=27 // pred_check
        %p617 = pneg %p133
      $region38: #{generator_forward.13} parent=27 // pred_check_branch
        %619 = sbr.rel (%p617) target = $region40
      $region39: #{generator_forward.13} parent=27 // pred_region
        _
      $region40: #{generator_forward.13} parent=27 // pred_fallthru
        _
    $region28: #{generator_forward.13} parent=5 // pred_fallthru
      _
    %p620 = scmp.le.s32.totalorder 2, %s11
    // Predicated region
    $region41: #{generator_forward.13} parent=5 // pred_check
      %p621 = pneg %p620
    $region42: #{generator_forward.13} parent=5 // pred_check_branch
      %623 = sbr.rel (%p621) target = $region44
    $region43: #{generator_forward.13} parent=5 // pred_region
      %s624 = ssub.s32 %s11, 2
      // Predicated region
      $region45: #{generator_forward.13} parent=43 // pred_check
        %p625 = pneg %p87
      $region46: #{generator_forward.13} parent=43 // pred_check_branch
        %627 = sbr.rel (%p625) target = $region48
      $region47: #{generator_forward.13} parent=43 // pred_region
        %s628 = smul.u32 8, %s17
        %p629 = scmp.lt.s32.totalorder %s628, 15
        %s630 = scalar_select %p629, %s628, 15
        %s631 = smul.addr %s630, 4
        %s632 = scalar_lea.vmem %s2, %s631
      $region48: #{generator_forward.13} parent=43 // pred_fallthru
        _
      // Predicated region
      $region49: #{generator_forward.13} parent=43 // pred_check
        %p633 = pneg %p113
      $region50: #{generator_forward.13} parent=43 // pred_check_branch
        %635 = sbr.rel (%p633) target = $region52
      $region51: #{generator_forward.13} parent=43 // pred_region
        %p636 = scmp.lt.s32.totalorder %s17, 1
        %s637 = scalar_select %p636, %s17, 1
        %s638 = scalar_lea.vmem %s3, %s637
      $region52: #{generator_forward.13} parent=43 // pred_fallthru
        _
      // Predicated region
      $region53: #{generator_forward.13} parent=43 // pred_check
        %p639 = pneg %p139
      $region54: #{generator_forward.13} parent=43 // pred_check_branch
        %641 = sbr.rel (%p639) target = $region56
      $region55: #{generator_forward.13} parent=43 // pred_region
        %p642 = scmp.lt.s32.totalorder %s17, 1
        %s643 = scalar_select %p642, %s17, 1
        %s644 = scalar_lea.vmem %s4, %s643
      $region56: #{generator_forward.13} parent=43 // pred_fallthru
        _
    $region44: #{generator_forward.13} parent=5 // pred_fallthru
      _
  $region6: #{generator_forward.13} parent=0 // loop_footer
    %s15 = sadd.s32 1, %s11
  $region7: #{generator_forward.13} parent=0 // loop_footer_branch
    %10 = sbr.rel target = $region3
  $region8: #{generator_forward.13} parent=0 // loop_exit
    _

// kernel: generator_forward.14
$region0: #{generator_forward.14}
  #allocation0 [shape = 'u32[]', space=smem, size = 0x4, offset = 0x4, fixed_abs, tag = 'smem constant byte address 0x4 - core index']
  #allocation1 [shape = 'u32[72,128]{1,0:T(1,128)}', space=vmem, size = 0x9000, scoped, tag = 'internal scratch']
  %s0 = inlined_call_operand.vmem [shape: bf16[128,128], index: 0, kind: input, shape index: {}]
  %s1 = inlined_call_operand.vmem [shape: f32[1,128], index: 1, kind: input, shape index: {}]
  %s2 = inlined_call_operand.vmem [shape: f32[1,128], index: 2, kind: input, shape index: {}]
  %s3 = inlined_call_operand.vmem [shape: bf16[128,128], index: 3, kind: output, shape index: {}]
  %s4 = sld [smem:[#allocation0]]
  $region45: #{generator_forward.14} parent=0
    _
  %s6 = ssub.s32 1, %s4
  %s7 = scalar_select 0, %s6, %s4
  loop: start=0, step=1, limit=4
  $region2: #{generator_forward.14} parent=0 // loop_pre_header
    _
  $region3: #{generator_forward.14} parent=0 // loop_header
    %s9 = sphi 0, %s13
    %p10 = scmp.ge.s32.totalorder %s9, 4
    %s19 = sphi 0, %s21
    %s22 = sphi 0, %s19
    %s23 = sphi 0, %s22
    %s39 = sphi 0, %s23
    %s43 = sphi 0, %s43
    %s45 = sphi 0, %s43
    %s46 = sphi 0, %s45
    %s60 = sphi 0, %s46
    %s64 = sphi 0, %s64
    %s66 = sphi 0, %s64
    %s67 = sphi 0, %s66
    %s81 = sphi 0, %s67
    %s87 = sphi 0, %s89
    %s90 = sphi 0, %s87
    %s91 = sphi 0, %s90
    %s107 = sphi 0, %s91
  $region4: #{generator_forward.14} parent=0 // loop_header_branch
    %12 = sbr.rel (%p10) target = $region8
  $region5: #{generator_forward.14} parent=0 // loop_body
    %s14 = ssub.s32 %s9, 1
    %s15 = ssub.s32 %s9, 2
    %s16 = sadd.s32 %s9, 1
    %s17 = ssub.s32 %s9, %s16
    %p18 = scmp.eq.s32.totalorder %s17, 0
    %s20 = sadd.s32 %s19, 1
    %s21 = scalar_select %p18, %s19, %s20
    %p24 = pneg %p18
    %p25 = scmp.eq.s32.totalorder %s9, 1
    %p26 = por %p24, %p25
    %p27 = scmp.ne.s32.totalorder %s19, %s22
    %p28 = scmp.eq.s32.totalorder %s9, 0
    %p29 = por %p27, %p28
    %p30 = scmp.ne.s32.totalorder %s19, %s22
    %p31 = scmp.eq.s32.totalorder %s14, 1
    %p32 = por %p30, %p31
    %p33 = scmp.ne.s32.totalorder %s22, %s23
    %p34 = scmp.eq.s32.totalorder %s14, 0
    %p35 = por %p33, %p34
    %p36 = scmp.ne.s32.totalorder %s22, %s23
    %p37 = scmp.eq.s32.totalorder %s15, 1
    %p38 = por %p36, %p37
    %p40 = scmp.ne.s32.totalorder %s23, %s39
    %p41 = scmp.eq.s32.totalorder %s15, 0
    %p42 = por %p40, %p41
    %s44 = sadd.s32 %s43, 1
    %p47 = scmp.eq.s32.totalorder %s9, 1
    %p48 = scmp.ne.s32.totalorder %s43, %s45
    %p49 = scmp.eq.s32.totalorder %s9, 0
    %p50 = por %p48, %p49
    %p51 = scmp.ne.s32.totalorder %s43, %s45
    %p52 = scmp.eq.s32.totalorder %s14, 1
    %p53 = por %p51, %p52
    %p54 = scmp.ne.s32.totalorder %s45, %s46
    %p55 = scmp.eq.s32.totalorder %s14, 0
    %p56 = por %p54, %p55
    %p57 = scmp.ne.s32.totalorder %s45, %s46
    %p58 = scmp.eq.s32.totalorder %s15, 1
    %p59 = por %p57, %p58
    %p61 = scmp.ne.s32.totalorder %s46, %s60
    %p62 = scmp.eq.s32.totalorder %s15, 0
    %p63 = por %p61, %p62
    %s65 = sadd.s32 %s64, 1
    %p68 = scmp.eq.s32.totalorder %s9, 1
    %p69 = scmp.ne.s32.totalorder %s64, %s66
    %p70 = scmp.eq.s32.totalorder %s9, 0
    %p71 = por %p69, %p70
    %p72 = scmp.ne.s32.totalorder %s64, %s66
    %p73 = scmp.eq.s32.totalorder %s14, 1
    %p74 = por %p72, %p73
    %p75 = scmp.ne.s32.totalorder %s66, %s67
    %p76 = scmp.eq.s32.totalorder %s14, 0
    %p77 = por %p75, %p76
    %p78 = scmp.ne.s32.totalorder %s66, %s67
    %p79 = scmp.eq.s32.totalorder %s15, 1
    %p80 = por %p78, %p79
    %p82 = scmp.ne.s32.totalorder %s67, %s81
    %p83 = scmp.eq.s32.totalorder %s15, 0
    %p84 = por %p82, %p83
    %s85 = ssub.s32 %s9, %s16
    %p86 = scmp.eq.s32.totalorder %s85, 0
    %s88 = sadd.s32 %s87, 1
    %s89 = scalar_select %p86, %s87, %s88
    %p92 = pneg %p86
    %p93 = scmp.eq.s32.totalorder %s9, 1
    %p94 = por %p92, %p93
    %p95 = scmp.ne.s32.totalorder %s87, %s90
    %p96 = scmp.eq.s32.totalorder %s9, 0
    %p97 = por %p95, %p96
    %p98 = scmp.ne.s32.totalorder %s87, %s90
    %p99 = scmp.eq.s32.totalorder %s14, 1
    %p100 = por %p98, %p99
    %p101 = scmp.ne.s32.totalorder %s90, %s91
    %p102 = scmp.eq.s32.totalorder %s14, 0
    %p103 = por %p101, %p102
    %p104 = scmp.ne.s32.totalorder %s90, %s91
    %p105 = scmp.eq.s32.totalorder %s15, 1
    %p106 = por %p104, %p105
    %p108 = scmp.ne.s32.totalorder %s91, %s107
    %p109 = scmp.eq.s32.totalorder %s15, 0
    %p110 = por %p108, %p109
    %p111 = scmp.le.s32.totalorder 1, %s9
    %p112 = scmp.lt.s32.totalorder %s9, 3
    %p113 = pnand %p111, %p112
    %p114 = pneg %p113
    // Predicated region
    $region9: #{generator_forward.14} parent=5 // pred_check
      _
    $region10: #{generator_forward.14} parent=5 // pred_check_branch
      %116 = sbr.rel (%p113) target = $region12
    $region11: #{generator_forward.14} parent=5 // pred_region
      %s117 = ssub.s32 %s9, 1
      // Predicated region
      $region13: #{generator_forward.14} parent=11 // pred_check
        %p118 = pneg %p56
      $region14: #{generator_forward.14} parent=11 // pred_check_branch
        %120 = sbr.rel (%p118) target = $region16
      $region15: #{generator_forward.14} parent=11 // pred_region
        _
      $region16: #{generator_forward.14} parent=11 // pred_fallthru
        _
      // Predicated region
      $region17: #{generator_forward.14} parent=11 // pred_check
        %p121 = pneg %p77
      $region18: #{generator_forward.14} parent=11 // pred_check_branch
        %123 = sbr.rel (%p121) target = $region20
      $region19: #{generator_forward.14} parent=11 // pred_region
        _
      $region20: #{generator_forward.14} parent=11 // pred_fallthru
        _
    $region12: #{generator_forward.14} parent=5 // pred_fallthru
      _
    %p124 = scmp.lt.s32.totalorder %s9, 2
    // Predicated region
    $region21: #{generator_forward.14} parent=5 // pred_check
      %p125 = pneg %p124
    $region22: #{generator_forward.14} parent=5 // pred_check_branch
      %127 = sbr.rel (%p125) target = $region24
    $region23: #{generator_forward.14} parent=5 // pred_region
      // Predicated region
      $region25: #{generator_forward.14} parent=23 // pred_check
        %p128 = pneg %p29
      $region26: #{generator_forward.14} parent=23 // pred_check_branch
        %130 = sbr.rel (%p128) target = $region28
      $region27: #{generator_forward.14} parent=23 // pred_region
        %s131 = smul.u32 8, %s9
        %p132 = scmp.lt.s32.totalorder %s131, 15
        %s133 = scalar_select %p132, %s131, 15
        %s134 = smul.addr %s133, 4
        %s135 = scalar_lea.vmem %s0, %s134
        %s136 = smul.u32 8, %s9
      $region28: #{generator_forward.14} parent=23 // pred_fallthru
        _
    $region24: #{generator_forward.14} parent=5 // pred_fallthru
      _
    %p137 = scmp.le.s32.totalorder 1, %s9
    %p138 = scmp.lt.s32.totalorder %s9, 3
    %p139 = pnand %p137, %p138
    %p140 = pneg %p139
    // Predicated region
    $region29: #{generator_forward.14} parent=5 // pred_check
      _
    $region30: #{generator_forward.14} parent=5 // pred_check_branch
      %142 = sbr.rel (%p139) target = $region32
    $region31: #{generator_forward.14} parent=5 // pred_region
      %s143 = ssub.s32 %s9, 1
      %s144 = smul.u32 8, %s14
      %p145 = scmp.lt.s32.totalorder %s144, 15
      %s146 = scalar_select %p145, %s144, 15
      %s147 = smul.addr %s146, 4
      %s148 = scalar_lea.vmem %s0, %s147
      %p149 = pneg %p35
      %p150 = pneg %p32
      %p151 = pneg %p56
      %p152 = pneg %p53
      %p153 = pneg %p77
      %p154 = pneg %p74
      %p155 = pneg %p103
      %p156 = pneg %p100
      %s157 = smul.u32 8, %s14
      %p158 = scmp.lt.s32.totalorder %s157, 15
      %s159 = scalar_select %p158, %s157, 15
      %s160 = smul.addr %s159, 4
      %s161 = scalar_lea.vmem %s3, %s160
      %s162 = smul.u32 8, %s14
      %p163 = scmp.lt.s32.totalorder %s162, 15
      %s164 = scalar_select %p163, %s162, 15
      %s165 = smul.addr %s164, 4
      %s166 = scalar_lea.vmem %s0, %s165
      %s167 = smul.u32 8, %s14
      %s168 = smul.u32 8, %s14
      %p169 = scmp.lt.s32.totalorder %s168, 15
      %s170 = scalar_select %p169, %s168, 15
      %s171 = smul.addr %s170, 4
      %s172 = scalar_lea.vmem %s3, %s171
      %s173 = smul.u32 8, %s14
      %v174 = vld [vmem:[%s166] sm:$0xf]
      %v175 = vld [vmem:[%s166 + $0x4] sm:$0xf]
      %v176 = vld [vmem:[%s166 + $0x8] sm:$0xf]
      %v177 = vld [vmem:[%s166 + $0xc] sm:$0xf]
      %v178 = vld [vmem:[%s166 + $0x10] sm:$0xf]
      %v179 = vld [vmem:[%s166 + $0x14] sm:$0xf]
      %v180 = vld [vmem:[%s166 + $0x18] sm:$0xf]
      %v181 = vld [vmem:[%s166 + $0x1c] sm:$0xf]
      %v182 = vunpack.c.l.bf16 %v174
      %v183 = vunpack.c.l.bf16 %v175
      %v184 = vunpack.c.l.bf16 %v176
      %v185 = vunpack.c.l.bf16 %v177
      %v186 = vunpack.c.l.bf16 %v178
      %v187 = vunpack.c.l.bf16 %v179
      %v188 = vunpack.c.l.bf16 %v180
      %v189 = vunpack.c.l.bf16 %v181
      %v190 = vld [vmem:[%s1] sm:$0x1]
      %v192 = vperm.slane %v190, 0
      %v194 = vmul.f32 %v182, %v192
      %v195 = vmul.f32 %v183, %v192
      %v196 = vmul.f32 %v184, %v192
      %v197 = vmul.f32 %v185, %v192
      %v198 = vmul.f32 %v186, %v192
      %v199 = vmul.f32 %v187, %v192
      %v200 = vmul.f32 %v188, %v192
      %v201 = vmul.f32 %v189, %v192
      %v202 = vld [vmem:[%s2] sm:$0x1]
      %v204 = vperm.slane %v202, 0
      %v206 = vadd.f32 %v194, %v204
      %v207 = vadd.f32 %v195, %v204
      %v208 = vadd.f32 %v196, %v204
      %v209 = vadd.f32 %v197, %v204
      %v210 = vadd.f32 %v198, %v204
      %v211 = vadd.f32 %v199, %v204
      %v212 = vadd.f32 %v200, %v204
      %v213 = vadd.f32 %v201, %v204
      %v214 = vmax.f32 %v206, 0.0
      %v215 = vmax.f32 %v207, 0.0
      %v216 = vmax.f32 %v208, 0.0
      %v217 = vmax.f32 %v209, 0.0
      %v218 = vmax.f32 %v210, 0.0
      %v219 = vmax.f32 %v211, 0.0
      %v220 = vmax.f32 %v212, 0.0
      %v221 = vmax.f32 %v213, 0.0
      %v222 = vpack.c.bf16 %v214, %v214
      %v223 = vpack.c.bf16 %v215, %v215
      %v224 = vpack.c.bf16 %v216, %v216
      %v225 = vpack.c.bf16 %v217, %v217
      %v226 = vpack.c.bf16 %v218, %v218
      %v227 = vpack.c.bf16 %v219, %v219
      %v228 = vpack.c.bf16 %v220, %v220
      %v229 = vpack.c.bf16 %v221, %v221
      %230 = vst [vmem:[%s172] sm:$0xf] %v222
      %231 = vst [vmem:[%s172 + $0x4] sm:$0xf] %v223
      %232 = vst [vmem:[%s172 + $0x8] sm:$0xf] %v224
      %233 = vst [vmem:[%s172 + $0xc] sm:$0xf] %v225
      %234 = vst [vmem:[%s172 + $0x10] sm:$0xf] %v226
      %235 = vst [vmem:[%s172 + $0x14] sm:$0xf] %v227
      %236 = vst [vmem:[%s172 + $0x18] sm:$0xf] %v228
      %237 = vst [vmem:[%s172 + $0x1c] sm:$0xf] %v229
      %s238 = smul.u32 8, %s14
      %p239 = scmp.lt.s32.totalorder %s238, 15
      %s240 = scalar_select %p239, %s238, 15
      %s241 = smul.addr %s240, 4
      %s242 = scalar_lea.vmem %s3, %s241
      // Predicated region
      $region33: #{generator_forward.14} parent=31 // pred_check
        %p243 = pneg %p100
      $region34: #{generator_forward.14} parent=31 // pred_check_branch
        %245 = sbr.rel (%p243) target = $region36
      $region35: #{generator_forward.14} parent=31 // pred_region
        %s246 = smul.u32 8, %s14
      $region36: #{generator_forward.14} parent=31 // pred_fallthru
        _
    $region32: #{generator_forward.14} parent=5 // pred_fallthru
      _
    %p247 = scmp.le.s32.totalorder 2, %s9
    // Predicated region
    $region37: #{generator_forward.14} parent=5 // pred_check
      %p248 = pneg %p247
    $region38: #{generator_forward.14} parent=5 // pred_check_branch
      %250 = sbr.rel (%p248) target = $region40
    $region39: #{generator_forward.14} parent=5 // pred_region
      %s251 = ssub.s32 %s9, 2
      // Predicated region
      $region41: #{generator_forward.14} parent=39 // pred_check
        %p252 = pneg %p106
      $region42: #{generator_forward.14} parent=39 // pred_check_branch
        %254 = sbr.rel (%p252) target = $region44
      $region43: #{generator_forward.14} parent=39 // pred_region
        %s255 = smul.u32 8, %s15
        %p256 = scmp.lt.s32.totalorder %s255, 15
        %s257 = scalar_select %p256, %s255, 15
        %s258 = smul.addr %s257, 4
        %s259 = scalar_lea.vmem %s3, %s258
      $region44: #{generator_forward.14} parent=39 // pred_fallthru
        _
    $region40: #{generator_forward.14} parent=5 // pred_fallthru
      _
  $region6: #{generator_forward.14} parent=0 // loop_footer
    %s13 = sadd.s32 1, %s9
  $region7: #{generator_forward.14} parent=0 // loop_footer_branch
    %8 = sbr.rel target = $region3
  $region8: #{generator_forward.14} parent=0 // loop_exit
    _

// kernel: tile.78
$region0: #{tile.78}
  #allocation0 [shape = 's32[1]{0}', space=sflag, size = 0x4, scoped, tag = 'scoped memory for tile.78']
  %s0 = inlined_call_operand.vmem [shape: f32[8], index: 0, kind: input, shape index: {}]
  %s1 = inlined_call_operand.vmem [shape: f32[4,8], index: 1, kind: output, shape index: {}]
  // Predicated region
  $region2: #{tile.78} parent=0 // pred_check
    _
  $region3: #{tile.78} parent=0 // pred_check_branch
    %3 = sbr.rel (0) target = $region5
  $region4: #{tile.78} parent=0 // pred_region
    _
  $region5: #{tile.78} parent=0 // pred_fallthru
    _
  %v4 = vld [vmem:[%s0] ss:$0 sm:$0xff]
  %5 = vst [vmem:[%s1] sm:$0xf] %v4

// kernel: generator_forward.15
$region0: #{generator_forward.15}
  #allocation0 [shape = 'u32[]', space=smem, size = 0x4, offset = 0x4, fixed_abs, tag = 'smem constant byte address 0x4 - core index']
  #allocation1 [shape = 'u32[72,128]{1,0:T(1,128)}', space=vmem, size = 0x9000, scoped, tag = 'internal scratch']
  %s0 = inlined_call_operand.vmem [shape: bf16[512,144], index: 0, kind: input, shape index: {}]
  %s1 = inlined_call_operand.vmem [shape: bf16[144,128], index: 1, kind: input, shape index: {}]
  %s2 = inlined_call_operand.vmem [shape: bf16[512,128], index: 2, kind: output, shape index: {0}]
  %s3 = inlined_call_operand.vmem [shape: f32[2,1,128], index: 3, kind: output, shape index: {1}]
  %s4 = inlined_call_operand.vmem [shape: f32[2,1,128], index: 4, kind: output, shape index: {2}]
  %5 = xla_tuple %s2, %s3, %s4
  %s6 = sld [smem:[#allocation0]]
  $region57: #{generator_forward.15} parent=0
    _
  %s8 = ssub.s32 1, %s6
  %s9 = scalar_select 0, %s8, %s6
  loop: start=0, step=1, limit=4
  $region2: #{generator_forward.15} parent=0 // loop_pre_header
    _
  $region3: #{generator_forward.15} parent=0 // loop_header
    %s11 = sphi 0, %s15
    %p12 = scmp.ge.s32.totalorder %s11, 4
    %s21 = sphi 0, %s23
    %s24 = sphi 0, %s21
    %s25 = sphi 0, %s24
    %s41 = sphi 0, %s25
    %s45 = sphi 0, %s45
    %s47 = sphi 0, %s45
    %s48 = sphi 0, %s47
    %s62 = sphi 0, %s48
    %s68 = sphi 0, %s70
    %s71 = sphi 0, %s68
    %s72 = sphi 0, %s71
    %s88 = sphi 0, %s72
    %s94 = sphi 0, %s96
    %s97 = sphi 0, %s94
    %s98 = sphi 0, %s97
    %s114 = sphi 0, %s98
    %s120 = sphi 0, %s122
    %s123 = sphi 0, %s120
    %s124 = sphi 0, %s123
    %s140 = sphi 0, %s124
  $region4: #{generator_forward.15} parent=0 // loop_header_branch
    %14 = sbr.rel (%p12) target = $region8
  $region5: #{generator_forward.15} parent=0 // loop_body
    %s16 = ssub.s32 %s11, 1
    %s17 = ssub.s32 %s11, 2
    %s18 = sadd.s32 %s11, 1
    %s19 = ssub.s32 %s11, %s18
    %p20 = scmp.eq.s32.totalorder %s19, 0
    %s22 = sadd.s32 %s21, 1
    %s23 = scalar_select %p20, %s21, %s22
    %p26 = pneg %p20
    %p27 = scmp.eq.s32.totalorder %s11, 1
    %p28 = por %p26, %p27
    %p29 = scmp.ne.s32.totalorder %s21, %s24
    %p30 = scmp.eq.s32.totalorder %s11, 0
    %p31 = por %p29, %p30
    %p32 = scmp.ne.s32.totalorder %s21, %s24
    %p33 = scmp.eq.s32.totalorder %s16, 1
    %p34 = por %p32, %p33
    %p35 = scmp.ne.s32.totalorder %s24, %s25
    %p36 = scmp.eq.s32.totalorder %s16, 0
    %p37 = por %p35, %p36
    %p38 = scmp.ne.s32.totalorder %s24, %s25
    %p39 = scmp.eq.s32.totalorder %s17, 1
    %p40 = por %p38, %p39
    %p42 = scmp.ne.s32.totalorder %s25, %s41
    %p43 = scmp.eq.s32.totalorder %s17, 0
    %p44 = por %p42, %p43
    %s46 = sadd.s32 %s45, 1
    %p49 = scmp.eq.s32.totalorder %s11, 1
    %p50 = scmp.ne.s32.totalorder %s45, %s47
    %p51 = scmp.eq.s32.totalorder %s11, 0
    %p52 = por %p50, %p51
    %p53 = scmp.ne.s32.totalorder %s45, %s47
    %p54 = scmp.eq.s32.totalorder %s16, 1
    %p55 = por %p53, %p54
    %p56 = scmp.ne.s32.totalorder %s47, %s48
    %p57 = scmp.eq.s32.totalorder %s16, 0
    %p58 = por %p56, %p57
    %p59 = scmp.ne.s32.totalorder %s47, %s48
    %p60 = scmp.eq.s32.totalorder %s17, 1
    %p61 = por %p59, %p60
    %p63 = scmp.ne.s32.totalorder %s48, %s62
    %p64 = scmp.eq.s32.totalorder %s17, 0
    %p65 = por %p63, %p64
    %s66 = ssub.s32 %s11, %s18
    %p67 = scmp.eq.s32.totalorder %s66, 0
    %s69 = sadd.s32 %s68, 1
    %s70 = scalar_select %p67, %s68, %s69
    %p73 = pneg %p67
    %p74 = scmp.eq.s32.totalorder %s11, 1
    %p75 = por %p73, %p74
    %p76 = scmp.ne.s32.totalorder %s68, %s71
    %p77 = scmp.eq.s32.totalorder %s11, 0
    %p78 = por %p76, %p77
    %p79 = scmp.ne.s32.totalorder %s68, %s71
    %p80 = scmp.eq.s32.totalorder %s16, 1
    %p81 = por %p79, %p80
    %p82 = scmp.ne.s32.totalorder %s71, %s72
    %p83 = scmp.eq.s32.totalorder %s16, 0
    %p84 = por %p82, %p83
    %p85 = scmp.ne.s32.totalorder %s71, %s72
    %p86 = scmp.eq.s32.totalorder %s17, 1
    %p87 = por %p85, %p86
    %p89 = scmp.ne.s32.totalorder %s72, %s88
    %p90 = scmp.eq.s32.totalorder %s17, 0
    %p91 = por %p89, %p90
    %s92 = ssub.s32 %s11, %s18
    %p93 = scmp.eq.s32.totalorder %s92, 0
    %s95 = sadd.s32 %s94, 1
    %s96 = scalar_select %p93, %s94, %s95
    %p99 = pneg %p93
    %p100 = scmp.eq.s32.totalorder %s11, 1
    %p101 = por %p99, %p100
    %p102 = scmp.ne.s32.totalorder %s94, %s97
    %p103 = scmp.eq.s32.totalorder %s11, 0
    %p104 = por %p102, %p103
    %p105 = scmp.ne.s32.totalorder %s94, %s97
    %p106 = scmp.eq.s32.totalorder %s16, 1
    %p107 = por %p105, %p106
    %p108 = scmp.ne.s32.totalorder %s97, %s98
    %p109 = scmp.eq.s32.totalorder %s16, 0
    %p110 = por %p108, %p109
    %p111 = scmp.ne.s32.totalorder %s97, %s98
    %p112 = scmp.eq.s32.totalorder %s17, 1
    %p113 = por %p111, %p112
    %p115 = scmp.ne.s32.totalorder %s98, %s114
    %p116 = scmp.eq.s32.totalorder %s17, 0
    %p117 = por %p115, %p116
    %s118 = ssub.s32 %s11, %s18
    %p119 = scmp.eq.s32.totalorder %s118, 0
    %s121 = sadd.s32 %s120, 1
    %s122 = scalar_select %p119, %s120, %s121
    %p125 = pneg %p119
    %p126 = scmp.eq.s32.totalorder %s11, 1
    %p127 = por %p125, %p126
    %p128 = scmp.ne.s32.totalorder %s120, %s123
    %p129 = scmp.eq.s32.totalorder %s11, 0
    %p130 = por %p128, %p129
    %p131 = scmp.ne.s32.totalorder %s120, %s123
    %p132 = scmp.eq.s32.totalorder %s16, 1
    %p133 = por %p131, %p132
    %p134 = scmp.ne.s32.totalorder %s123, %s124
    %p135 = scmp.eq.s32.totalorder %s16, 0
    %p136 = por %p134, %p135
    %p137 = scmp.ne.s32.totalorder %s123, %s124
    %p138 = scmp.eq.s32.totalorder %s17, 1
    %p139 = por %p137, %p138
    %p141 = scmp.ne.s32.totalorder %s124, %s140
    %p142 = scmp.eq.s32.totalorder %s17, 0
    %p143 = por %p141, %p142
    %p144 = scmp.le.s32.totalorder 1, %s11
    %p145 = scmp.lt.s32.totalorder %s11, 3
    %p146 = pnand %p144, %p145
    %p147 = pneg %p146
    // Predicated region
    $region9: #{generator_forward.15} parent=5 // pred_check
      _
    $region10: #{generator_forward.15} parent=5 // pred_check_branch
      %149 = sbr.rel (%p146) target = $region12
    $region11: #{generator_forward.15} parent=5 // pred_region
      %s150 = ssub.s32 %s11, 1
      // Predicated region
      $region13: #{generator_forward.15} parent=11 // pred_check
        %p151 = pneg %p58
      $region14: #{generator_forward.15} parent=11 // pred_check_branch
        %153 = sbr.rel (%p151) target = $region16
      $region15: #{generator_forward.15} parent=11 // pred_region
        _
      $region16: #{generator_forward.15} parent=11 // pred_fallthru
        _
    $region12: #{generator_forward.15} parent=5 // pred_fallthru
      _
    %p154 = scmp.lt.s32.totalorder %s11, 2
    // Predicated region
    $region17: #{generator_forward.15} parent=5 // pred_check
      %p155 = pneg %p154
    $region18: #{generator_forward.15} parent=5 // pred_check_branch
      %157 = sbr.rel (%p155) target = $region20
    $region19: #{generator_forward.15} parent=5 // pred_region
      // Predicated region
      $region21: #{generator_forward.15} parent=19 // pred_check
        %p158 = pneg %p31
      $region22: #{generator_forward.15} parent=19 // pred_check_branch
        %160 = sbr.rel (%p158) target = $region24
      $region23: #{generator_forward.15} parent=19 // pred_region
        %s161 = smul.u32 32, %s11
        %p162 = scmp.lt.s32.totalorder %s161, 63
        %s163 = scalar_select %p162, %s161, 63
        %s164 = smul.addr %s163, 2
        %s165 = smul.addr %s164, 4
        %s166 = scalar_lea.vmem %s0, %s165
        %s167 = smul.u32 32, %s11
      $region24: #{generator_forward.15} parent=19 // pred_fallthru
        _
    $region20: #{generator_forward.15} parent=5 // pred_fallthru
      _
    %p168 = scmp.le.s32.totalorder 1, %s11
    %p169 = scmp.lt.s32.totalorder %s11, 3
    %p170 = pnand %p168, %p169
    %p171 = pneg %p170
    // Predicated region
    $region25: #{generator_forward.15} parent=5 // pred_check
      _
    $region26: #{generator_forward.15} parent=5 // pred_check_branch
      %173 = sbr.rel (%p170) target = $region28
    $region27: #{generator_forward.15} parent=5 // pred_region
      %s174 = ssub.s32 %s11, 1
      %s175 = smul.u32 32, %s16
      %p176 = scmp.lt.s32.totalorder %s175, 63
      %s177 = scalar_select %p176, %s175, 63
      %s178 = smul.addr %s177, 2
      %s179 = smul.addr %s178, 4
      %s180 = scalar_lea.vmem %s0, %s179
      %p181 = pneg %p37
      %p182 = pneg %p34
      %p183 = pneg %p58
      %p184 = pneg %p55
      %p185 = pneg %p84
      %p186 = pneg %p81
      %s187 = smul.u32 32, %s16
      %p188 = scmp.lt.s32.totalorder %s187, 63
      %s189 = scalar_select %p188, %s187, 63
      %s190 = smul.addr %s189, 4
      %s191 = scalar_lea.vmem %s2, %s190
      %p192 = pneg %p110
      %p193 = pneg %p107
      %p194 = scmp.lt.s32.totalorder %s16, 1
      %s195 = scalar_select %p194, %s16, 1
      %s196 = scalar_lea.vmem %s3, %s195
      %p197 = pneg %p136
      %p198 = pneg %p133
      %p199 = scmp.lt.s32.totalorder %s16, 1
      %s200 = scalar_select %p199, %s16, 1
      %s201 = scalar_lea.vmem %s4, %s200
      %s202 = smul.u32 32, %s16
      %p203 = scmp.lt.s32.totalorder %s202, 63
      %s204 = scalar_select %p203, %s202, 63
      %s205 = smul.addr %s204, 2
      %s206 = smul.addr %s205, 4
      %s207 = scalar_lea.vmem %s0, %s206
      %s208 = smul.u32 32, %s16
      %s209 = smul.u32 32, %s16
      %p210 = scmp.lt.s32.totalorder %s209, 63
      %s211 = scalar_select %p210, %s209, 63
      %s212 = smul.addr %s211, 4
      %s213 = scalar_lea.vmem %s2, %s212
      %s214 = smul.u32 32, %s16
      %p215 = scmp.lt.s32.totalorder %s16, 1
      %s216 = scalar_select %p215, %s16, 1
      %s217 = scalar_lea.vmem %s3, %s216
      %p218 = scmp.lt.s32.totalorder %s16, 1
      %s219 = scalar_select %p218, %s16, 1
      %s220 = scalar_lea.vmem %s4, %s219
      %s222 = smul.u32 0, 2
      %s223 = smul.addr %s222, 4
      %s224 = scalar_lea.vmem %s207, %s223
      %v225 = vld [vmem:[%s224] sm:$0xff]
      %v226 = vld [vmem:[%s224 + $0x8] sm:$0xff]
      %v227 = vld [vmem:[%s224 + $0x10] sm:$0xff]
      %v228 = vld [vmem:[%s224 + $0x18] sm:$0xff]
      %v229 = vld [vmem:[%s224 + $0x20] sm:$0xff]
      %v230 = vld [vmem:[%s224 + $0x28] sm:$0xff]
      %v231 = vld [vmem:[%s224 + $0x30] sm:$0xff]
      %v232 = vld [vmem:[%s224 + $0x38] sm:$0xff]
      %v233 = vld [vmem:[%s224 + $0x40] sm:$0xff]
      %v234 = vld [vmem:[%s224 + $0x48] sm:$0xff]
      %v235 = vld [vmem:[%s224 + $0x50] sm:$0xff]
      %v236 = vld [vmem:[%s224 + $0x58] sm:$0xff]
      %v237 = vld [vmem:[%s224 + $0x60] sm:$0xff]
      %v238 = vld [vmem:[%s224 + $0x68] sm:$0xff]
      %v239 = vld [vmem:[%s224 + $0x70] sm:$0xff]
      %v240 = vld [vmem:[%s224 + $0x78] sm:$0xff]
      %v241 = vld [vmem:[%s224 + $0x80] sm:$0xff]
      %v242 = vld [vmem:[%s224 + $0x88] sm:$0xff]
      %v243 = vld [vmem:[%s224 + $0x90] sm:$0xff]
      %v244 = vld [vmem:[%s224 + $0x98] sm:$0xff]
      %v245 = vld [vmem:[%s224 + $0xa0] sm:$0xff]
      %v246 = vld [vmem:[%s224 + $0xa8] sm:$0xff]
      %v247 = vld [vmem:[%s224 + $0xb0] sm:$0xff]
      %v248 = vld [vmem:[%s224 + $0xb8] sm:$0xff]
      %v249 = vld [vmem:[%s224 + $0xc0] sm:$0xff]
      %v250 = vld [vmem:[%s224 + $0xc8] sm:$0xff]
      %v251 = vld [vmem:[%s224 + $0xd0] sm:$0xff]
      %v252 = vld [vmem:[%s224 + $0xd8] sm:$0xff]
      %v253 = vld [vmem:[%s224 + $0xe0] sm:$0xff]
      %v254 = vld [vmem:[%s224 + $0xe8] sm:$0xff]
      %v255 = vld [vmem:[%s224 + $0xf0] sm:$0xff]
      %v256 = vld [vmem:[%s224 + $0xf8] sm:$0xff]
      %v257 = vld [vmem:[%s1] sm:$0xf]
      %v258 = vld [vmem:[%s1 + $0x4] sm:$0xf]
      %v259 = vld [vmem:[%s1 + $0x8] sm:$0xf]
      %v260 = vld [vmem:[%s1 + $0xc] sm:$0xf]
      %v261 = vld [vmem:[%s1 + $0x10] sm:$0xf]
      %v262 = vld [vmem:[%s1 + $0x14] sm:$0xf]
      %v263 = vld [vmem:[%s1 + $0x18] sm:$0xf]
      %v264 = vld [vmem:[%s1 + $0x1c] sm:$0xf]
      %v265 = vld [vmem:[%s1 + $0x20] sm:$0xf]
      %v266 = vld [vmem:[%s1 + $0x24] sm:$0xf]
      %v267 = vld [vmem:[%s1 + $0x28] sm:$0xf]
      %v268 = vld [vmem:[%s1 + $0x2c] sm:$0xf]
      %v269 = vld [vmem:[%s1 + $0x30] sm:$0xf]
      %v270 = vld [vmem:[%s1 + $0x34] sm:$0xf]
      %v271 = vld [vmem:[%s1 + $0x38] sm:$0xf]
      %v272 = vld [vmem:[%s1 + $0x3c] sm:$0xf]
      %v273 = vld [vmem:[%s1 + $0x40] sm:$0xf]
      %v274 = vld [vmem:[%s1 + $0x44] sm:$0xf]
      %v307 = vunpack.c.l.b16 %v225
      %v308 = vunpack.c.h.b16 %v225
      %v309 = vunpack.c.l.b16 %v226
      %v310 = vunpack.c.h.b16 %v226
      %v311 = vunpack.c.l.b16 %v227
      %v312 = vunpack.c.h.b16 %v227
      %v313 = vunpack.c.l.b16 %v228
      %v314 = vunpack.c.h.b16 %v228
      %v315 = vunpack.c.l.b16 %v229
      %v316 = vunpack.c.h.b16 %v229
      %v317 = vunpack.c.l.b16 %v230
      %v318 = vunpack.c.h.b16 %v230
      %v319 = vunpack.c.l.b16 %v231
      %v320 = vunpack.c.h.b16 %v231
      %v321 = vunpack.c.l.b16 %v232
      %v322 = vunpack.c.h.b16 %v232
      %v323 = vunpack.c.l.b16 %v233
      %v324 = vunpack.c.h.b16 %v233
      %v325 = vunpack.c.l.b16 %v234
      %v326 = vunpack.c.h.b16 %v234
      %v327 = vunpack.c.l.b16 %v235
      %v328 = vunpack.c.h.b16 %v235
      %v329 = vunpack.c.l.b16 %v236
      %v330 = vunpack.c.h.b16 %v236
      %v331 = vunpack.c.l.b16 %v237
      %v332 = vunpack.c.h.b16 %v237
      %v333 = vunpack.c.l.b16 %v238
      %v334 = vunpack.c.h.b16 %v238
      %v335 = vunpack.c.l.b16 %v239
      %v336 = vunpack.c.h.b16 %v239
      %v337 = vunpack.c.l.b16 %v240
      %v338 = vunpack.c.h.b16 %v240
      %v339 = vunpack.c.l.b16 %v241
      %v340 = vunpack.c.h.b16 %v241
      %v341 = vunpack.c.l.b16 %v242
      %v342 = vunpack.c.h.b16 %v242
      %v343 = vunpack.c.l.b16 %v243
      %v344 = vunpack.c.h.b16 %v243
      %v345 = vunpack.c.l.b16 %v244
      %v346 = vunpack.c.h.b16 %v244
      %v347 = vunpack.c.l.b16 %v245
      %v348 = vunpack.c.h.b16 %v245
      %v349 = vunpack.c.l.b16 %v246
      %v350 = vunpack.c.h.b16 %v246
      %v351 = vunpack.c.l.b16 %v247
      %v352 = vunpack.c.h.b16 %v247
      %v353 = vunpack.c.l.b16 %v248
      %v354 = vunpack.c.h.b16 %v248
      %v355 = vunpack.c.l.b16 %v249
      %v356 = vunpack.c.h.b16 %v249
      %v357 = vunpack.c.l.b16 %v250
      %v358 = vunpack.c.h.b16 %v250
      %v359 = vunpack.c.l.b16 %v251
      %v360 = vunpack.c.h.b16 %v251
      %v361 = vunpack.c.l.b16 %v252
      %v362 = vunpack.c.h.b16 %v252
      %v363 = vunpack.c.l.b16 %v253
      %v364 = vunpack.c.h.b16 %v253
      %v365 = vunpack.c.l.b16 %v254
      %v366 = vunpack.c.h.b16 %v254
      %v367 = vunpack.c.l.b16 %v255
      %v368 = vunpack.c.h.b16 %v255
      %v369 = vunpack.c.l.b16 %v256
      %v370 = vunpack.c.h.b16 %v256
      %v371 = vpack.c.b16 %v309, %v307
      %v372 = vpack.c.b16 %v310, %v308
      %v373 = vpack.c.b16 %v313, %v311
      %v374 = vpack.c.b16 %v314, %v312
      %v375 = vpack.c.b16 %v317, %v315
      %v376 = vpack.c.b16 %v318, %v316
      %v377 = vpack.c.b16 %v321, %v319
      %v378 = vpack.c.b16 %v322, %v320
      %v379 = vpack.c.b16 %v325, %v323
      %v380 = vpack.c.b16 %v326, %v324
      %v381 = vpack.c.b16 %v329, %v327
      %v382 = vpack.c.b16 %v330, %v328
      %v383 = vpack.c.b16 %v333, %v331
      %v384 = vpack.c.b16 %v334, %v332
      %v385 = vpack.c.b16 %v337, %v335
      %v386 = vpack.c.b16 %v338, %v336
      %v387 = vpack.c.b16 %v341, %v339
      %v388 = vpack.c.b16 %v342, %v340
      %v389 = vpack.c.b16 %v345, %v343
      %v390 = vpack.c.b16 %v346, %v344
      %v391 = vpack.c.b16 %v349, %v347
      %v392 = vpack.c.b16 %v350, %v348
      %v393 = vpack.c.b16 %v353, %v351
      %v394 = vpack.c.b16 %v354, %v352
      %v395 = vpack.c.b16 %v357, %v355
      %v396 = vpack.c.b16 %v358, %v356
      %v397 = vpack.c.b16 %v361, %v359
      %v398 = vpack.c.b16 %v362, %v360
      %v399 = vpack.c.b16 %v365, %v363
      %v400 = vpack.c.b16 %v366, %v364
      %v401 = vpack.c.b16 %v369, %v367
      %v402 = vpack.c.b16 %v370, %v368
      %v437 = vunpack.c.l.b16 %v257
      %v438 = vunpack.c.l.b16 %v258
      %v439 = vunpack.c.l.b16 %v259
      %v440 = vunpack.c.l.b16 %v260
      %v441 = vunpack.c.l.b16 %v261
      %v442 = vunpack.c.l.b16 %v262
      %v443 = vunpack.c.l.b16 %v263
      %v444 = vunpack.c.l.b16 %v264
      %v445 = vunpack.c.l.b16 %v265
      %v446 = vunpack.c.l.b16 %v266
      %v447 = vunpack.c.l.b16 %v267
      %v448 = vunpack.c.l.b16 %v268
      %v449 = vunpack.c.l.b16 %v269
      %v450 = vunpack.c.l.b16 %v270
      %v451 = vunpack.c.l.b16 %v271
      %v452 = vunpack.c.l.b16 %v272
      %v453 = vunpack.c.l.b16 %v273
      %v454 = vunpack.c.l.b16 %v274
      %v455 = vpack.c.b16 %v438, %v437
      %v456 = vpack.c.b16 %v440, %v439
      %v457 = vpack.c.b16 %v442, %v441
      %v458 = vpack.c.b16 %v444, %v443
      %v459 = vpack.c.b16 %v446, %v445
      %v460 = vpack.c.b16 %v448, %v447
      %v461 = vpack.c.b16 %v450, %v449
      %v462 = vpack.c.b16 %v452, %v451
      %v463 = vpack.c.b16 %v454, %v453
      %vm473 = vcmask 130048
      %v475 = vsel %vm473, %v372, 0
      %v478 = vsel %vm473, %v374, 0
      %v481 = vsel %vm473, %v376, 0
      %v484 = vsel %vm473, %v378, 0
      %v487 = vsel %vm473, %v380, 0
      %v490 = vsel %vm473, %v382, 0
      %v493 = vsel %vm473, %v384, 0
      %v496 = vsel %vm473, %v386, 0
      %v499 = vsel %vm473, %v388, 0
      %v502 = vsel %vm473, %v390, 0
      %v505 = vsel %vm473, %v392, 0
      %v508 = vsel %vm473, %v394, 0
      %v511 = vsel %vm473, %v396, 0
      %v514 = vsel %vm473, %v398, 0
      %v517 = vsel %vm473, %v400, 0
      %v520 = vsel %vm473, %v402, 0
      %522 = vmatpush.bf16.msra.mxu0 %v462
      %523 = vmatpush.bf16.msra.mxu0 %v461
      %524 = vmatpush.bf16.msra.mxu0 %v460
      %525 = vmatpush.bf16.msra.mxu0 %v459
      %526 = vmatpush.bf16.msra.mxu0 %v458
      %527 = vmatpush.bf16.msra.mxu0 %v457
      %528 = vmatpush.bf16.msra.mxu0 %v456
      %529 = vmatpush.bf16.msra.mxu0 %v455
      %530 = vmatmul.bf16.gmra.mxu0 %v371
      %v531 = vpop.f32.mrf.mxu0
      %v532 = vadd.f32 0.0, %v531
      %v533 = vpop.f32.mrf.mxu0
      %v534 = vadd.f32 0.0, %v533
      %535 = vmatmul.bf16.gmra.mxu0 %v373
      %v536 = vpop.f32.mrf.mxu0
      %v537 = vadd.f32 0.0, %v536
      %v538 = vpop.f32.mrf.mxu0
      %v539 = vadd.f32 0.0, %v538
      %540 = vmatmul.bf16.gmra.mxu0 %v375
      %v541 = vpop.f32.mrf.mxu0
      %v542 = vadd.f32 0.0, %v541
      %v543 = vpop.f32.mrf.mxu0
      %v544 = vadd.f32 0.0, %v543
      %545 = vmatmul.bf16.gmra.mxu0 %v377
      %v546 = vpop.f32.mrf.mxu0
      %v547 = vadd.f32 0.0, %v546
      %v548 = vpop.f32.mrf.mxu0
      %v549 = vadd.f32 0.0, %v548
      %550 = vmatmul.bf16.gmra.mxu0 %v379
      %v551 = vpop.f32.mrf.mxu0
      %v552 = vadd.f32 0.0, %v551
      %v553 = vpop.f32.mrf.mxu0
      %v554 = vadd.f32 0.0, %v553
      %555 = vmatmul.bf16.gmra.mxu0 %v381
      %v556 = vpop.f32.mrf.mxu0
      %v557 = vadd.f32 0.0, %v556
      %v558 = vpop.f32.mrf.mxu0
      %v559 = vadd.f32 0.0, %v558
      %560 = vmatmul.bf16.gmra.mxu0 %v383
      %v561 = vpop.f32.mrf.mxu0
      %v562 = vadd.f32 0.0, %v561
      %v563 = vpop.f32.mrf.mxu0
      %v564 = vadd.f32 0.0, %v563
      %565 = vmatmul.bf16.gmra.mxu0 %v385
      %v566 = vpop.f32.mrf.mxu0
      %v567 = vadd.f32 0.0, %v566
      %v568 = vpop.f32.mrf.mxu0
      %v569 = vadd.f32 0.0, %v568
      %570 = vmatmul.bf16.gmra.mxu0 %v387
      %v571 = vpop.f32.mrf.mxu0
      %v572 = vadd.f32 0.0, %v571
      %v573 = vpop.f32.mrf.mxu0
      %v574 = vadd.f32 0.0, %v573
      %575 = vmatmul.bf16.gmra.mxu0 %v389
      %v576 = vpop.f32.mrf.mxu0
      %v577 = vadd.f32 0.0, %v576
      %v578 = vpop.f32.mrf.mxu0
      %v579 = vadd.f32 0.0, %v578
      %580 = vmatmul.bf16.gmra.mxu0 %v391
      %v581 = vpop.f32.mrf.mxu0
      %v582 = vadd.f32 0.0, %v581
      %v583 = vpop.f32.mrf.mxu0
      %v584 = vadd.f32 0.0, %v583
      %585 = vmatmul.bf16.gmra.mxu0 %v393
      %v586 = vpop.f32.mrf.mxu0
      %v587 = vadd.f32 0.0, %v586
      %v588 = vpop.f32.mrf.mxu0
      %v589 = vadd.f32 0.0, %v588
      %590 = vmatmul.bf16.gmra.mxu0 %v395
      %v591 = vpop.f32.mrf.mxu0
      %v592 = vadd.f32 0.0, %v591
      %v593 = vpop.f32.mrf.mxu0
      %v594 = vadd.f32 0.0, %v593
      %595 = vmatmul.bf16.gmra.mxu0 %v397
      %v596 = vpop.f32.mrf.mxu0
      %v597 = vadd.f32 0.0, %v596
      %v598 = vpop.f32.mrf.mxu0
      %v599 = vadd.f32 0.0, %v598
      %600 = vmatmul.bf16.gmra.mxu0 %v399
      %v601 = vpop.f32.mrf.mxu0
      %v602 = vadd.f32 0.0, %v601
      %v603 = vpop.f32.mrf.mxu0
      %v604 = vadd.f32 0.0, %v603
      %605 = vmatmul.bf16.gmra.mxu0 %v401
      %v606 = vpop.f32.mrf.mxu0
      %v607 = vadd.f32 0.0, %v606
      %v608 = vpop.f32.mrf.mxu0
      %v609 = vadd.f32 0.0, %v608
      %610 = vdwg.mxu0
      %611 = vmatpush.bf16.msra.mxu0 0
      %612 = vmatpush.bf16.msra.mxu0 0
      %613 = vmatpush.bf16.msra.mxu0 0
      %614 = vmatpush.bf16.msra.mxu0 0
      %615 = vmatpush.bf16.msra.mxu0 0
      %616 = vmatpush.bf16.msra.mxu0 0
      %617 = vmatpush.bf16.msra.mxu0 0
      %618 = vmatpush.bf16.msra.mxu0 %v463
      %619 = vmatmul.bf16.gmra.mxu0 %v475
      %v620 = vpop.f32.mrf.mxu0
      %v621 = vadd.f32 %v532, %v620
      %v622 = vpop.f32.mrf.mxu0
      %v623 = vadd.f32 %v534, %v622
      %624 = vmatmul.bf16.gmra.mxu0 %v478
      %v625 = vpop.f32.mrf.mxu0
      %v626 = vadd.f32 %v537, %v625
      %v627 = vpop.f32.mrf.mxu0
      %v628 = vadd.f32 %v539, %v627
      %629 = vmatmul.bf16.gmra.mxu0 %v481
      %v630 = vpop.f32.mrf.mxu0
      %v631 = vadd.f32 %v542, %v630
      %v632 = vpop.f32.mrf.mxu0
      %v633 = vadd.f32 %v544, %v632
      %634 = vmatmul.bf16.gmra.mxu0 %v484
      %v635 = vpop.f32.mrf.mxu0
      %v636 = vadd.f32 %v547, %v635
      %v637 = vpop.f32.mrf.mxu0
      %v638 = vadd.f32 %v549, %v637
      %639 = vmatmul.bf16.gmra.mxu0 %v487
      %v640 = vpop.f32.mrf.mxu0
      %v641 = vadd.f32 %v552, %v640
      %v642 = vpop.f32.mrf.mxu0
      %v643 = vadd.f32 %v554, %v642
      %644 = vmatmul.bf16.gmra.mxu0 %v490
      %v645 = vpop.f32.mrf.mxu0
      %v646 = vadd.f32 %v557, %v645
      %v647 = vpop.f32.mrf.mxu0
      %v648 = vadd.f32 %v559, %v647
      %649 = vmatmul.bf16.gmra.mxu0 %v493
      %v650 = vpop.f32.mrf.mxu0
      %v651 = vadd.f32 %v562, %v650
      %v652 = vpop.f32.mrf.mxu0
      %v653 = vadd.f32 %v564, %v652
      %654 = vmatmul.bf16.gmra.mxu0 %v496
      %v655 = vpop.f32.mrf.mxu0
      %v656 = vadd.f32 %v567, %v655
      %v657 = vpop.f32.mrf.mxu0
      %v658 = vadd.f32 %v569, %v657
      %659 = vmatmul.bf16.gmra.mxu0 %v499
      %v660 = vpop.f32.mrf.mxu0
      %v661 = vadd.f32 %v572, %v660
      %v662 = vpop.f32.mrf.mxu0
      %v663 = vadd.f32 %v574, %v662
      %664 = vmatmul.bf16.gmra.mxu0 %v502
      %v665 = vpop.f32.mrf.mxu0
      %v666 = vadd.f32 %v577, %v665
      %v667 = vpop.f32.mrf.mxu0
      %v668 = vadd.f32 %v579, %v667
      %669 = vmatmul.bf16.gmra.mxu0 %v505
      %v670 = vpop.f32.mrf.mxu0
      %v671 = vadd.f32 %v582, %v670
      %v672 = vpop.f32.mrf.mxu0
      %v673 = vadd.f32 %v584, %v672
      %674 = vmatmul.bf16.gmra.mxu0 %v508
      %v675 = vpop.f32.mrf.mxu0
      %v676 = vadd.f32 %v587, %v675
      %v677 = vpop.f32.mrf.mxu0
      %v678 = vadd.f32 %v589, %v677
      %679 = vmatmul.bf16.gmra.mxu0 %v511
      %v680 = vpop.f32.mrf.mxu0
      %v681 = vadd.f32 %v592, %v680
      %v682 = vpop.f32.mrf.mxu0
      %v683 = vadd.f32 %v594, %v682
      %684 = vmatmul.bf16.gmra.mxu0 %v514
      %v685 = vpop.f32.mrf.mxu0
      %v686 = vadd.f32 %v597, %v685
      %v687 = vpop.f32.mrf.mxu0
      %v688 = vadd.f32 %v599, %v687
      %689 = vmatmul.bf16.gmra.mxu0 %v517
      %v690 = vpop.f32.mrf.mxu0
      %v691 = vadd.f32 %v602, %v690
      %v692 = vpop.f32.mrf.mxu0
      %v693 = vadd.f32 %v604, %v692
      %694 = vmatmul.bf16.gmra.mxu0 %v520
      %v695 = vpop.f32.mrf.mxu0
      %v696 = vadd.f32 %v607, %v695
      %v697 = vpop.f32.mrf.mxu0
      %v698 = vadd.f32 %v609, %v697
      %699 = vdwg.mxu0
      %v700 = vpack.c.bf16 %v621, %v621
      %v701 = vpack.c.bf16 %v623, %v623
      %v702 = vpack.c.bf16 %v626, %v626
      %v703 = vpack.c.bf16 %v628, %v628
      %v704 = vpack.c.bf16 %v631, %v631
      %v705 = vpack.c.bf16 %v633, %v633
      %v706 = vpack.c.bf16 %v636, %v636
      %v707 = vpack.c.bf16 %v638, %v638
      %v708 = vpack.c.bf16 %v641, %v641
      %v709 = vpack.c.bf16 %v643, %v643
      %v710 = vpack.c.bf16 %v646, %v646
      %v711 = vpack.c.bf16 %v648, %v648
      %v712 = vpack.c.bf16 %v651, %v651
      %v713 = vpack.c.bf16 %v653, %v653
      %v714 = vpack.c.bf16 %v656, %v656
      %v715 = vpack.c.bf16 %v658, %v658
      %v716 = vpack.c.bf16 %v661, %v661
      %v717 = vpack.c.bf16 %v663, %v663
      %v718 = vpack.c.bf16 %v666, %v666
      %v719 = vpack.c.bf16 %v668, %v668
      %v720 = vpack.c.bf16 %v671, %v671
      %v721 = vpack.c.bf16 %v673, %v673
      %v722 = vpack.c.bf16 %v676, %v676
      %v723 = vpack.c.bf16 %v678, %v678
      %v724 = vpack.c.bf16 %v681, %v681
      %v725 = vpack.c.bf16 %v683, %v683
      %v726 = vpack.c.bf16 %v686, %v686
      %v727 = vpack.c.bf16 %v688, %v688
      %v728 = vpack.c.bf16 %v691, %v691
      %v729 = vpack.c.bf16 %v693, %v693
      %v730 = vpack.c.bf16 %v696, %v696
      %v731 = vpack.c.bf16 %v698, %v698
      %732 = vst [vmem:[%s213] sm:$0xf] %v700
      %733 = vst [vmem:[%s213 + $0x4] sm:$0xf] %v701
      %734 = vst [vmem:[%s213 + $0x8] sm:$0xf] %v702
      %735 = vst [vmem:[%s213 + $0xc] sm:$0xf] %v703
      %736 = vst [vmem:[%s213 + $0x10] sm:$0xf] %v704
      %737 = vst [vmem:[%s213 + $0x14] sm:$0xf] %v705
      %738 = vst [vmem:[%s213 + $0x18] sm:$0xf] %v706
      %739 = vst [vmem:[%s213 + $0x1c] sm:$0xf] %v707
      %740 = vst [vmem:[%s213 + $0x20] sm:$0xf] %v708
      %741 = vst [vmem:[%s213 + $0x24] sm:$0xf] %v709
      %742 = vst [vmem:[%s213 + $0x28] sm:$0xf] %v710
      %743 = vst [vmem:[%s213 + $0x2c] sm:$0xf] %v711
      %744 = vst [vmem:[%s213 + $0x30] sm:$0xf] %v712
      %745 = vst [vmem:[%s213 + $0x34] sm:$0xf] %v713
      %746 = vst [vmem:[%s213 + $0x38] sm:$0xf] %v714
      %747 = vst [vmem:[%s213 + $0x3c] sm:$0xf] %v715
      %748 = vst [vmem:[%s213 + $0x40] sm:$0xf] %v716
      %749 = vst [vmem:[%s213 + $0x44] sm:$0xf] %v717
      %750 = vst [vmem:[%s213 + $0x48] sm:$0xf] %v718
      %751 = vst [vmem:[%s213 + $0x4c] sm:$0xf] %v719
      %752 = vst [vmem:[%s213 + $0x50] sm:$0xf] %v720
      %753 = vst [vmem:[%s213 + $0x54] sm:$0xf] %v721
      %754 = vst [vmem:[%s213 + $0x58] sm:$0xf] %v722
      %755 = vst [vmem:[%s213 + $0x5c] sm:$0xf] %v723
      %756 = vst [vmem:[%s213 + $0x60] sm:$0xf] %v724
      %757 = vst [vmem:[%s213 + $0x64] sm:$0xf] %v725
      %758 = vst [vmem:[%s213 + $0x68] sm:$0xf] %v726
      %759 = vst [vmem:[%s213 + $0x6c] sm:$0xf] %v727
      %760 = vst [vmem:[%s213 + $0x70] sm:$0xf] %v728
      %761 = vst [vmem:[%s213 + $0x74] sm:$0xf] %v729
      %762 = vst [vmem:[%s213 + $0x78] sm:$0xf] %v730
      %763 = vst [vmem:[%s213 + $0x7c] sm:$0xf] %v731
      %v764 = vadd.f32 %v621, %v623
      %v765 = vadd.f32 %v764, %v626
      %v766 = vadd.f32 %v765, %v628
      %v767 = vadd.f32 %v766, %v631
      %v768 = vadd.f32 %v767, %v633
      %v769 = vadd.f32 %v768, %v636
      %v770 = vadd.f32 %v769, %v638
      %v771 = vadd.f32 %v770, %v641
      %v772 = vadd.f32 %v771, %v643
      %v773 = vadd.f32 %v772, %v646
      %v774 = vadd.f32 %v773, %v648
      %v775 = vadd.f32 %v774, %v651
      %v776 = vadd.f32 %v775, %v653
      %v777 = vadd.f32 %v776, %v656
      %v778 = vadd.f32 %v777, %v658
      %v779 = vadd.f32 %v778, %v661
      %v780 = vadd.f32 %v779, %v663
      %v781 = vadd.f32 %v780, %v666
      %v782 = vadd.f32 %v781, %v668
      %v783 = vadd.f32 %v782, %v671
      %v784 = vadd.f32 %v783, %v673
      %v785 = vadd.f32 %v784, %v676
      %v786 = vadd.f32 %v785, %v678
      %v787 = vadd.f32 %v786, %v681
      %v788 = vadd.f32 %v787, %v683
      %v789 = vadd.f32 %v788, %v686
      %v790 = vadd.f32 %v789, %v688
      %v791 = vadd.f32 %v790, %v691
      %v792 = vadd.f32 %v791, %v693
      %v793 = vadd.f32 %v792, %v696
      %v794 = vadd.f32 %v793, %v698
      %v795 = vrot.slane %v794, 4
      %v796 = vadd.f32 %v794, %v795
      %v797 = vrot.slane %v796, 2
      %v798 = vadd.f32 %v796, %v797
      %v799 = vrot.slane %v798, 1
      %v800 = vadd.f32 %v798, %v799
      %v801 = vadd.f32 %v800, 0.0
      %v802 = vmul.f32 %v621, %v621
      %v803 = vmul.f32 %v623, %v623
      %v804 = vmul.f32 %v626, %v626
      %v805 = vmul.f32 %v628, %v628
      %v806 = vmul.f32 %v631, %v631
      %v807 = vmul.f32 %v633, %v633
      %v808 = vmul.f32 %v636, %v636
      %v809 = vmul.f32 %v638, %v638
      %v810 = vmul.f32 %v641, %v641
      %v811 = vmul.f32 %v643, %v643
      %v812 = vmul.f32 %v646, %v646
      %v813 = vmul.f32 %v648, %v648
      %v814 = vmul.f32 %v651, %v651
      %v815 = vmul.f32 %v653, %v653
      %v816 = vmul.f32 %v656, %v656
      %v817 = vmul.f32 %v658, %v658
      %v818 = vmul.f32 %v661, %v661
      %v819 = vmul.f32 %v663, %v663
      %v820 = vmul.f32 %v666, %v666
      %v821 = vmul.f32 %v668, %v668
      %v822 = vmul.f32 %v671, %v671
      %v823 = vmul.f32 %v673, %v673
      %v824 = vmul.f32 %v676, %v676
      %v825 = vmul.f32 %v678, %v678
      %v826 = vmul.f32 %v681, %v681
      %v827 = vmul.f32 %v683, %v683
      %v828 = vmul.f32 %v686, %v686
      %v829 = vmul.f32 %v688, %v688
      %v830 = vmul.f32 %v691, %v691
      %v831 = vmul.f32 %v693, %v693
      %v832 = vmul.f32 %v696, %v696
      %v833 = vmul.f32 %v698, %v698
      %v834 = vadd.f32 %v802, %v803
      %v835 = vadd.f32 %v834, %v804
      %v836 = vadd.f32 %v835, %v805
      %v837 = vadd.f32 %v836, %v806
      %v838 = vadd.f32 %v837, %v807
      %v839 = vadd.f32 %v838, %v808
      %v840 = vadd.f32 %v839, %v809
      %v841 = vadd.f32 %v840, %v810
      %v842 = vadd.f32 %v841, %v811
      %v843 = vadd.f32 %v842, %v812
      %v844 = vadd.f32 %v843, %v813
      %v845 = vadd.f32 %v844, %v814
      %v846 = vadd.f32 %v845, %v815
      %v847 = vadd.f32 %v846, %v816
      %v848 = vadd.f32 %v847, %v817
      %v849 = vadd.f32 %v848, %v818
      %v850 = vadd.f32 %v849, %v819
      %v851 = vadd.f32 %v850, %v820
      %v852 = vadd.f32 %v851, %v821
      %v853 = vadd.f32 %v852, %v822
      %v854 = vadd.f32 %v853, %v823
      %v855 = vadd.f32 %v854, %v824
      %v856 = vadd.f32 %v855, %v825
      %v857 = vadd.f32 %v856, %v826
      %v858 = vadd.f32 %v857, %v827
      %v859 = vadd.f32 %v858, %v828
      %v860 = vadd.f32 %v859, %v829
      %v861 = vadd.f32 %v860, %v830
      %v862 = vadd.f32 %v861, %v831
      %v863 = vadd.f32 %v862, %v832
      %v864 = vadd.f32 %v863, %v833
      %v865 = vrot.slane %v864, 4
      %v866 = vadd.f32 %v864, %v865
      %v867 = vrot.slane %v866, 2
      %v868 = vadd.f32 %v866, %v867
      %v869 = vrot.slane %v868, 1
      %v870 = vadd.f32 %v868, %v869
      %v871 = vadd.f32 %v870, 0.0
      %872 = vst [vmem:[%s217] sm:$0x1] %v801
      %873 = vst [vmem:[%s220] sm:$0x1] %v871
      %s874 = smul.u32 32, %s16
      %p875 = scmp.lt.s32.totalorder %s874, 63
      %s876 = scalar_select %p875, %s874, 63
      %s877 = smul.addr %s876, 4
      %s878 = scalar_lea.vmem %s2, %s877
      %p879 = scmp.lt.s32.totalorder %s16, 1
      %s880 = scalar_select %p879, %s16, 1
      %s881 = scalar_lea.vmem %s3, %s880
      %p882 = scmp.lt.s32.totalorder %s16, 1
      %s883 = scalar_select %p882, %s16, 1
      %s884 = scalar_lea.vmem %s4, %s883
      // Predicated region
      $region29: #{generator_forward.15} parent=27 // pred_check
        %p885 = pneg %p81
      $region30: #{generator_forward.15} parent=27 // pred_check_branch
        %887 = sbr.rel (%p885) target = $region32
      $region31: #{generator_forward.15} parent=27 // pred_region
        %s888 = smul.u32 32, %s16
      $region32: #{generator_forward.15} parent=27 // pred_fallthru
        _
      // Predicated region
      $region33: #{generator_forward.15} parent=27 // pred_check
        %p889 = pneg %p107
      $region34: #{generator_forward.15} parent=27 // pred_check_branch
        %891 = sbr.rel (%p889) target = $region36
      $region35: #{generator_forward.15} parent=27 // pred_region
        _
      $region36: #{generator_forward.15} parent=27 // pred_fallthru
        _
      // Predicated region
      $region37: #{generator_forward.15} parent=27 // pred_check
        %p892 = pneg %p133
      $region38: #{generator_forward.15} parent=27 // pred_check_branch
        %894 = sbr.rel (%p892) target = $region40
      $region39: #{generator_forward.15} parent=27 // pred_region
        _
      $region40: #{generator_forward.15} parent=27 // pred_fallthru
        _
    $region28: #{generator_forward.15} parent=5 // pred_fallthru
      _
    %p895 = scmp.le.s32.totalorder 2, %s11
    // Predicated region
    $region41: #{generator_forward.15} parent=5 // pred_check
      %p896 = pneg %p895
    $region42: #{generator_forward.15} parent=5 // pred_check_branch
      %898 = sbr.rel (%p896) target = $region44
    $region43: #{generator_forward.15} parent=5 // pred_region
      %s899 = ssub.s32 %s11, 2
      // Predicated region
      $region45: #{generator_forward.15} parent=43 // pred_check
        %p900 = pneg %p87
      $region46: #{generator_forward.15} parent=43 // pred_check_branch
        %902 = sbr.rel (%p900) target = $region48
      $region47: #{generator_forward.15} parent=43 // pred_region
        %s903 = smul.u32 32, %s17
        %p904 = scmp.lt.s32.totalorder %s903, 63
        %s905 = scalar_select %p904, %s903, 63
        %s906 = smul.addr %s905, 4
        %s907 = scalar_lea.vmem %s2, %s906
      $region48: #{generator_forward.15} parent=43 // pred_fallthru
        _
      // Predicated region
      $region49: #{generator_forward.15} parent=43 // pred_check
        %p908 = pneg %p113
      $region50: #{generator_forward.15} parent=43 // pred_check_branch
        %910 = sbr.rel (%p908) target = $region52
      $region51: #{generator_forward.15} parent=43 // pred_region
        %p911 = scmp.lt.s32.totalorder %s17, 1
        %s912 = scalar_select %p911, %s17, 1
        %s913 = scalar_lea.vmem %s3, %s912
      $region52: #{generator_forward.15} parent=43 // pred_fallthru
        _
      // Predicated region
      $region53: #{generator_forward.15} parent=43 // pred_check
        %p914 = pneg %p139
      $region54: #{generator_forward.15} parent=43 // pred_check_branch
        %916 = sbr.rel (%p914) target = $region56
      $region55: #{generator_forward.15} parent=43 // pred_region
        %p917 = scmp.lt.s32.totalorder %s17, 1
        %s918 = scalar_select %p917, %s17, 1
        %s919 = scalar_lea.vmem %s4, %s918
      $region56: #{generator_forward.15} parent=43 // pred_fallthru
        _
    $region44: #{generator_forward.15} parent=5 // pred_fallthru
      _
  $region6: #{generator_forward.15} parent=0 // loop_footer
    %s15 = sadd.s32 1, %s11
  $region7: #{generator_forward.15} parent=0 // loop_footer_branch
    %10 = sbr.rel target = $region3
  $region8: #{generator_forward.15} parent=0 // loop_exit
    _

// kernel: generator_forward.16
$region0: #{generator_forward.16}
  #allocation0 [shape = 'u32[]', space=smem, size = 0x4, offset = 0x4, fixed_abs, tag = 'smem constant byte address 0x4 - core index']
  #allocation1 [shape = 'u32[72,128]{1,0:T(1,128)}', space=vmem, size = 0x9000, scoped, tag = 'internal scratch']
  %s0 = inlined_call_operand.vmem [shape: bf16[512,128], index: 0, kind: input, shape index: {}]
  %s1 = inlined_call_operand.vmem [shape: f32[1,128], index: 1, kind: input, shape index: {}]
  %s2 = inlined_call_operand.vmem [shape: f32[1,128], index: 2, kind: input, shape index: {}]
  %s3 = inlined_call_operand.vmem [shape: bf16[512,128], index: 3, kind: output, shape index: {}]
  %s4 = sld [smem:[#allocation0]]
  $region45: #{generator_forward.16} parent=0
    _
  %s6 = ssub.s32 1, %s4
  %s7 = scalar_select 0, %s6, %s4
  loop: start=0, step=1, limit=4
  $region2: #{generator_forward.16} parent=0 // loop_pre_header
    _
  $region3: #{generator_forward.16} parent=0 // loop_header
    %s9 = sphi 0, %s13
    %p10 = scmp.ge.s32.totalorder %s9, 4
    %s19 = sphi 0, %s21
    %s22 = sphi 0, %s19
    %s23 = sphi 0, %s22
    %s39 = sphi 0, %s23
    %s43 = sphi 0, %s43
    %s45 = sphi 0, %s43
    %s46 = sphi 0, %s45
    %s60 = sphi 0, %s46
    %s64 = sphi 0, %s64
    %s66 = sphi 0, %s64
    %s67 = sphi 0, %s66
    %s81 = sphi 0, %s67
    %s87 = sphi 0, %s89
    %s90 = sphi 0, %s87
    %s91 = sphi 0, %s90
    %s107 = sphi 0, %s91
  $region4: #{generator_forward.16} parent=0 // loop_header_branch
    %12 = sbr.rel (%p10) target = $region8
  $region5: #{generator_forward.16} parent=0 // loop_body
    %s14 = ssub.s32 %s9, 1
    %s15 = ssub.s32 %s9, 2
    %s16 = sadd.s32 %s9, 1
    %s17 = ssub.s32 %s9, %s16
    %p18 = scmp.eq.s32.totalorder %s17, 0
    %s20 = sadd.s32 %s19, 1
    %s21 = scalar_select %p18, %s19, %s20
    %p24 = pneg %p18
    %p25 = scmp.eq.s32.totalorder %s9, 1
    %p26 = por %p24, %p25
    %p27 = scmp.ne.s32.totalorder %s19, %s22
    %p28 = scmp.eq.s32.totalorder %s9, 0
    %p29 = por %p27, %p28
    %p30 = scmp.ne.s32.totalorder %s19, %s22
    %p31 = scmp.eq.s32.totalorder %s14, 1
    %p32 = por %p30, %p31
    %p33 = scmp.ne.s32.totalorder %s22, %s23
    %p34 = scmp.eq.s32.totalorder %s14, 0
    %p35 = por %p33, %p34
    %p36 = scmp.ne.s32.totalorder %s22, %s23
    %p37 = scmp.eq.s32.totalorder %s15, 1
    %p38 = por %p36, %p37
    %p40 = scmp.ne.s32.totalorder %s23, %s39
    %p41 = scmp.eq.s32.totalorder %s15, 0
    %p42 = por %p40, %p41
    %s44 = sadd.s32 %s43, 1
    %p47 = scmp.eq.s32.totalorder %s9, 1
    %p48 = scmp.ne.s32.totalorder %s43, %s45
    %p49 = scmp.eq.s32.totalorder %s9, 0
    %p50 = por %p48, %p49
    %p51 = scmp.ne.s32.totalorder %s43, %s45
    %p52 = scmp.eq.s32.totalorder %s14, 1
    %p53 = por %p51, %p52
    %p54 = scmp.ne.s32.totalorder %s45, %s46
    %p55 = scmp.eq.s32.totalorder %s14, 0
    %p56 = por %p54, %p55
    %p57 = scmp.ne.s32.totalorder %s45, %s46
    %p58 = scmp.eq.s32.totalorder %s15, 1
    %p59 = por %p57, %p58
    %p61 = scmp.ne.s32.totalorder %s46, %s60
    %p62 = scmp.eq.s32.totalorder %s15, 0
    %p63 = por %p61, %p62
    %s65 = sadd.s32 %s64, 1
    %p68 = scmp.eq.s32.totalorder %s9, 1
    %p69 = scmp.ne.s32.totalorder %s64, %s66
    %p70 = scmp.eq.s32.totalorder %s9, 0
    %p71 = por %p69, %p70
    %p72 = scmp.ne.s32.totalorder %s64, %s66
    %p73 = scmp.eq.s32.totalorder %s14, 1
    %p74 = por %p72, %p73
    %p75 = scmp.ne.s32.totalorder %s66, %s67
    %p76 = scmp.eq.s32.totalorder %s14, 0
    %p77 = por %p75, %p76
    %p78 = scmp.ne.s32.totalorder %s66, %s67
    %p79 = scmp.eq.s32.totalorder %s15, 1
    %p80 = por %p78, %p79
    %p82 = scmp.ne.s32.totalorder %s67, %s81
    %p83 = scmp.eq.s32.totalorder %s15, 0
    %p84 = por %p82, %p83
    %s85 = ssub.s32 %s9, %s16
    %p86 = scmp.eq.s32.totalorder %s85, 0
    %s88 = sadd.s32 %s87, 1
    %s89 = scalar_select %p86, %s87, %s88
    %p92 = pneg %p86
    %p93 = scmp.eq.s32.totalorder %s9, 1
    %p94 = por %p92, %p93
    %p95 = scmp.ne.s32.totalorder %s87, %s90
    %p96 = scmp.eq.s32.totalorder %s9, 0
    %p97 = por %p95, %p96
    %p98 = scmp.ne.s32.totalorder %s87, %s90
    %p99 = scmp.eq.s32.totalorder %s14, 1
    %p100 = por %p98, %p99
    %p101 = scmp.ne.s32.totalorder %s90, %s91
    %p102 = scmp.eq.s32.totalorder %s14, 0
    %p103 = por %p101, %p102
    %p104 = scmp.ne.s32.totalorder %s90, %s91
    %p105 = scmp.eq.s32.totalorder %s15, 1
    %p106 = por %p104, %p105
    %p108 = scmp.ne.s32.totalorder %s91, %s107
    %p109 = scmp.eq.s32.totalorder %s15, 0
    %p110 = por %p108, %p109
    %p111 = scmp.le.s32.totalorder 1, %s9
    %p112 = scmp.lt.s32.totalorder %s9, 3
    %p113 = pnand %p111, %p112
    %p114 = pneg %p113
    // Predicated region
    $region9: #{generator_forward.16} parent=5 // pred_check
      _
    $region10: #{generator_forward.16} parent=5 // pred_check_branch
      %116 = sbr.rel (%p113) target = $region12
    $region11: #{generator_forward.16} parent=5 // pred_region
      %s117 = ssub.s32 %s9, 1
      // Predicated region
      $region13: #{generator_forward.16} parent=11 // pred_check
        %p118 = pneg %p56
      $region14: #{generator_forward.16} parent=11 // pred_check_branch
        %120 = sbr.rel (%p118) target = $region16
      $region15: #{generator_forward.16} parent=11 // pred_region
        _
      $region16: #{generator_forward.16} parent=11 // pred_fallthru
        _
      // Predicated region
      $region17: #{generator_forward.16} parent=11 // pred_check
        %p121 = pneg %p77
      $region18: #{generator_forward.16} parent=11 // pred_check_branch
        %123 = sbr.rel (%p121) target = $region20
      $region19: #{generator_forward.16} parent=11 // pred_region
        _
      $region20: #{generator_forward.16} parent=11 // pred_fallthru
        _
    $region12: #{generator_forward.16} parent=5 // pred_fallthru
      _
    %p124 = scmp.lt.s32.totalorder %s9, 2
    // Predicated region
    $region21: #{generator_forward.16} parent=5 // pred_check
      %p125 = pneg %p124
    $region22: #{generator_forward.16} parent=5 // pred_check_branch
      %127 = sbr.rel (%p125) target = $region24
    $region23: #{generator_forward.16} parent=5 // pred_region
      // Predicated region
      $region25: #{generator_forward.16} parent=23 // pred_check
        %p128 = pneg %p29
      $region26: #{generator_forward.16} parent=23 // pred_check_branch
        %130 = sbr.rel (%p128) target = $region28
      $region27: #{generator_forward.16} parent=23 // pred_region
        %s131 = smul.u32 32, %s9
        %p132 = scmp.lt.s32.totalorder %s131, 63
        %s133 = scalar_select %p132, %s131, 63
        %s134 = smul.addr %s133, 4
        %s135 = scalar_lea.vmem %s0, %s134
        %s136 = smul.u32 32, %s9
      $region28: #{generator_forward.16} parent=23 // pred_fallthru
        _
    $region24: #{generator_forward.16} parent=5 // pred_fallthru
      _
    %p137 = scmp.le.s32.totalorder 1, %s9
    %p138 = scmp.lt.s32.totalorder %s9, 3
    %p139 = pnand %p137, %p138
    %p140 = pneg %p139
    // Predicated region
    $region29: #{generator_forward.16} parent=5 // pred_check
      _
    $region30: #{generator_forward.16} parent=5 // pred_check_branch
      %142 = sbr.rel (%p139) target = $region32
    $region31: #{generator_forward.16} parent=5 // pred_region
      %s143 = ssub.s32 %s9, 1
      %s144 = smul.u32 32, %s14
      %p145 = scmp.lt.s32.totalorder %s144, 63
      %s146 = scalar_select %p145, %s144, 63
      %s147 = smul.addr %s146, 4
      %s148 = scalar_lea.vmem %s0, %s147
      %p149 = pneg %p35
      %p150 = pneg %p32
      %p151 = pneg %p56
      %p152 = pneg %p53
      %p153 = pneg %p77
      %p154 = pneg %p74
      %p155 = pneg %p103
      %p156 = pneg %p100
      %s157 = smul.u32 32, %s14
      %p158 = scmp.lt.s32.totalorder %s157, 63
      %s159 = scalar_select %p158, %s157, 63
      %s160 = smul.addr %s159, 4
      %s161 = scalar_lea.vmem %s3, %s160
      %s162 = smul.u32 32, %s14
      %p163 = scmp.lt.s32.totalorder %s162, 63
      %s164 = scalar_select %p163, %s162, 63
      %s165 = smul.addr %s164, 4
      %s166 = scalar_lea.vmem %s0, %s165
      %s167 = smul.u32 32, %s14
      %s168 = smul.u32 32, %s14
      %p169 = scmp.lt.s32.totalorder %s168, 63
      %s170 = scalar_select %p169, %s168, 63
      %s171 = smul.addr %s170, 4
      %s172 = scalar_lea.vmem %s3, %s171
      %s173 = smul.u32 32, %s14
      %v174 = vld [vmem:[%s166] sm:$0xf]
      %v175 = vld [vmem:[%s166 + $0x4] sm:$0xf]
      %v176 = vld [vmem:[%s166 + $0x8] sm:$0xf]
      %v177 = vld [vmem:[%s166 + $0xc] sm:$0xf]
      %v178 = vld [vmem:[%s166 + $0x10] sm:$0xf]
      %v179 = vld [vmem:[%s166 + $0x14] sm:$0xf]
      %v180 = vld [vmem:[%s166 + $0x18] sm:$0xf]
      %v181 = vld [vmem:[%s166 + $0x1c] sm:$0xf]
      %v182 = vld [vmem:[%s166 + $0x20] sm:$0xf]
      %v183 = vld [vmem:[%s166 + $0x24] sm:$0xf]
      %v184 = vld [vmem:[%s166 + $0x28] sm:$0xf]
      %v185 = vld [vmem:[%s166 + $0x2c] sm:$0xf]
      %v186 = vld [vmem:[%s166 + $0x30] sm:$0xf]
      %v187 = vld [vmem:[%s166 + $0x34] sm:$0xf]
      %v188 = vld [vmem:[%s166 + $0x38] sm:$0xf]
      %v189 = vld [vmem:[%s166 + $0x3c] sm:$0xf]
      %v190 = vld [vmem:[%s166 + $0x40] sm:$0xf]
      %v191 = vld [vmem:[%s166 + $0x44] sm:$0xf]
      %v192 = vld [vmem:[%s166 + $0x48] sm:$0xf]
      %v193 = vld [vmem:[%s166 + $0x4c] sm:$0xf]
      %v194 = vld [vmem:[%s166 + $0x50] sm:$0xf]
      %v195 = vld [vmem:[%s166 + $0x54] sm:$0xf]
      %v196 = vld [vmem:[%s166 + $0x58] sm:$0xf]
      %v197 = vld [vmem:[%s166 + $0x5c] sm:$0xf]
      %v198 = vld [vmem:[%s166 + $0x60] sm:$0xf]
      %v199 = vld [vmem:[%s166 + $0x64] sm:$0xf]
      %v200 = vld [vmem:[%s166 + $0x68] sm:$0xf]
      %v201 = vld [vmem:[%s166 + $0x6c] sm:$0xf]
      %v202 = vld [vmem:[%s166 + $0x70] sm:$0xf]
      %v203 = vld [vmem:[%s166 + $0x74] sm:$0xf]
      %v204 = vld [vmem:[%s166 + $0x78] sm:$0xf]
      %v205 = vld [vmem:[%s166 + $0x7c] sm:$0xf]
      %v206 = vunpack.c.l.bf16 %v174
      %v207 = vunpack.c.l.bf16 %v175
      %v208 = vunpack.c.l.bf16 %v176
      %v209 = vunpack.c.l.bf16 %v177
      %v210 = vunpack.c.l.bf16 %v178
      %v211 = vunpack.c.l.bf16 %v179
      %v212 = vunpack.c.l.bf16 %v180
      %v213 = vunpack.c.l.bf16 %v181
      %v214 = vunpack.c.l.bf16 %v182
      %v215 = vunpack.c.l.bf16 %v183
      %v216 = vunpack.c.l.bf16 %v184
      %v217 = vunpack.c.l.bf16 %v185
      %v218 = vunpack.c.l.bf16 %v186
      %v219 = vunpack.c.l.bf16 %v187
      %v220 = vunpack.c.l.bf16 %v188
      %v221 = vunpack.c.l.bf16 %v189
      %v222 = vunpack.c.l.bf16 %v190
      %v223 = vunpack.c.l.bf16 %v191
      %v224 = vunpack.c.l.bf16 %v192
      %v225 = vunpack.c.l.bf16 %v193
      %v226 = vunpack.c.l.bf16 %v194
      %v227 = vunpack.c.l.bf16 %v195
      %v228 = vunpack.c.l.bf16 %v196
      %v229 = vunpack.c.l.bf16 %v197
      %v230 = vunpack.c.l.bf16 %v198
      %v231 = vunpack.c.l.bf16 %v199
      %v232 = vunpack.c.l.bf16 %v200
      %v233 = vunpack.c.l.bf16 %v201
      %v234 = vunpack.c.l.bf16 %v202
      %v235 = vunpack.c.l.bf16 %v203
      %v236 = vunpack.c.l.bf16 %v204
      %v237 = vunpack.c.l.bf16 %v205
      %v238 = vld [vmem:[%s1] sm:$0x1]
      %v240 = vperm.slane %v238, 0
      %v242 = vmul.f32 %v206, %v240
      %v243 = vmul.f32 %v207, %v240
      %v244 = vmul.f32 %v208, %v240
      %v245 = vmul.f32 %v209, %v240
      %v246 = vmul.f32 %v210, %v240
      %v247 = vmul.f32 %v211, %v240
      %v248 = vmul.f32 %v212, %v240
      %v249 = vmul.f32 %v213, %v240
      %v250 = vmul.f32 %v214, %v240
      %v251 = vmul.f32 %v215, %v240
      %v252 = vmul.f32 %v216, %v240
      %v253 = vmul.f32 %v217, %v240
      %v254 = vmul.f32 %v218, %v240
      %v255 = vmul.f32 %v219, %v240
      %v256 = vmul.f32 %v220, %v240
      %v257 = vmul.f32 %v221, %v240
      %v258 = vmul.f32 %v222, %v240
      %v259 = vmul.f32 %v223, %v240
      %v260 = vmul.f32 %v224, %v240
      %v261 = vmul.f32 %v225, %v240
      %v262 = vmul.f32 %v226, %v240
      %v263 = vmul.f32 %v227, %v240
      %v264 = vmul.f32 %v228, %v240
      %v265 = vmul.f32 %v229, %v240
      %v266 = vmul.f32 %v230, %v240
      %v267 = vmul.f32 %v231, %v240
      %v268 = vmul.f32 %v232, %v240
      %v269 = vmul.f32 %v233, %v240
      %v270 = vmul.f32 %v234, %v240
      %v271 = vmul.f32 %v235, %v240
      %v272 = vmul.f32 %v236, %v240
      %v273 = vmul.f32 %v237, %v240
      %v274 = vld [vmem:[%s2] sm:$0x1]
      %v276 = vperm.slane %v274, 0
      %v278 = vadd.f32 %v242, %v276
      %v279 = vadd.f32 %v243, %v276
      %v280 = vadd.f32 %v244, %v276
      %v281 = vadd.f32 %v245, %v276
      %v282 = vadd.f32 %v246, %v276
      %v283 = vadd.f32 %v247, %v276
      %v284 = vadd.f32 %v248, %v276
      %v285 = vadd.f32 %v249, %v276
      %v286 = vadd.f32 %v250, %v276
      %v287 = vadd.f32 %v251, %v276
      %v288 = vadd.f32 %v252, %v276
      %v289 = vadd.f32 %v253, %v276
      %v290 = vadd.f32 %v254, %v276
      %v291 = vadd.f32 %v255, %v276
      %v292 = vadd.f32 %v256, %v276
      %v293 = vadd.f32 %v257, %v276
      %v294 = vadd.f32 %v258, %v276
      %v295 = vadd.f32 %v259, %v276
      %v296 = vadd.f32 %v260, %v276
      %v297 = vadd.f32 %v261, %v276
      %v298 = vadd.f32 %v262, %v276
      %v299 = vadd.f32 %v263, %v276
      %v300 = vadd.f32 %v264, %v276
      %v301 = vadd.f32 %v265, %v276
      %v302 = vadd.f32 %v266, %v276
      %v303 = vadd.f32 %v267, %v276
      %v304 = vadd.f32 %v268, %v276
      %v305 = vadd.f32 %v269, %v276
      %v306 = vadd.f32 %v270, %v276
      %v307 = vadd.f32 %v271, %v276
      %v308 = vadd.f32 %v272, %v276
      %v309 = vadd.f32 %v273, %v276
      %v310 = vmax.f32 %v278, 0.0
      %v311 = vmax.f32 %v279, 0.0
      %v312 = vmax.f32 %v280, 0.0
      %v313 = vmax.f32 %v281, 0.0
      %v314 = vmax.f32 %v282, 0.0
      %v315 = vmax.f32 %v283, 0.0
      %v316 = vmax.f32 %v284, 0.0
      %v317 = vmax.f32 %v285, 0.0
      %v318 = vmax.f32 %v286, 0.0
      %v319 = vmax.f32 %v287, 0.0
      %v320 = vmax.f32 %v288, 0.0
      %v321 = vmax.f32 %v289, 0.0
      %v322 = vmax.f32 %v290, 0.0
      %v323 = vmax.f32 %v291, 0.0
      %v324 = vmax.f32 %v292, 0.0
      %v325 = vmax.f32 %v293, 0.0
      %v326 = vmax.f32 %v294, 0.0
      %v327 = vmax.f32 %v295, 0.0
      %v328 = vmax.f32 %v296, 0.0
      %v329 = vmax.f32 %v297, 0.0
      %v330 = vmax.f32 %v298, 0.0
      %v331 = vmax.f32 %v299, 0.0
      %v332 = vmax.f32 %v300, 0.0
      %v333 = vmax.f32 %v301, 0.0
      %v334 = vmax.f32 %v302, 0.0
      %v335 = vmax.f32 %v303, 0.0
      %v336 = vmax.f32 %v304, 0.0
      %v337 = vmax.f32 %v305, 0.0
      %v338 = vmax.f32 %v306, 0.0
      %v339 = vmax.f32 %v307, 0.0
      %v340 = vmax.f32 %v308, 0.0
      %v341 = vmax.f32 %v309, 0.0
      %v342 = vpack.c.bf16 %v310, %v310
      %v343 = vpack.c.bf16 %v311, %v311
      %v344 = vpack.c.bf16 %v312, %v312
      %v345 = vpack.c.bf16 %v313, %v313
      %v346 = vpack.c.bf16 %v314, %v314
      %v347 = vpack.c.bf16 %v315, %v315
      %v348 = vpack.c.bf16 %v316, %v316
      %v349 = vpack.c.bf16 %v317, %v317
      %v350 = vpack.c.bf16 %v318, %v318
      %v351 = vpack.c.bf16 %v319, %v319
      %v352 = vpack.c.bf16 %v320, %v320
      %v353 = vpack.c.bf16 %v321, %v321
      %v354 = vpack.c.bf16 %v322, %v322
      %v355 = vpack.c.bf16 %v323, %v323
      %v356 = vpack.c.bf16 %v324, %v324
      %v357 = vpack.c.bf16 %v325, %v325
      %v358 = vpack.c.bf16 %v326, %v326
      %v359 = vpack.c.bf16 %v327, %v327
      %v360 = vpack.c.bf16 %v328, %v328
      %v361 = vpack.c.bf16 %v329, %v329
      %v362 = vpack.c.bf16 %v330, %v330
      %v363 = vpack.c.bf16 %v331, %v331
      %v364 = vpack.c.bf16 %v332, %v332
      %v365 = vpack.c.bf16 %v333, %v333
      %v366 = vpack.c.bf16 %v334, %v334
      %v367 = vpack.c.bf16 %v335, %v335
      %v368 = vpack.c.bf16 %v336, %v336
      %v369 = vpack.c.bf16 %v337, %v337
      %v370 = vpack.c.bf16 %v338, %v338
      %v371 = vpack.c.bf16 %v339, %v339
      %v372 = vpack.c.bf16 %v340, %v340
      %v373 = vpack.c.bf16 %v341, %v341
      %374 = vst [vmem:[%s172] sm:$0xf] %v342
      %375 = vst [vmem:[%s172 + $0x4] sm:$0xf] %v343
      %376 = vst [vmem:[%s172 + $0x8] sm:$0xf] %v344
      %377 = vst [vmem:[%s172 + $0xc] sm:$0xf] %v345
      %378 = vst [vmem:[%s172 + $0x10] sm:$0xf] %v346
      %379 = vst [vmem:[%s172 + $0x14] sm:$0xf] %v347
      %380 = vst [vmem:[%s172 + $0x18] sm:$0xf] %v348
      %381 = vst [vmem:[%s172 + $0x1c] sm:$0xf] %v349
      %382 = vst [vmem:[%s172 + $0x20] sm:$0xf] %v350
      %383 = vst [vmem:[%s172 + $0x24] sm:$0xf] %v351
      %384 = vst [vmem:[%s172 + $0x28] sm:$0xf] %v352
      %385 = vst [vmem:[%s172 + $0x2c] sm:$0xf] %v353
      %386 = vst [vmem:[%s172 + $0x30] sm:$0xf] %v354
      %387 = vst [vmem:[%s172 + $0x34] sm:$0xf] %v355
      %388 = vst [vmem:[%s172 + $0x38] sm:$0xf] %v356
      %389 = vst [vmem:[%s172 + $0x3c] sm:$0xf] %v357
      %390 = vst [vmem:[%s172 + $0x40] sm:$0xf] %v358
      %391 = vst [vmem:[%s172 + $0x44] sm:$0xf] %v359
      %392 = vst [vmem:[%s172 + $0x48] sm:$0xf] %v360
      %393 = vst [vmem:[%s172 + $0x4c] sm:$0xf] %v361
      %394 = vst [vmem:[%s172 + $0x50] sm:$0xf] %v362
      %395 = vst [vmem:[%s172 + $0x54] sm:$0xf] %v363
      %396 = vst [vmem:[%s172 + $0x58] sm:$0xf] %v364
      %397 = vst [vmem:[%s172 + $0x5c] sm:$0xf] %v365
      %398 = vst [vmem:[%s172 + $0x60] sm:$0xf] %v366
      %399 = vst [vmem:[%s172 + $0x64] sm:$0xf] %v367
      %400 = vst [vmem:[%s172 + $0x68] sm:$0xf] %v368
      %401 = vst [vmem:[%s172 + $0x6c] sm:$0xf] %v369
      %402 = vst [vmem:[%s172 + $0x70] sm:$0xf] %v370
      %403 = vst [vmem:[%s172 + $0x74] sm:$0xf] %v371
      %404 = vst [vmem:[%s172 + $0x78] sm:$0xf] %v372
      %405 = vst [vmem:[%s172 + $0x7c] sm:$0xf] %v373
      %s406 = smul.u32 32, %s14
      %p407 = scmp.lt.s32.totalorder %s406, 63
      %s408 = scalar_select %p407, %s406, 63
      %s409 = smul.addr %s408, 4
      %s410 = scalar_lea.vmem %s3, %s409
      // Predicated region
      $region33: #{generator_forward.16} parent=31 // pred_check
        %p411 = pneg %p100
      $region34: #{generator_forward.16} parent=31 // pred_check_branch
        %413 = sbr.rel (%p411) target = $region36
      $region35: #{generator_forward.16} parent=31 // pred_region
        %s414 = smul.u32 32, %s14
      $region36: #{generator_forward.16} parent=31 // pred_fallthru
        _
    $region32: #{generator_forward.16} parent=5 // pred_fallthru
      _
    %p415 = scmp.le.s32.totalorder 2, %s9
    // Predicated region
    $region37: #{generator_forward.16} parent=5 // pred_check
      %p416 = pneg %p415
    $region38: #{generator_forward.16} parent=5 // pred_check_branch
      %418 = sbr.rel (%p416) target = $region40
    $region39: #{generator_forward.16} parent=5 // pred_region
      %s419 = ssub.s32 %s9, 2
      // Predicated region
      $region41: #{generator_forward.16} parent=39 // pred_check
        %p420 = pneg %p106
      $region42: #{generator_forward.16} parent=39 // pred_check_branch
        %422 = sbr.rel (%p420) target = $region44
      $region43: #{generator_forward.16} parent=39 // pred_region
        %s423 = smul.u32 32, %s15
        %p424 = scmp.lt.s32.totalorder %s423, 63
        %s425 = scalar_select %p424, %s423, 63
        %s426 = smul.addr %s425, 4
        %s427 = scalar_lea.vmem %s3, %s426
      $region44: #{generator_forward.16} parent=39 // pred_fallthru
        _
    $region40: #{generator_forward.16} parent=5 // pred_fallthru
      _
  $region6: #{generator_forward.16} parent=0 // loop_footer
    %s13 = sadd.s32 1, %s9
  $region7: #{generator_forward.16} parent=0 // loop_footer_branch
    %8 = sbr.rel target = $region3
  $region8: #{generator_forward.16} parent=0 // loop_exit
    _

// kernel: generator_forward.17
$region0: #{generator_forward.17}
  #allocation0 [shape = 'u32[]', space=smem, size = 0x4, offset = 0x4, fixed_abs, tag = 'smem constant byte address 0x4 - core index']
  #allocation1 [shape = 'u32[72,128]{1,0:T(1,128)}', space=vmem, size = 0x9000, scoped, tag = 'internal scratch']
  %s0 = inlined_call_operand.vmem [shape: bf16[2048,72], index: 0, kind: input, shape index: {}]
  %s1 = inlined_call_operand.vmem [shape: bf16[72,128], index: 1, kind: input, shape index: {}]
  %s2 = inlined_call_operand.vmem [shape: bf16[2048,128], index: 2, kind: output, shape index: {}]
  %s3 = sld [smem:[#allocation0]]
  $region41: #{generator_forward.17} parent=0
    _
  %s5 = ssub.s32 1, %s3
  %s6 = scalar_select 0, %s5, %s3
  loop: start=0, step=1, limit=4
  $region2: #{generator_forward.17} parent=0 // loop_pre_header
    _
  $region3: #{generator_forward.17} parent=0 // loop_header
    %s8 = sphi 0, %s12
    %p9 = scmp.ge.s32.totalorder %s8, 4
    %s18 = sphi 0, %s20
    %s21 = sphi 0, %s18
    %s22 = sphi 0, %s21
    %s38 = sphi 0, %s22
    %s42 = sphi 0, %s42
    %s44 = sphi 0, %s42
    %s45 = sphi 0, %s44
    %s59 = sphi 0, %s45
    %s65 = sphi 0, %s67
    %s68 = sphi 0, %s65
    %s69 = sphi 0, %s68
    %s85 = sphi 0, %s69
  $region4: #{generator_forward.17} parent=0 // loop_header_branch
    %11 = sbr.rel (%p9) target = $region8
  $region5: #{generator_forward.17} parent=0 // loop_body
    %s13 = ssub.s32 %s8, 1
    %s14 = ssub.s32 %s8, 2
    %s15 = sadd.s32 %s8, 1
    %s16 = ssub.s32 %s8, %s15
    %p17 = scmp.eq.s32.totalorder %s16, 0
    %s19 = sadd.s32 %s18, 1
    %s20 = scalar_select %p17, %s18, %s19
    %p23 = pneg %p17
    %p24 = scmp.eq.s32.totalorder %s8, 1
    %p25 = por %p23, %p24
    %p26 = scmp.ne.s32.totalorder %s18, %s21
    %p27 = scmp.eq.s32.totalorder %s8, 0
    %p28 = por %p26, %p27
    %p29 = scmp.ne.s32.totalorder %s18, %s21
    %p30 = scmp.eq.s32.totalorder %s13, 1
    %p31 = por %p29, %p30
    %p32 = scmp.ne.s32.totalorder %s21, %s22
    %p33 = scmp.eq.s32.totalorder %s13, 0
    %p34 = por %p32, %p33
    %p35 = scmp.ne.s32.totalorder %s21, %s22
    %p36 = scmp.eq.s32.totalorder %s14, 1
    %p37 = por %p35, %p36
    %p39 = scmp.ne.s32.totalorder %s22, %s38
    %p40 = scmp.eq.s32.totalorder %s14, 0
    %p41 = por %p39, %p40
    %s43 = sadd.s32 %s42, 1
    %p46 = scmp.eq.s32.totalorder %s8, 1
    %p47 = scmp.ne.s32.totalorder %s42, %s44
    %p48 = scmp.eq.s32.totalorder %s8, 0
    %p49 = por %p47, %p48
    %p50 = scmp.ne.s32.totalorder %s42, %s44
    %p51 = scmp.eq.s32.totalorder %s13, 1
    %p52 = por %p50, %p51
    %p53 = scmp.ne.s32.totalorder %s44, %s45
    %p54 = scmp.eq.s32.totalorder %s13, 0
    %p55 = por %p53, %p54
    %p56 = scmp.ne.s32.totalorder %s44, %s45
    %p57 = scmp.eq.s32.totalorder %s14, 1
    %p58 = por %p56, %p57
    %p60 = scmp.ne.s32.totalorder %s45, %s59
    %p61 = scmp.eq.s32.totalorder %s14, 0
    %p62 = por %p60, %p61
    %s63 = ssub.s32 %s8, %s15
    %p64 = scmp.eq.s32.totalorder %s63, 0
    %s66 = sadd.s32 %s65, 1
    %s67 = scalar_select %p64, %s65, %s66
    %p70 = pneg %p64
    %p71 = scmp.eq.s32.totalorder %s8, 1
    %p72 = por %p70, %p71
    %p73 = scmp.ne.s32.totalorder %s65, %s68
    %p74 = scmp.eq.s32.totalorder %s8, 0
    %p75 = por %p73, %p74
    %p76 = scmp.ne.s32.totalorder %s65, %s68
    %p77 = scmp.eq.s32.totalorder %s13, 1
    %p78 = por %p76, %p77
    %p79 = scmp.ne.s32.totalorder %s68, %s69
    %p80 = scmp.eq.s32.totalorder %s13, 0
    %p81 = por %p79, %p80
    %p82 = scmp.ne.s32.totalorder %s68, %s69
    %p83 = scmp.eq.s32.totalorder %s14, 1
    %p84 = por %p82, %p83
    %p86 = scmp.ne.s32.totalorder %s69, %s85
    %p87 = scmp.eq.s32.totalorder %s14, 0
    %p88 = por %p86, %p87
    %p89 = scmp.le.s32.totalorder 1, %s8
    %p90 = scmp.lt.s32.totalorder %s8, 3
    %p91 = pnand %p89, %p90
    %p92 = pneg %p91
    // Predicated region
    $region9: #{generator_forward.17} parent=5 // pred_check
      _
    $region10: #{generator_forward.17} parent=5 // pred_check_branch
      %94 = sbr.rel (%p91) target = $region12
    $region11: #{generator_forward.17} parent=5 // pred_region
      %s95 = ssub.s32 %s8, 1
      // Predicated region
      $region13: #{generator_forward.17} parent=11 // pred_check
        %p96 = pneg %p55
      $region14: #{generator_forward.17} parent=11 // pred_check_branch
        %98 = sbr.rel (%p96) target = $region16
      $region15: #{generator_forward.17} parent=11 // pred_region
        _
      $region16: #{generator_forward.17} parent=11 // pred_fallthru
        _
    $region12: #{generator_forward.17} parent=5 // pred_fallthru
      _
    %p99 = scmp.lt.s32.totalorder %s8, 2
    // Predicated region
    $region17: #{generator_forward.17} parent=5 // pred_check
      %p100 = pneg %p99
    $region18: #{generator_forward.17} parent=5 // pred_check_branch
      %102 = sbr.rel (%p100) target = $region20
    $region19: #{generator_forward.17} parent=5 // pred_region
      // Predicated region
      $region21: #{generator_forward.17} parent=19 // pred_check
        %p103 = pneg %p28
      $region22: #{generator_forward.17} parent=19 // pred_check_branch
        %105 = sbr.rel (%p103) target = $region24
      $region23: #{generator_forward.17} parent=19 // pred_region
        %s106 = smul.u32 128, %s8
        %p107 = scmp.lt.s32.totalorder %s106, 255
        %s108 = scalar_select %p107, %s106, 255
        %s109 = smul.addr %s108, 4
        %s110 = scalar_lea.vmem %s0, %s109
        %s111 = smul.u32 128, %s8
      $region24: #{generator_forward.17} parent=19 // pred_fallthru
        _
    $region20: #{generator_forward.17} parent=5 // pred_fallthru
      _
    %p112 = scmp.le.s32.totalorder 1, %s8
    %p113 = scmp.lt.s32.totalorder %s8, 3
    %p114 = pnand %p112, %p113
    %p115 = pneg %p114
    // Predicated region
    $region25: #{generator_forward.17} parent=5 // pred_check
      _
    $region26: #{generator_forward.17} parent=5 // pred_check_branch
      %117 = sbr.rel (%p114) target = $region28
    $region27: #{generator_forward.17} parent=5 // pred_region
      %s118 = ssub.s32 %s8, 1
      %s119 = smul.u32 128, %s13
      %p120 = scmp.lt.s32.totalorder %s119, 255
      %s121 = scalar_select %p120, %s119, 255
      %s122 = smul.addr %s121, 4
      %s123 = scalar_lea.vmem %s0, %s122
      %p124 = pneg %p34
      %p125 = pneg %p31
      %p126 = pneg %p55
      %p127 = pneg %p52
      %p128 = pneg %p81
      %p129 = pneg %p78
      %s130 = smul.u32 128, %s13
      %p131 = scmp.lt.s32.totalorder %s130, 255
      %s132 = scalar_select %p131, %s130, 255
      %s133 = smul.addr %s132, 4
      %s134 = scalar_lea.vmem %s2, %s133
      %s135 = smul.u32 128, %s13
      %p136 = scmp.lt.s32.totalorder %s135, 255
      %s137 = scalar_select %p136, %s135, 255
      %s138 = smul.addr %s137, 4
      %s139 = scalar_lea.vmem %s0, %s138
      %s140 = smul.u32 128, %s13
      %s141 = smul.u32 128, %s13
      %p142 = scmp.lt.s32.totalorder %s141, 255
      %s143 = scalar_select %p142, %s141, 255
      %s144 = smul.addr %s143, 4
      %s145 = scalar_lea.vmem %s2, %s144
      %s146 = smul.u32 128, %s13
      %v148 = vld [vmem:[%s139] sm:$0xf]
      %v149 = vld [vmem:[%s139 + $0x4] sm:$0xf]
      %v150 = vld [vmem:[%s139 + $0x8] sm:$0xf]
      %v151 = vld [vmem:[%s139 + $0xc] sm:$0xf]
      %v152 = vld [vmem:[%s139 + $0x10] sm:$0xf]
      %v153 = vld [vmem:[%s139 + $0x14] sm:$0xf]
      %v154 = vld [vmem:[%s139 + $0x18] sm:$0xf]
      %v155 = vld [vmem:[%s139 + $0x1c] sm:$0xf]
      %v156 = vld [vmem:[%s139 + $0x20] sm:$0xf]
      %v157 = vld [vmem:[%s139 + $0x24] sm:$0xf]
      %v158 = vld [vmem:[%s139 + $0x28] sm:$0xf]
      %v159 = vld [vmem:[%s139 + $0x2c] sm:$0xf]
      %v160 = vld [vmem:[%s139 + $0x30] sm:$0xf]
      %v161 = vld [vmem:[%s139 + $0x34] sm:$0xf]
      %v162 = vld [vmem:[%s139 + $0x38] sm:$0xf]
      %v163 = vld [vmem:[%s139 + $0x3c] sm:$0xf]
      %v164 = vld [vmem:[%s139 + $0x40] sm:$0xf]
      %v165 = vld [vmem:[%s139 + $0x44] sm:$0xf]
      %v166 = vld [vmem:[%s139 + $0x48] sm:$0xf]
      %v167 = vld [vmem:[%s139 + $0x4c] sm:$0xf]
      %v168 = vld [vmem:[%s139 + $0x50] sm:$0xf]
      %v169 = vld [vmem:[%s139 + $0x54] sm:$0xf]
      %v170 = vld [vmem:[%s139 + $0x58] sm:$0xf]
      %v171 = vld [vmem:[%s139 + $0x5c] sm:$0xf]
      %v172 = vld [vmem:[%s139 + $0x60] sm:$0xf]
      %v173 = vld [vmem:[%s139 + $0x64] sm:$0xf]
      %v174 = vld [vmem:[%s139 + $0x68] sm:$0xf]
      %v175 = vld [vmem:[%s139 + $0x6c] sm:$0xf]
      %v176 = vld [vmem:[%s139 + $0x70] sm:$0xf]
      %v177 = vld [vmem:[%s139 + $0x74] sm:$0xf]
      %v178 = vld [vmem:[%s139 + $0x78] sm:$0xf]
      %v179 = vld [vmem:[%s139 + $0x7c] sm:$0xf]
      %v180 = vld [vmem:[%s1] sm:$0xf]
      %v181 = vld [vmem:[%s1 + $0x4] sm:$0xf]
      %v182 = vld [vmem:[%s1 + $0x8] sm:$0xf]
      %v183 = vld [vmem:[%s1 + $0xc] sm:$0xf]
      %v184 = vld [vmem:[%s1 + $0x10] sm:$0xf]
      %v185 = vld [vmem:[%s1 + $0x14] sm:$0xf]
      %v186 = vld [vmem:[%s1 + $0x18] sm:$0xf]
      %v187 = vld [vmem:[%s1 + $0x1c] sm:$0xf]
      %v188 = vld [vmem:[%s1 + $0x20] sm:$0xf]
      %v221 = vunpack.c.l.b16 %v148
      %v222 = vunpack.c.l.b16 %v149
      %v223 = vunpack.c.l.b16 %v150
      %v224 = vunpack.c.l.b16 %v151
      %v225 = vunpack.c.l.b16 %v152
      %v226 = vunpack.c.l.b16 %v153
      %v227 = vunpack.c.l.b16 %v154
      %v228 = vunpack.c.l.b16 %v155
      %v229 = vunpack.c.l.b16 %v156
      %v230 = vunpack.c.l.b16 %v157
      %v231 = vunpack.c.l.b16 %v158
      %v232 = vunpack.c.l.b16 %v159
      %v233 = vunpack.c.l.b16 %v160
      %v234 = vunpack.c.l.b16 %v161
      %v235 = vunpack.c.l.b16 %v162
      %v236 = vunpack.c.l.b16 %v163
      %v237 = vunpack.c.l.b16 %v164
      %v238 = vunpack.c.l.b16 %v165
      %v239 = vunpack.c.l.b16 %v166
      %v240 = vunpack.c.l.b16 %v167
      %v241 = vunpack.c.l.b16 %v168
      %v242 = vunpack.c.l.b16 %v169
      %v243 = vunpack.c.l.b16 %v170
      %v244 = vunpack.c.l.b16 %v171
      %v245 = vunpack.c.l.b16 %v172
      %v246 = vunpack.c.l.b16 %v173
      %v247 = vunpack.c.l.b16 %v174
      %v248 = vunpack.c.l.b16 %v175
      %v249 = vunpack.c.l.b16 %v176
      %v250 = vunpack.c.l.b16 %v177
      %v251 = vunpack.c.l.b16 %v178
      %v252 = vunpack.c.l.b16 %v179
      %v253 = vpack.c.b16 %v222, %v221
      %v254 = vpack.c.b16 %v224, %v223
      %v255 = vpack.c.b16 %v226, %v225
      %v256 = vpack.c.b16 %v228, %v227
      %v257 = vpack.c.b16 %v230, %v229
      %v258 = vpack.c.b16 %v232, %v231
      %v259 = vpack.c.b16 %v234, %v233
      %v260 = vpack.c.b16 %v236, %v235
      %v261 = vpack.c.b16 %v238, %v237
      %v262 = vpack.c.b16 %v240, %v239
      %v263 = vpack.c.b16 %v242, %v241
      %v264 = vpack.c.b16 %v244, %v243
      %v265 = vpack.c.b16 %v246, %v245
      %v266 = vpack.c.b16 %v248, %v247
      %v267 = vpack.c.b16 %v250, %v249
      %v268 = vpack.c.b16 %v252, %v251
      %v278 = vunpack.c.l.b16 %v180
      %v279 = vunpack.c.l.b16 %v181
      %v280 = vunpack.c.l.b16 %v182
      %v281 = vunpack.c.l.b16 %v183
      %v282 = vunpack.c.l.b16 %v184
      %v283 = vunpack.c.l.b16 %v185
      %v284 = vunpack.c.l.b16 %v186
      %v285 = vunpack.c.l.b16 %v187
      %v286 = vunpack.c.l.b16 %v188
      %v287 = vpack.c.b16 %v279, %v278
      %v288 = vpack.c.b16 %v281, %v280
      %v289 = vpack.c.b16 %v283, %v282
      %v290 = vpack.c.b16 %v285, %v284
      %v291 = vpack.c.b16 %v286, %v286
      %vm296 = vcmask 588800
      %v298 = vsel %vm296, %v253, 0
      %v301 = vsel %vm296, %v254, 0
      %v304 = vsel %vm296, %v255, 0
      %v307 = vsel %vm296, %v256, 0
      %v310 = vsel %vm296, %v257, 0
      %v313 = vsel %vm296, %v258, 0
      %v316 = vsel %vm296, %v259, 0
      %v319 = vsel %vm296, %v260, 0
      %v322 = vsel %vm296, %v261, 0
      %v325 = vsel %vm296, %v262, 0
      %v328 = vsel %vm296, %v263, 0
      %v331 = vsel %vm296, %v264, 0
      %v334 = vsel %vm296, %v265, 0
      %v337 = vsel %vm296, %v266, 0
      %v340 = vsel %vm296, %v267, 0
      %v343 = vsel %vm296, %v268, 0
      %vm345 = vcmask 1043456
      %v347 = vsel %vm345, %v291, 0
      %349 = vmatpush.bf16.msra.mxu0 0
      %350 = vmatpush.bf16.msra.mxu0 0
      %351 = vmatpush.bf16.msra.mxu0 0
      %352 = vmatpush.bf16.msra.mxu0 %v347
      %353 = vmatpush.bf16.msra.mxu0 %v290
      %354 = vmatpush.bf16.msra.mxu0 %v289
      %355 = vmatpush.bf16.msra.mxu0 %v288
      %356 = vmatpush.bf16.msra.mxu0 %v287
      %357 = vmatmul.bf16.gmra.mxu0 %v298
      %v358 = vpop.f32.mrf.mxu0
      %v359 = vadd.f32 0.0, %v358
      %v360 = vpop.f32.mrf.mxu0
      %v361 = vadd.f32 0.0, %v360
      %362 = vmatmul.bf16.gmra.mxu0 %v301
      %v363 = vpop.f32.mrf.mxu0
      %v364 = vadd.f32 0.0, %v363
      %v365 = vpop.f32.mrf.mxu0
      %v366 = vadd.f32 0.0, %v365
      %367 = vmatmul.bf16.gmra.mxu0 %v304
      %v368 = vpop.f32.mrf.mxu0
      %v369 = vadd.f32 0.0, %v368
      %v370 = vpop.f32.mrf.mxu0
      %v371 = vadd.f32 0.0, %v370
      %372 = vmatmul.bf16.gmra.mxu0 %v307
      %v373 = vpop.f32.mrf.mxu0
      %v374 = vadd.f32 0.0, %v373
      %v375 = vpop.f32.mrf.mxu0
      %v376 = vadd.f32 0.0, %v375
      %377 = vmatmul.bf16.gmra.mxu0 %v310
      %v378 = vpop.f32.mrf.mxu0
      %v379 = vadd.f32 0.0, %v378
      %v380 = vpop.f32.mrf.mxu0
      %v381 = vadd.f32 0.0, %v380
      %382 = vmatmul.bf16.gmra.mxu0 %v313
      %v383 = vpop.f32.mrf.mxu0
      %v384 = vadd.f32 0.0, %v383
      %v385 = vpop.f32.mrf.mxu0
      %v386 = vadd.f32 0.0, %v385
      %387 = vmatmul.bf16.gmra.mxu0 %v316
      %v388 = vpop.f32.mrf.mxu0
      %v389 = vadd.f32 0.0, %v388
      %v390 = vpop.f32.mrf.mxu0
      %v391 = vadd.f32 0.0, %v390
      %392 = vmatmul.bf16.gmra.mxu0 %v319
      %v393 = vpop.f32.mrf.mxu0
      %v394 = vadd.f32 0.0, %v393
      %v395 = vpop.f32.mrf.mxu0
      %v396 = vadd.f32 0.0, %v395
      %397 = vmatmul.bf16.gmra.mxu0 %v322
      %v398 = vpop.f32.mrf.mxu0
      %v399 = vadd.f32 0.0, %v398
      %v400 = vpop.f32.mrf.mxu0
      %v401 = vadd.f32 0.0, %v400
      %402 = vmatmul.bf16.gmra.mxu0 %v325
      %v403 = vpop.f32.mrf.mxu0
      %v404 = vadd.f32 0.0, %v403
      %v405 = vpop.f32.mrf.mxu0
      %v406 = vadd.f32 0.0, %v405
      %407 = vmatmul.bf16.gmra.mxu0 %v328
      %v408 = vpop.f32.mrf.mxu0
      %v409 = vadd.f32 0.0, %v408
      %v410 = vpop.f32.mrf.mxu0
      %v411 = vadd.f32 0.0, %v410
      %412 = vmatmul.bf16.gmra.mxu0 %v331
      %v413 = vpop.f32.mrf.mxu0
      %v414 = vadd.f32 0.0, %v413
      %v415 = vpop.f32.mrf.mxu0
      %v416 = vadd.f32 0.0, %v415
      %417 = vmatmul.bf16.gmra.mxu0 %v334
      %v418 = vpop.f32.mrf.mxu0
      %v419 = vadd.f32 0.0, %v418
      %v420 = vpop.f32.mrf.mxu0
      %v421 = vadd.f32 0.0, %v420
      %422 = vmatmul.bf16.gmra.mxu0 %v337
      %v423 = vpop.f32.mrf.mxu0
      %v424 = vadd.f32 0.0, %v423
      %v425 = vpop.f32.mrf.mxu0
      %v426 = vadd.f32 0.0, %v425
      %427 = vmatmul.bf16.gmra.mxu0 %v340
      %v428 = vpop.f32.mrf.mxu0
      %v429 = vadd.f32 0.0, %v428
      %v430 = vpop.f32.mrf.mxu0
      %v431 = vadd.f32 0.0, %v430
      %432 = vmatmul.bf16.gmra.mxu0 %v343
      %v433 = vpop.f32.mrf.mxu0
      %v434 = vadd.f32 0.0, %v433
      %v435 = vpop.f32.mrf.mxu0
      %v436 = vadd.f32 0.0, %v435
      %437 = vdwg.mxu0
      %v438 = vtanh.pop %v359
      %v439 = vtanh.pop %v361
      %v440 = vtanh.pop %v364
      %v441 = vtanh.pop %v366
      %v442 = vtanh.pop %v369
      %v443 = vtanh.pop %v371
      %v444 = vtanh.pop %v374
      %v445 = vtanh.pop %v376
      %v446 = vtanh.pop %v379
      %v447 = vtanh.pop %v381
      %v448 = vtanh.pop %v384
      %v449 = vtanh.pop %v386
      %v450 = vtanh.pop %v389
      %v451 = vtanh.pop %v391
      %v452 = vtanh.pop %v394
      %v453 = vtanh.pop %v396
      %v454 = vtanh.pop %v399
      %v455 = vtanh.pop %v401
      %v456 = vtanh.pop %v404
      %v457 = vtanh.pop %v406
      %v458 = vtanh.pop %v409
      %v459 = vtanh.pop %v411
      %v460 = vtanh.pop %v414
      %v461 = vtanh.pop %v416
      %v462 = vtanh.pop %v419
      %v463 = vtanh.pop %v421
      %v464 = vtanh.pop %v424
      %v465 = vtanh.pop %v426
      %v466 = vtanh.pop %v429
      %v467 = vtanh.pop %v431
      %v468 = vtanh.pop %v434
      %v469 = vtanh.pop %v436
      %v470 = vpack.c.bf16 %v438, %v438
      %v471 = vpack.c.bf16 %v439, %v439
      %v472 = vpack.c.bf16 %v440, %v440
      %v473 = vpack.c.bf16 %v441, %v441
      %v474 = vpack.c.bf16 %v442, %v442
      %v475 = vpack.c.bf16 %v443, %v443
      %v476 = vpack.c.bf16 %v444, %v444
      %v477 = vpack.c.bf16 %v445, %v445
      %v478 = vpack.c.bf16 %v446, %v446
      %v479 = vpack.c.bf16 %v447, %v447
      %v480 = vpack.c.bf16 %v448, %v448
      %v481 = vpack.c.bf16 %v449, %v449
      %v482 = vpack.c.bf16 %v450, %v450
      %v483 = vpack.c.bf16 %v451, %v451
      %v484 = vpack.c.bf16 %v452, %v452
      %v485 = vpack.c.bf16 %v453, %v453
      %v486 = vpack.c.bf16 %v454, %v454
      %v487 = vpack.c.bf16 %v455, %v455
      %v488 = vpack.c.bf16 %v456, %v456
      %v489 = vpack.c.bf16 %v457, %v457
      %v490 = vpack.c.bf16 %v458, %v458
      %v491 = vpack.c.bf16 %v459, %v459
      %v492 = vpack.c.bf16 %v460, %v460
      %v493 = vpack.c.bf16 %v461, %v461
      %v494 = vpack.c.bf16 %v462, %v462
      %v495 = vpack.c.bf16 %v463, %v463
      %v496 = vpack.c.bf16 %v464, %v464
      %v497 = vpack.c.bf16 %v465, %v465
      %v498 = vpack.c.bf16 %v466, %v466
      %v499 = vpack.c.bf16 %v467, %v467
      %v500 = vpack.c.bf16 %v468, %v468
      %v501 = vpack.c.bf16 %v469, %v469
      %502 = vst [vmem:[%s145] sm:$0xf] %v470
      %503 = vst [vmem:[%s145 + $0x4] sm:$0xf] %v471
      %504 = vst [vmem:[%s145 + $0x8] sm:$0xf] %v472
      %505 = vst [vmem:[%s145 + $0xc] sm:$0xf] %v473
      %506 = vst [vmem:[%s145 + $0x10] sm:$0xf] %v474
      %507 = vst [vmem:[%s145 + $0x14] sm:$0xf] %v475
      %508 = vst [vmem:[%s145 + $0x18] sm:$0xf] %v476
      %509 = vst [vmem:[%s145 + $0x1c] sm:$0xf] %v477
      %510 = vst [vmem:[%s145 + $0x20] sm:$0xf] %v478
      %511 = vst [vmem:[%s145 + $0x24] sm:$0xf] %v479
      %512 = vst [vmem:[%s145 + $0x28] sm:$0xf] %v480
      %513 = vst [vmem:[%s145 + $0x2c] sm:$0xf] %v481
      %514 = vst [vmem:[%s145 + $0x30] sm:$0xf] %v482
      %515 = vst [vmem:[%s145 + $0x34] sm:$0xf] %v483
      %516 = vst [vmem:[%s145 + $0x38] sm:$0xf] %v484
      %517 = vst [vmem:[%s145 + $0x3c] sm:$0xf] %v485
      %518 = vst [vmem:[%s145 + $0x40] sm:$0xf] %v486
      %519 = vst [vmem:[%s145 + $0x44] sm:$0xf] %v487
      %520 = vst [vmem:[%s145 + $0x48] sm:$0xf] %v488
      %521 = vst [vmem:[%s145 + $0x4c] sm:$0xf] %v489
      %522 = vst [vmem:[%s145 + $0x50] sm:$0xf] %v490
      %523 = vst [vmem:[%s145 + $0x54] sm:$0xf] %v491
      %524 = vst [vmem:[%s145 + $0x58] sm:$0xf] %v492
      %525 = vst [vmem:[%s145 + $0x5c] sm:$0xf] %v493
      %526 = vst [vmem:[%s145 + $0x60] sm:$0xf] %v494
      %527 = vst [vmem:[%s145 + $0x64] sm:$0xf] %v495
      %528 = vst [vmem:[%s145 + $0x68] sm:$0xf] %v496
      %529 = vst [vmem:[%s145 + $0x6c] sm:$0xf] %v497
      %530 = vst [vmem:[%s145 + $0x70] sm:$0xf] %v498
      %531 = vst [vmem:[%s145 + $0x74] sm:$0xf] %v499
      %532 = vst [vmem:[%s145 + $0x78] sm:$0xf] %v500
      %533 = vst [vmem:[%s145 + $0x7c] sm:$0xf] %v501
      %s534 = scalar_lea.vmem %s139, 128
      %v535 = vld [vmem:[%s534] sm:$0xf]
      %v536 = vld [vmem:[%s534 + $0x4] sm:$0xf]
      %v537 = vld [vmem:[%s534 + $0x8] sm:$0xf]
      %v538 = vld [vmem:[%s534 + $0xc] sm:$0xf]
      %v539 = vld [vmem:[%s534 + $0x10] sm:$0xf]
      %v540 = vld [vmem:[%s534 + $0x14] sm:$0xf]
      %v541 = vld [vmem:[%s534 + $0x18] sm:$0xf]
      %v542 = vld [vmem:[%s534 + $0x1c] sm:$0xf]
      %v543 = vld [vmem:[%s534 + $0x20] sm:$0xf]
      %v544 = vld [vmem:[%s534 + $0x24] sm:$0xf]
      %v545 = vld [vmem:[%s534 + $0x28] sm:$0xf]
      %v546 = vld [vmem:[%s534 + $0x2c] sm:$0xf]
      %v547 = vld [vmem:[%s534 + $0x30] sm:$0xf]
      %v548 = vld [vmem:[%s534 + $0x34] sm:$0xf]
      %v549 = vld [vmem:[%s534 + $0x38] sm:$0xf]
      %v550 = vld [vmem:[%s534 + $0x3c] sm:$0xf]
      %v551 = vld [vmem:[%s534 + $0x40] sm:$0xf]
      %v552 = vld [vmem:[%s534 + $0x44] sm:$0xf]
      %v553 = vld [vmem:[%s534 + $0x48] sm:$0xf]
      %v554 = vld [vmem:[%s534 + $0x4c] sm:$0xf]
      %v555 = vld [vmem:[%s534 + $0x50] sm:$0xf]
      %v556 = vld [vmem:[%s534 + $0x54] sm:$0xf]
      %v557 = vld [vmem:[%s534 + $0x58] sm:$0xf]
      %v558 = vld [vmem:[%s534 + $0x5c] sm:$0xf]
      %v559 = vld [vmem:[%s534 + $0x60] sm:$0xf]
      %v560 = vld [vmem:[%s534 + $0x64] sm:$0xf]
      %v561 = vld [vmem:[%s534 + $0x68] sm:$0xf]
      %v562 = vld [vmem:[%s534 + $0x6c] sm:$0xf]
      %v563 = vld [vmem:[%s534 + $0x70] sm:$0xf]
      %v564 = vld [vmem:[%s534 + $0x74] sm:$0xf]
      %v565 = vld [vmem:[%s534 + $0x78] sm:$0xf]
      %v566 = vld [vmem:[%s534 + $0x7c] sm:$0xf]
      %v567 = vld [vmem:[%s1] sm:$0xf]
      %v568 = vld [vmem:[%s1 + $0x4] sm:$0xf]
      %v569 = vld [vmem:[%s1 + $0x8] sm:$0xf]
      %v570 = vld [vmem:[%s1 + $0xc] sm:$0xf]
      %v571 = vld [vmem:[%s1 + $0x10] sm:$0xf]
      %v572 = vld [vmem:[%s1 + $0x14] sm:$0xf]
      %v573 = vld [vmem:[%s1 + $0x18] sm:$0xf]
      %v574 = vld [vmem:[%s1 + $0x1c] sm:$0xf]
      %v575 = vld [vmem:[%s1 + $0x20] sm:$0xf]
      %v608 = vunpack.c.l.b16 %v535
      %v609 = vunpack.c.l.b16 %v536
      %v610 = vunpack.c.l.b16 %v537
      %v611 = vunpack.c.l.b16 %v538
      %v612 = vunpack.c.l.b16 %v539
      %v613 = vunpack.c.l.b16 %v540
      %v614 = vunpack.c.l.b16 %v541
      %v615 = vunpack.c.l.b16 %v542
      %v616 = vunpack.c.l.b16 %v543
      %v617 = vunpack.c.l.b16 %v544
      %v618 = vunpack.c.l.b16 %v545
      %v619 = vunpack.c.l.b16 %v546
      %v620 = vunpack.c.l.b16 %v547
      %v621 = vunpack.c.l.b16 %v548
      %v622 = vunpack.c.l.b16 %v549
      %v623 = vunpack.c.l.b16 %v550
      %v624 = vunpack.c.l.b16 %v551
      %v625 = vunpack.c.l.b16 %v552
      %v626 = vunpack.c.l.b16 %v553
      %v627 = vunpack.c.l.b16 %v554
      %v628 = vunpack.c.l.b16 %v555
      %v629 = vunpack.c.l.b16 %v556
      %v630 = vunpack.c.l.b16 %v557
      %v631 = vunpack.c.l.b16 %v558
      %v632 = vunpack.c.l.b16 %v559
      %v633 = vunpack.c.l.b16 %v560
      %v634 = vunpack.c.l.b16 %v561
      %v635 = vunpack.c.l.b16 %v562
      %v636 = vunpack.c.l.b16 %v563
      %v637 = vunpack.c.l.b16 %v564
      %v638 = vunpack.c.l.b16 %v565
      %v639 = vunpack.c.l.b16 %v566
      %v640 = vpack.c.b16 %v609, %v608
      %v641 = vpack.c.b16 %v611, %v610
      %v642 = vpack.c.b16 %v613, %v612
      %v643 = vpack.c.b16 %v615, %v614
      %v644 = vpack.c.b16 %v617, %v616
      %v645 = vpack.c.b16 %v619, %v618
      %v646 = vpack.c.b16 %v621, %v620
      %v647 = vpack.c.b16 %v623, %v622
      %v648 = vpack.c.b16 %v625, %v624
      %v649 = vpack.c.b16 %v627, %v626
      %v650 = vpack.c.b16 %v629, %v628
      %v651 = vpack.c.b16 %v631, %v630
      %v652 = vpack.c.b16 %v633, %v632
      %v653 = vpack.c.b16 %v635, %v634
      %v654 = vpack.c.b16 %v637, %v636
      %v655 = vpack.c.b16 %v639, %v638
      %v665 = vunpack.c.l.b16 %v567
      %v666 = vunpack.c.l.b16 %v568
      %v667 = vunpack.c.l.b16 %v569
      %v668 = vunpack.c.l.b16 %v570
      %v669 = vunpack.c.l.b16 %v571
      %v670 = vunpack.c.l.b16 %v572
      %v671 = vunpack.c.l.b16 %v573
      %v672 = vunpack.c.l.b16 %v574
      %v673 = vunpack.c.l.b16 %v575
      %v674 = vpack.c.b16 %v666, %v665
      %v675 = vpack.c.b16 %v668, %v667
      %v676 = vpack.c.b16 %v670, %v669
      %v677 = vpack.c.b16 %v672, %v671
      %v678 = vpack.c.b16 %v673, %v673
      %v684 = vsel %vm296, %v640, 0
      %v687 = vsel %vm296, %v641, 0
      %v690 = vsel %vm296, %v642, 0
      %v693 = vsel %vm296, %v643, 0
      %v696 = vsel %vm296, %v644, 0
      %v699 = vsel %vm296, %v645, 0
      %v702 = vsel %vm296, %v646, 0
      %v705 = vsel %vm296, %v647, 0
      %v708 = vsel %vm296, %v648, 0
      %v711 = vsel %vm296, %v649, 0
      %v714 = vsel %vm296, %v650, 0
      %v717 = vsel %vm296, %v651, 0
      %v720 = vsel %vm296, %v652, 0
      %v723 = vsel %vm296, %v653, 0
      %v726 = vsel %vm296, %v654, 0
      %v729 = vsel %vm296, %v655, 0
      %v732 = vsel %vm345, %v678, 0
      %734 = vmatpush.bf16.msra.mxu0 0
      %735 = vmatpush.bf16.msra.mxu0 0
      %736 = vmatpush.bf16.msra.mxu0 0
      %737 = vmatpush.bf16.msra.mxu0 %v732
      %738 = vmatpush.bf16.msra.mxu0 %v677
      %739 = vmatpush.bf16.msra.mxu0 %v676
      %740 = vmatpush.bf16.msra.mxu0 %v675
      %741 = vmatpush.bf16.msra.mxu0 %v674
      %742 = vmatmul.bf16.gmra.mxu0 %v684
      %v743 = vpop.f32.mrf.mxu0
      %v744 = vadd.f32 0.0, %v743
      %v745 = vpop.f32.mrf.mxu0
      %v746 = vadd.f32 0.0, %v745
      %747 = vmatmul.bf16.gmra.mxu0 %v687
      %v748 = vpop.f32.mrf.mxu0
      %v749 = vadd.f32 0.0, %v748
      %v750 = vpop.f32.mrf.mxu0
      %v751 = vadd.f32 0.0, %v750
      %752 = vmatmul.bf16.gmra.mxu0 %v690
      %v753 = vpop.f32.mrf.mxu0
      %v754 = vadd.f32 0.0, %v753
      %v755 = vpop.f32.mrf.mxu0
      %v756 = vadd.f32 0.0, %v755
      %757 = vmatmul.bf16.gmra.mxu0 %v693
      %v758 = vpop.f32.mrf.mxu0
      %v759 = vadd.f32 0.0, %v758
      %v760 = vpop.f32.mrf.mxu0
      %v761 = vadd.f32 0.0, %v760
      %762 = vmatmul.bf16.gmra.mxu0 %v696
      %v763 = vpop.f32.mrf.mxu0
      %v764 = vadd.f32 0.0, %v763
      %v765 = vpop.f32.mrf.mxu0
      %v766 = vadd.f32 0.0, %v765
      %767 = vmatmul.bf16.gmra.mxu0 %v699
      %v768 = vpop.f32.mrf.mxu0
      %v769 = vadd.f32 0.0, %v768
      %v770 = vpop.f32.mrf.mxu0
      %v771 = vadd.f32 0.0, %v770
      %772 = vmatmul.bf16.gmra.mxu0 %v702
      %v773 = vpop.f32.mrf.mxu0
      %v774 = vadd.f32 0.0, %v773
      %v775 = vpop.f32.mrf.mxu0
      %v776 = vadd.f32 0.0, %v775
      %777 = vmatmul.bf16.gmra.mxu0 %v705
      %v778 = vpop.f32.mrf.mxu0
      %v779 = vadd.f32 0.0, %v778
      %v780 = vpop.f32.mrf.mxu0
      %v781 = vadd.f32 0.0, %v780
      %782 = vmatmul.bf16.gmra.mxu0 %v708
      %v783 = vpop.f32.mrf.mxu0
      %v784 = vadd.f32 0.0, %v783
      %v785 = vpop.f32.mrf.mxu0
      %v786 = vadd.f32 0.0, %v785
      %787 = vmatmul.bf16.gmra.mxu0 %v711
      %v788 = vpop.f32.mrf.mxu0
      %v789 = vadd.f32 0.0, %v788
      %v790 = vpop.f32.mrf.mxu0
      %v791 = vadd.f32 0.0, %v790
      %792 = vmatmul.bf16.gmra.mxu0 %v714
      %v793 = vpop.f32.mrf.mxu0
      %v794 = vadd.f32 0.0, %v793
      %v795 = vpop.f32.mrf.mxu0
      %v796 = vadd.f32 0.0, %v795
      %797 = vmatmul.bf16.gmra.mxu0 %v717
      %v798 = vpop.f32.mrf.mxu0
      %v799 = vadd.f32 0.0, %v798
      %v800 = vpop.f32.mrf.mxu0
      %v801 = vadd.f32 0.0, %v800
      %802 = vmatmul.bf16.gmra.mxu0 %v720
      %v803 = vpop.f32.mrf.mxu0
      %v804 = vadd.f32 0.0, %v803
      %v805 = vpop.f32.mrf.mxu0
      %v806 = vadd.f32 0.0, %v805
      %807 = vmatmul.bf16.gmra.mxu0 %v723
      %v808 = vpop.f32.mrf.mxu0
      %v809 = vadd.f32 0.0, %v808
      %v810 = vpop.f32.mrf.mxu0
      %v811 = vadd.f32 0.0, %v810
      %812 = vmatmul.bf16.gmra.mxu0 %v726
      %v813 = vpop.f32.mrf.mxu0
      %v814 = vadd.f32 0.0, %v813
      %v815 = vpop.f32.mrf.mxu0
      %v816 = vadd.f32 0.0, %v815
      %817 = vmatmul.bf16.gmra.mxu0 %v729
      %v818 = vpop.f32.mrf.mxu0
      %v819 = vadd.f32 0.0, %v818
      %v820 = vpop.f32.mrf.mxu0
      %v821 = vadd.f32 0.0, %v820
      %822 = vdwg.mxu0
      %v823 = vtanh.pop %v744
      %v824 = vtanh.pop %v746
      %v825 = vtanh.pop %v749
      %v826 = vtanh.pop %v751
      %v827 = vtanh.pop %v754
      %v828 = vtanh.pop %v756
      %v829 = vtanh.pop %v759
      %v830 = vtanh.pop %v761
      %v831 = vtanh.pop %v764
      %v832 = vtanh.pop %v766
      %v833 = vtanh.pop %v769
      %v834 = vtanh.pop %v771
      %v835 = vtanh.pop %v774
      %v836 = vtanh.pop %v776
      %v837 = vtanh.pop %v779
      %v838 = vtanh.pop %v781
      %v839 = vtanh.pop %v784
      %v840 = vtanh.pop %v786
      %v841 = vtanh.pop %v789
      %v842 = vtanh.pop %v791
      %v843 = vtanh.pop %v794
      %v844 = vtanh.pop %v796
      %v845 = vtanh.pop %v799
      %v846 = vtanh.pop %v801
      %v847 = vtanh.pop %v804
      %v848 = vtanh.pop %v806
      %v849 = vtanh.pop %v809
      %v850 = vtanh.pop %v811
      %v851 = vtanh.pop %v814
      %v852 = vtanh.pop %v816
      %v853 = vtanh.pop %v819
      %v854 = vtanh.pop %v821
      %v855 = vpack.c.bf16 %v823, %v823
      %v856 = vpack.c.bf16 %v824, %v824
      %v857 = vpack.c.bf16 %v825, %v825
      %v858 = vpack.c.bf16 %v826, %v826
      %v859 = vpack.c.bf16 %v827, %v827
      %v860 = vpack.c.bf16 %v828, %v828
      %v861 = vpack.c.bf16 %v829, %v829
      %v862 = vpack.c.bf16 %v830, %v830
      %v863 = vpack.c.bf16 %v831, %v831
      %v864 = vpack.c.bf16 %v832, %v832
      %v865 = vpack.c.bf16 %v833, %v833
      %v866 = vpack.c.bf16 %v834, %v834
      %v867 = vpack.c.bf16 %v835, %v835
      %v868 = vpack.c.bf16 %v836, %v836
      %v869 = vpack.c.bf16 %v837, %v837
      %v870 = vpack.c.bf16 %v838, %v838
      %v871 = vpack.c.bf16 %v839, %v839
      %v872 = vpack.c.bf16 %v840, %v840
      %v873 = vpack.c.bf16 %v841, %v841
      %v874 = vpack.c.bf16 %v842, %v842
      %v875 = vpack.c.bf16 %v843, %v843
      %v876 = vpack.c.bf16 %v844, %v844
      %v877 = vpack.c.bf16 %v845, %v845
      %v878 = vpack.c.bf16 %v846, %v846
      %v879 = vpack.c.bf16 %v847, %v847
      %v880 = vpack.c.bf16 %v848, %v848
      %v881 = vpack.c.bf16 %v849, %v849
      %v882 = vpack.c.bf16 %v850, %v850
      %v883 = vpack.c.bf16 %v851, %v851
      %v884 = vpack.c.bf16 %v852, %v852
      %v885 = vpack.c.bf16 %v853, %v853
      %v886 = vpack.c.bf16 %v854, %v854
      %s887 = scalar_lea.vmem %s145, 128
      %888 = vst [vmem:[%s887] sm:$0xf] %v855
      %889 = vst [vmem:[%s887 + $0x4] sm:$0xf] %v856
      %890 = vst [vmem:[%s887 + $0x8] sm:$0xf] %v857
      %891 = vst [vmem:[%s887 + $0xc] sm:$0xf] %v858
      %892 = vst [vmem:[%s887 + $0x10] sm:$0xf] %v859
      %893 = vst [vmem:[%s887 + $0x14] sm:$0xf] %v860
      %894 = vst [vmem:[%s887 + $0x18] sm:$0xf] %v861
      %895 = vst [vmem:[%s887 + $0x1c] sm:$0xf] %v862
      %896 = vst [vmem:[%s887 + $0x20] sm:$0xf] %v863
      %897 = vst [vmem:[%s887 + $0x24] sm:$0xf] %v864
      %898 = vst [vmem:[%s887 + $0x28] sm:$0xf] %v865
      %899 = vst [vmem:[%s887 + $0x2c] sm:$0xf] %v866
      %900 = vst [vmem:[%s887 + $0x30] sm:$0xf] %v867
      %901 = vst [vmem:[%s887 + $0x34] sm:$0xf] %v868
      %902 = vst [vmem:[%s887 + $0x38] sm:$0xf] %v869
      %903 = vst [vmem:[%s887 + $0x3c] sm:$0xf] %v870
      %904 = vst [vmem:[%s887 + $0x40] sm:$0xf] %v871
      %905 = vst [vmem:[%s887 + $0x44] sm:$0xf] %v872
      %906 = vst [vmem:[%s887 + $0x48] sm:$0xf] %v873
      %907 = vst [vmem:[%s887 + $0x4c] sm:$0xf] %v874
      %908 = vst [vmem:[%s887 + $0x50] sm:$0xf] %v875
      %909 = vst [vmem:[%s887 + $0x54] sm:$0xf] %v876
      %910 = vst [vmem:[%s887 + $0x58] sm:$0xf] %v877
      %911 = vst [vmem:[%s887 + $0x5c] sm:$0xf] %v878
      %912 = vst [vmem:[%s887 + $0x60] sm:$0xf] %v879
      %913 = vst [vmem:[%s887 + $0x64] sm:$0xf] %v880
      %914 = vst [vmem:[%s887 + $0x68] sm:$0xf] %v881
      %915 = vst [vmem:[%s887 + $0x6c] sm:$0xf] %v882
      %916 = vst [vmem:[%s887 + $0x70] sm:$0xf] %v883
      %917 = vst [vmem:[%s887 + $0x74] sm:$0xf] %v884
      %918 = vst [vmem:[%s887 + $0x78] sm:$0xf] %v885
      %919 = vst [vmem:[%s887 + $0x7c] sm:$0xf] %v886
      %s920 = scalar_lea.vmem %s139, 256
      %v921 = vld [vmem:[%s920] sm:$0xf]
      %v922 = vld [vmem:[%s920 + $0x4] sm:$0xf]
      %v923 = vld [vmem:[%s920 + $0x8] sm:$0xf]
      %v924 = vld [vmem:[%s920 + $0xc] sm:$0xf]
      %v925 = vld [vmem:[%s920 + $0x10] sm:$0xf]
      %v926 = vld [vmem:[%s920 + $0x14] sm:$0xf]
      %v927 = vld [vmem:[%s920 + $0x18] sm:$0xf]
      %v928 = vld [vmem:[%s920 + $0x1c] sm:$0xf]
      %v929 = vld [vmem:[%s920 + $0x20] sm:$0xf]
      %v930 = vld [vmem:[%s920 + $0x24] sm:$0xf]
      %v931 = vld [vmem:[%s920 + $0x28] sm:$0xf]
      %v932 = vld [vmem:[%s920 + $0x2c] sm:$0xf]
      %v933 = vld [vmem:[%s920 + $0x30] sm:$0xf]
      %v934 = vld [vmem:[%s920 + $0x34] sm:$0xf]
      %v935 = vld [vmem:[%s920 + $0x38] sm:$0xf]
      %v936 = vld [vmem:[%s920 + $0x3c] sm:$0xf]
      %v937 = vld [vmem:[%s920 + $0x40] sm:$0xf]
      %v938 = vld [vmem:[%s920 + $0x44] sm:$0xf]
      %v939 = vld [vmem:[%s920 + $0x48] sm:$0xf]
      %v940 = vld [vmem:[%s920 + $0x4c] sm:$0xf]
      %v941 = vld [vmem:[%s920 + $0x50] sm:$0xf]
      %v942 = vld [vmem:[%s920 + $0x54] sm:$0xf]
      %v943 = vld [vmem:[%s920 + $0x58] sm:$0xf]
      %v944 = vld [vmem:[%s920 + $0x5c] sm:$0xf]
      %v945 = vld [vmem:[%s920 + $0x60] sm:$0xf]
      %v946 = vld [vmem:[%s920 + $0x64] sm:$0xf]
      %v947 = vld [vmem:[%s920 + $0x68] sm:$0xf]
      %v948 = vld [vmem:[%s920 + $0x6c] sm:$0xf]
      %v949 = vld [vmem:[%s920 + $0x70] sm:$0xf]
      %v950 = vld [vmem:[%s920 + $0x74] sm:$0xf]
      %v951 = vld [vmem:[%s920 + $0x78] sm:$0xf]
      %v952 = vld [vmem:[%s920 + $0x7c] sm:$0xf]
      %v953 = vld [vmem:[%s1] sm:$0xf]
      %v954 = vld [vmem:[%s1 + $0x4] sm:$0xf]
      %v955 = vld [vmem:[%s1 + $0x8] sm:$0xf]
      %v956 = vld [vmem:[%s1 + $0xc] sm:$0xf]
      %v957 = vld [vmem:[%s1 + $0x10] sm:$0xf]
      %v958 = vld [vmem:[%s1 + $0x14] sm:$0xf]
      %v959 = vld [vmem:[%s1 + $0x18] sm:$0xf]
      %v960 = vld [vmem:[%s1 + $0x1c] sm:$0xf]
      %v961 = vld [vmem:[%s1 + $0x20] sm:$0xf]
      %v994 = vunpack.c.l.b16 %v921
      %v995 = vunpack.c.l.b16 %v922
      %v996 = vunpack.c.l.b16 %v923
      %v997 = vunpack.c.l.b16 %v924
      %v998 = vunpack.c.l.b16 %v925
      %v999 = vunpack.c.l.b16 %v926
      %v1000 = vunpack.c.l.b16 %v927
      %v1001 = vunpack.c.l.b16 %v928
      %v1002 = vunpack.c.l.b16 %v929
      %v1003 = vunpack.c.l.b16 %v930
      %v1004 = vunpack.c.l.b16 %v931
      %v1005 = vunpack.c.l.b16 %v932
      %v1006 = vunpack.c.l.b16 %v933
      %v1007 = vunpack.c.l.b16 %v934
      %v1008 = vunpack.c.l.b16 %v935
      %v1009 = vunpack.c.l.b16 %v936
      %v1010 = vunpack.c.l.b16 %v937
      %v1011 = vunpack.c.l.b16 %v938
      %v1012 = vunpack.c.l.b16 %v939
      %v1013 = vunpack.c.l.b16 %v940
      %v1014 = vunpack.c.l.b16 %v941
      %v1015 = vunpack.c.l.b16 %v942
      %v1016 = vunpack.c.l.b16 %v943
      %v1017 = vunpack.c.l.b16 %v944
      %v1018 = vunpack.c.l.b16 %v945
      %v1019 = vunpack.c.l.b16 %v946
      %v1020 = vunpack.c.l.b16 %v947
      %v1021 = vunpack.c.l.b16 %v948
      %v1022 = vunpack.c.l.b16 %v949
      %v1023 = vunpack.c.l.b16 %v950
      %v1024 = vunpack.c.l.b16 %v951
      %v1025 = vunpack.c.l.b16 %v952
      %v1026 = vpack.c.b16 %v995, %v994
      %v1027 = vpack.c.b16 %v997, %v996
      %v1028 = vpack.c.b16 %v999, %v998
      %v1029 = vpack.c.b16 %v1001, %v1000
      %v1030 = vpack.c.b16 %v1003, %v1002
      %v1031 = vpack.c.b16 %v1005, %v1004
      %v1032 = vpack.c.b16 %v1007, %v1006
      %v1033 = vpack.c.b16 %v1009, %v1008
      %v1034 = vpack.c.b16 %v1011, %v1010
      %v1035 = vpack.c.b16 %v1013, %v1012
      %v1036 = vpack.c.b16 %v1015, %v1014
      %v1037 = vpack.c.b16 %v1017, %v1016
      %v1038 = vpack.c.b16 %v1019, %v1018
      %v1039 = vpack.c.b16 %v1021, %v1020
      %v1040 = vpack.c.b16 %v1023, %v1022
      %v1041 = vpack.c.b16 %v1025, %v1024
      %v1051 = vunpack.c.l.b16 %v953
      %v1052 = vunpack.c.l.b16 %v954
      %v1053 = vunpack.c.l.b16 %v955
      %v1054 = vunpack.c.l.b16 %v956
      %v1055 = vunpack.c.l.b16 %v957
      %v1056 = vunpack.c.l.b16 %v958
      %v1057 = vunpack.c.l.b16 %v959
      %v1058 = vunpack.c.l.b16 %v960
      %v1059 = vunpack.c.l.b16 %v961
      %v1060 = vpack.c.b16 %v1052, %v1051
      %v1061 = vpack.c.b16 %v1054, %v1053
      %v1062 = vpack.c.b16 %v1056, %v1055
      %v1063 = vpack.c.b16 %v1058, %v1057
      %v1064 = vpack.c.b16 %v1059, %v1059
      %v1070 = vsel %vm296, %v1026, 0
      %v1073 = vsel %vm296, %v1027, 0
      %v1076 = vsel %vm296, %v1028, 0
      %v1079 = vsel %vm296, %v1029, 0
      %v1082 = vsel %vm296, %v1030, 0
      %v1085 = vsel %vm296, %v1031, 0
      %v1088 = vsel %vm296, %v1032, 0
      %v1091 = vsel %vm296, %v1033, 0
      %v1094 = vsel %vm296, %v1034, 0
      %v1097 = vsel %vm296, %v1035, 0
      %v1100 = vsel %vm296, %v1036, 0
      %v1103 = vsel %vm296, %v1037, 0
      %v1106 = vsel %vm296, %v1038, 0
      %v1109 = vsel %vm296, %v1039, 0
      %v1112 = vsel %vm296, %v1040, 0
      %v1115 = vsel %vm296, %v1041, 0
      %v1118 = vsel %vm345, %v1064, 0
      %1120 = vmatpush.bf16.msra.mxu0 0
      %1121 = vmatpush.bf16.msra.mxu0 0
      %1122 = vmatpush.bf16.msra.mxu0 0
      %1123 = vmatpush.bf16.msra.mxu0 %v1118
      %1124 = vmatpush.bf16.msra.mxu0 %v1063
      %1125 = vmatpush.bf16.msra.mxu0 %v1062
      %1126 = vmatpush.bf16.msra.mxu0 %v1061
      %1127 = vmatpush.bf16.msra.mxu0 %v1060
      %1128 = vmatmul.bf16.gmra.mxu0 %v1070
      %v1129 = vpop.f32.mrf.mxu0
      %v1130 = vadd.f32 0.0, %v1129
      %v1131 = vpop.f32.mrf.mxu0
      %v1132 = vadd.f32 0.0, %v1131
      %1133 = vmatmul.bf16.gmra.mxu0 %v1073
      %v1134 = vpop.f32.mrf.mxu0
      %v1135 = vadd.f32 0.0, %v1134
      %v1136 = vpop.f32.mrf.mxu0
      %v1137 = vadd.f32 0.0, %v1136
      %1138 = vmatmul.bf16.gmra.mxu0 %v1076
      %v1139 = vpop.f32.mrf.mxu0
      %v1140 = vadd.f32 0.0, %v1139
      %v1141 = vpop.f32.mrf.mxu0
      %v1142 = vadd.f32 0.0, %v1141
      %1143 = vmatmul.bf16.gmra.mxu0 %v1079
      %v1144 = vpop.f32.mrf.mxu0
      %v1145 = vadd.f32 0.0, %v1144
      %v1146 = vpop.f32.mrf.mxu0
      %v1147 = vadd.f32 0.0, %v1146
      %1148 = vmatmul.bf16.gmra.mxu0 %v1082
      %v1149 = vpop.f32.mrf.mxu0
      %v1150 = vadd.f32 0.0, %v1149
      %v1151 = vpop.f32.mrf.mxu0
      %v1152 = vadd.f32 0.0, %v1151
      %1153 = vmatmul.bf16.gmra.mxu0 %v1085
      %v1154 = vpop.f32.mrf.mxu0
      %v1155 = vadd.f32 0.0, %v1154
      %v1156 = vpop.f32.mrf.mxu0
      %v1157 = vadd.f32 0.0, %v1156
      %1158 = vmatmul.bf16.gmra.mxu0 %v1088
      %v1159 = vpop.f32.mrf.mxu0
      %v1160 = vadd.f32 0.0, %v1159
      %v1161 = vpop.f32.mrf.mxu0
      %v1162 = vadd.f32 0.0, %v1161
      %1163 = vmatmul.bf16.gmra.mxu0 %v1091
      %v1164 = vpop.f32.mrf.mxu0
      %v1165 = vadd.f32 0.0, %v1164
      %v1166 = vpop.f32.mrf.mxu0
      %v1167 = vadd.f32 0.0, %v1166
      %1168 = vmatmul.bf16.gmra.mxu0 %v1094
      %v1169 = vpop.f32.mrf.mxu0
      %v1170 = vadd.f32 0.0, %v1169
      %v1171 = vpop.f32.mrf.mxu0
      %v1172 = vadd.f32 0.0, %v1171
      %1173 = vmatmul.bf16.gmra.mxu0 %v1097
      %v1174 = vpop.f32.mrf.mxu0
      %v1175 = vadd.f32 0.0, %v1174
      %v1176 = vpop.f32.mrf.mxu0
      %v1177 = vadd.f32 0.0, %v1176
      %1178 = vmatmul.bf16.gmra.mxu0 %v1100
      %v1179 = vpop.f32.mrf.mxu0
      %v1180 = vadd.f32 0.0, %v1179
      %v1181 = vpop.f32.mrf.mxu0
      %v1182 = vadd.f32 0.0, %v1181
      %1183 = vmatmul.bf16.gmra.mxu0 %v1103
      %v1184 = vpop.f32.mrf.mxu0
      %v1185 = vadd.f32 0.0, %v1184
      %v1186 = vpop.f32.mrf.mxu0
      %v1187 = vadd.f32 0.0, %v1186
      %1188 = vmatmul.bf16.gmra.mxu0 %v1106
      %v1189 = vpop.f32.mrf.mxu0
      %v1190 = vadd.f32 0.0, %v1189
      %v1191 = vpop.f32.mrf.mxu0
      %v1192 = vadd.f32 0.0, %v1191
      %1193 = vmatmul.bf16.gmra.mxu0 %v1109
      %v1194 = vpop.f32.mrf.mxu0
      %v1195 = vadd.f32 0.0, %v1194
      %v1196 = vpop.f32.mrf.mxu0
      %v1197 = vadd.f32 0.0, %v1196
      %1198 = vmatmul.bf16.gmra.mxu0 %v1112
      %v1199 = vpop.f32.mrf.mxu0
      %v1200 = vadd.f32 0.0, %v1199
      %v1201 = vpop.f32.mrf.mxu0
      %v1202 = vadd.f32 0.0, %v1201
      %1203 = vmatmul.bf16.gmra.mxu0 %v1115
      %v1204 = vpop.f32.mrf.mxu0
      %v1205 = vadd.f32 0.0, %v1204
      %v1206 = vpop.f32.mrf.mxu0
      %v1207 = vadd.f32 0.0, %v1206
      %1208 = vdwg.mxu0
      %v1209 = vtanh.pop %v1130
      %v1210 = vtanh.pop %v1132
      %v1211 = vtanh.pop %v1135
      %v1212 = vtanh.pop %v1137
      %v1213 = vtanh.pop %v1140
      %v1214 = vtanh.pop %v1142
      %v1215 = vtanh.pop %v1145
      %v1216 = vtanh.pop %v1147
      %v1217 = vtanh.pop %v1150
      %v1218 = vtanh.pop %v1152
      %v1219 = vtanh.pop %v1155
      %v1220 = vtanh.pop %v1157
      %v1221 = vtanh.pop %v1160
      %v1222 = vtanh.pop %v1162
      %v1223 = vtanh.pop %v1165
      %v1224 = vtanh.pop %v1167
      %v1225 = vtanh.pop %v1170
      %v1226 = vtanh.pop %v1172
      %v1227 = vtanh.pop %v1175
      %v1228 = vtanh.pop %v1177
      %v1229 = vtanh.pop %v1180
      %v1230 = vtanh.pop %v1182
      %v1231 = vtanh.pop %v1185
      %v1232 = vtanh.pop %v1187
      %v1233 = vtanh.pop %v1190
      %v1234 = vtanh.pop %v1192
      %v1235 = vtanh.pop %v1195
      %v1236 = vtanh.pop %v1197
      %v1237 = vtanh.pop %v1200
      %v1238 = vtanh.pop %v1202
      %v1239 = vtanh.pop %v1205
      %v1240 = vtanh.pop %v1207
      %v1241 = vpack.c.bf16 %v1209, %v1209
      %v1242 = vpack.c.bf16 %v1210, %v1210
      %v1243 = vpack.c.bf16 %v1211, %v1211
      %v1244 = vpack.c.bf16 %v1212, %v1212
      %v1245 = vpack.c.bf16 %v1213, %v1213
      %v1246 = vpack.c.bf16 %v1214, %v1214
      %v1247 = vpack.c.bf16 %v1215, %v1215
      %v1248 = vpack.c.bf16 %v1216, %v1216
      %v1249 = vpack.c.bf16 %v1217, %v1217
      %v1250 = vpack.c.bf16 %v1218, %v1218
      %v1251 = vpack.c.bf16 %v1219, %v1219
      %v1252 = vpack.c.bf16 %v1220, %v1220
      %v1253 = vpack.c.bf16 %v1221, %v1221
      %v1254 = vpack.c.bf16 %v1222, %v1222
      %v1255 = vpack.c.bf16 %v1223, %v1223
      %v1256 = vpack.c.bf16 %v1224, %v1224
      %v1257 = vpack.c.bf16 %v1225, %v1225
      %v1258 = vpack.c.bf16 %v1226, %v1226
      %v1259 = vpack.c.bf16 %v1227, %v1227
      %v1260 = vpack.c.bf16 %v1228, %v1228
      %v1261 = vpack.c.bf16 %v1229, %v1229
      %v1262 = vpack.c.bf16 %v1230, %v1230
      %v1263 = vpack.c.bf16 %v1231, %v1231
      %v1264 = vpack.c.bf16 %v1232, %v1232
      %v1265 = vpack.c.bf16 %v1233, %v1233
      %v1266 = vpack.c.bf16 %v1234, %v1234
      %v1267 = vpack.c.bf16 %v1235, %v1235
      %v1268 = vpack.c.bf16 %v1236, %v1236
      %v1269 = vpack.c.bf16 %v1237, %v1237
      %v1270 = vpack.c.bf16 %v1238, %v1238
      %v1271 = vpack.c.bf16 %v1239, %v1239
      %v1272 = vpack.c.bf16 %v1240, %v1240
      %s1273 = scalar_lea.vmem %s145, 256
      %1274 = vst [vmem:[%s1273] sm:$0xf] %v1241
      %1275 = vst [vmem:[%s1273 + $0x4] sm:$0xf] %v1242
      %1276 = vst [vmem:[%s1273 + $0x8] sm:$0xf] %v1243
      %1277 = vst [vmem:[%s1273 + $0xc] sm:$0xf] %v1244
      %1278 = vst [vmem:[%s1273 + $0x10] sm:$0xf] %v1245
      %1279 = vst [vmem:[%s1273 + $0x14] sm:$0xf] %v1246
      %1280 = vst [vmem:[%s1273 + $0x18] sm:$0xf] %v1247
      %1281 = vst [vmem:[%s1273 + $0x1c] sm:$0xf] %v1248
      %1282 = vst [vmem:[%s1273 + $0x20] sm:$0xf] %v1249
      %1283 = vst [vmem:[%s1273 + $0x24] sm:$0xf] %v1250
      %1284 = vst [vmem:[%s1273 + $0x28] sm:$0xf] %v1251
      %1285 = vst [vmem:[%s1273 + $0x2c] sm:$0xf] %v1252
      %1286 = vst [vmem:[%s1273 + $0x30] sm:$0xf] %v1253
      %1287 = vst [vmem:[%s1273 + $0x34] sm:$0xf] %v1254
      %1288 = vst [vmem:[%s1273 + $0x38] sm:$0xf] %v1255
      %1289 = vst [vmem:[%s1273 + $0x3c] sm:$0xf] %v1256
      %1290 = vst [vmem:[%s1273 + $0x40] sm:$0xf] %v1257
      %1291 = vst [vmem:[%s1273 + $0x44] sm:$0xf] %v1258
      %1292 = vst [vmem:[%s1273 + $0x48] sm:$0xf] %v1259
      %1293 = vst [vmem:[%s1273 + $0x4c] sm:$0xf] %v1260
      %1294 = vst [vmem:[%s1273 + $0x50] sm:$0xf] %v1261
      %1295 = vst [vmem:[%s1273 + $0x54] sm:$0xf] %v1262
      %1296 = vst [vmem:[%s1273 + $0x58] sm:$0xf] %v1263
      %1297 = vst [vmem:[%s1273 + $0x5c] sm:$0xf] %v1264
      %1298 = vst [vmem:[%s1273 + $0x60] sm:$0xf] %v1265
      %1299 = vst [vmem:[%s1273 + $0x64] sm:$0xf] %v1266
      %1300 = vst [vmem:[%s1273 + $0x68] sm:$0xf] %v1267
      %1301 = vst [vmem:[%s1273 + $0x6c] sm:$0xf] %v1268
      %1302 = vst [vmem:[%s1273 + $0x70] sm:$0xf] %v1269
      %1303 = vst [vmem:[%s1273 + $0x74] sm:$0xf] %v1270
      %1304 = vst [vmem:[%s1273 + $0x78] sm:$0xf] %v1271
      %1305 = vst [vmem:[%s1273 + $0x7c] sm:$0xf] %v1272
      %s1306 = scalar_lea.vmem %s139, 384
      %v1307 = vld [vmem:[%s1306] sm:$0xf]
      %v1308 = vld [vmem:[%s1306 + $0x4] sm:$0xf]
      %v1309 = vld [vmem:[%s1306 + $0x8] sm:$0xf]
      %v1310 = vld [vmem:[%s1306 + $0xc] sm:$0xf]
      %v1311 = vld [vmem:[%s1306 + $0x10] sm:$0xf]
      %v1312 = vld [vmem:[%s1306 + $0x14] sm:$0xf]
      %v1313 = vld [vmem:[%s1306 + $0x18] sm:$0xf]
      %v1314 = vld [vmem:[%s1306 + $0x1c] sm:$0xf]
      %v1315 = vld [vmem:[%s1306 + $0x20] sm:$0xf]
      %v1316 = vld [vmem:[%s1306 + $0x24] sm:$0xf]
      %v1317 = vld [vmem:[%s1306 + $0x28] sm:$0xf]
      %v1318 = vld [vmem:[%s1306 + $0x2c] sm:$0xf]
      %v1319 = vld [vmem:[%s1306 + $0x30] sm:$0xf]
      %v1320 = vld [vmem:[%s1306 + $0x34] sm:$0xf]
      %v1321 = vld [vmem:[%s1306 + $0x38] sm:$0xf]
      %v1322 = vld [vmem:[%s1306 + $0x3c] sm:$0xf]
      %v1323 = vld [vmem:[%s1306 + $0x40] sm:$0xf]
      %v1324 = vld [vmem:[%s1306 + $0x44] sm:$0xf]
      %v1325 = vld [vmem:[%s1306 + $0x48] sm:$0xf]
      %v1326 = vld [vmem:[%s1306 + $0x4c] sm:$0xf]
      %v1327 = vld [vmem:[%s1306 + $0x50] sm:$0xf]
      %v1328 = vld [vmem:[%s1306 + $0x54] sm:$0xf]
      %v1329 = vld [vmem:[%s1306 + $0x58] sm:$0xf]
      %v1330 = vld [vmem:[%s1306 + $0x5c] sm:$0xf]
      %v1331 = vld [vmem:[%s1306 + $0x60] sm:$0xf]
      %v1332 = vld [vmem:[%s1306 + $0x64] sm:$0xf]
      %v1333 = vld [vmem:[%s1306 + $0x68] sm:$0xf]
      %v1334 = vld [vmem:[%s1306 + $0x6c] sm:$0xf]
      %v1335 = vld [vmem:[%s1306 + $0x70] sm:$0xf]
      %v1336 = vld [vmem:[%s1306 + $0x74] sm:$0xf]
      %v1337 = vld [vmem:[%s1306 + $0x78] sm:$0xf]
      %v1338 = vld [vmem:[%s1306 + $0x7c] sm:$0xf]
      %v1339 = vld [vmem:[%s1] sm:$0xf]
      %v1340 = vld [vmem:[%s1 + $0x4] sm:$0xf]
      %v1341 = vld [vmem:[%s1 + $0x8] sm:$0xf]
      %v1342 = vld [vmem:[%s1 + $0xc] sm:$0xf]
      %v1343 = vld [vmem:[%s1 + $0x10] sm:$0xf]
      %v1344 = vld [vmem:[%s1 + $0x14] sm:$0xf]
      %v1345 = vld [vmem:[%s1 + $0x18] sm:$0xf]
      %v1346 = vld [vmem:[%s1 + $0x1c] sm:$0xf]
      %v1347 = vld [vmem:[%s1 + $0x20] sm:$0xf]
      %v1380 = vunpack.c.l.b16 %v1307
      %v1381 = vunpack.c.l.b16 %v1308
      %v1382 = vunpack.c.l.b16 %v1309
      %v1383 = vunpack.c.l.b16 %v1310
      %v1384 = vunpack.c.l.b16 %v1311
      %v1385 = vunpack.c.l.b16 %v1312
      %v1386 = vunpack.c.l.b16 %v1313
      %v1387 = vunpack.c.l.b16 %v1314
      %v1388 = vunpack.c.l.b16 %v1315
      %v1389 = vunpack.c.l.b16 %v1316
      %v1390 = vunpack.c.l.b16 %v1317
      %v1391 = vunpack.c.l.b16 %v1318
      %v1392 = vunpack.c.l.b16 %v1319
      %v1393 = vunpack.c.l.b16 %v1320
      %v1394 = vunpack.c.l.b16 %v1321
      %v1395 = vunpack.c.l.b16 %v1322
      %v1396 = vunpack.c.l.b16 %v1323
      %v1397 = vunpack.c.l.b16 %v1324
      %v1398 = vunpack.c.l.b16 %v1325
      %v1399 = vunpack.c.l.b16 %v1326
      %v1400 = vunpack.c.l.b16 %v1327
      %v1401 = vunpack.c.l.b16 %v1328
      %v1402 = vunpack.c.l.b16 %v1329
      %v1403 = vunpack.c.l.b16 %v1330
      %v1404 = vunpack.c.l.b16 %v1331
      %v1405 = vunpack.c.l.b16 %v1332
      %v1406 = vunpack.c.l.b16 %v1333
      %v1407 = vunpack.c.l.b16 %v1334
      %v1408 = vunpack.c.l.b16 %v1335
      %v1409 = vunpack.c.l.b16 %v1336
      %v1410 = vunpack.c.l.b16 %v1337
      %v1411 = vunpack.c.l.b16 %v1338
      %v1412 = vpack.c.b16 %v1381, %v1380
      %v1413 = vpack.c.b16 %v1383, %v1382
      %v1414 = vpack.c.b16 %v1385, %v1384
      %v1415 = vpack.c.b16 %v1387, %v1386
      %v1416 = vpack.c.b16 %v1389, %v1388
      %v1417 = vpack.c.b16 %v1391, %v1390
      %v1418 = vpack.c.b16 %v1393, %v1392
      %v1419 = vpack.c.b16 %v1395, %v1394
      %v1420 = vpack.c.b16 %v1397, %v1396
      %v1421 = vpack.c.b16 %v1399, %v1398
      %v1422 = vpack.c.b16 %v1401, %v1400
      %v1423 = vpack.c.b16 %v1403, %v1402
      %v1424 = vpack.c.b16 %v1405, %v1404
      %v1425 = vpack.c.b16 %v1407, %v1406
      %v1426 = vpack.c.b16 %v1409, %v1408
      %v1427 = vpack.c.b16 %v1411, %v1410
      %v1437 = vunpack.c.l.b16 %v1339
      %v1438 = vunpack.c.l.b16 %v1340
      %v1439 = vunpack.c.l.b16 %v1341
      %v1440 = vunpack.c.l.b16 %v1342
      %v1441 = vunpack.c.l.b16 %v1343
      %v1442 = vunpack.c.l.b16 %v1344
      %v1443 = vunpack.c.l.b16 %v1345
      %v1444 = vunpack.c.l.b16 %v1346
      %v1445 = vunpack.c.l.b16 %v1347
      %v1446 = vpack.c.b16 %v1438, %v1437
      %v1447 = vpack.c.b16 %v1440, %v1439
      %v1448 = vpack.c.b16 %v1442, %v1441
      %v1449 = vpack.c.b16 %v1444, %v1443
      %v1450 = vpack.c.b16 %v1445, %v1445
      %v1456 = vsel %vm296, %v1412, 0
      %v1459 = vsel %vm296, %v1413, 0
      %v1462 = vsel %vm296, %v1414, 0
      %v1465 = vsel %vm296, %v1415, 0
      %v1468 = vsel %vm296, %v1416, 0
      %v1471 = vsel %vm296, %v1417, 0
      %v1474 = vsel %vm296, %v1418, 0
      %v1477 = vsel %vm296, %v1419, 0
      %v1480 = vsel %vm296, %v1420, 0
      %v1483 = vsel %vm296, %v1421, 0
      %v1486 = vsel %vm296, %v1422, 0
      %v1489 = vsel %vm296, %v1423, 0
      %v1492 = vsel %vm296, %v1424, 0
      %v1495 = vsel %vm296, %v1425, 0
      %v1498 = vsel %vm296, %v1426, 0
      %v1501 = vsel %vm296, %v1427, 0
      %v1504 = vsel %vm345, %v1450, 0
      %1506 = vmatpush.bf16.msra.mxu0 0
      %1507 = vmatpush.bf16.msra.mxu0 0
      %1508 = vmatpush.bf16.msra.mxu0 0
      %1509 = vmatpush.bf16.msra.mxu0 %v1504
      %1510 = vmatpush.bf16.msra.mxu0 %v1449
      %1511 = vmatpush.bf16.msra.mxu0 %v1448
      %1512 = vmatpush.bf16.msra.mxu0 %v1447
      %1513 = vmatpush.bf16.msra.mxu0 %v1446
      %1514 = vmatmul.bf16.gmra.mxu0 %v1456
      %v1515 = vpop.f32.mrf.mxu0
      %v1516 = vadd.f32 0.0, %v1515
      %v1517 = vpop.f32.mrf.mxu0
      %v1518 = vadd.f32 0.0, %v1517
      %1519 = vmatmul.bf16.gmra.mxu0 %v1459
      %v1520 = vpop.f32.mrf.mxu0
      %v1521 = vadd.f32 0.0, %v1520
      %v1522 = vpop.f32.mrf.mxu0
      %v1523 = vadd.f32 0.0, %v1522
      %1524 = vmatmul.bf16.gmra.mxu0 %v1462
      %v1525 = vpop.f32.mrf.mxu0
      %v1526 = vadd.f32 0.0, %v1525
      %v1527 = vpop.f32.mrf.mxu0
      %v1528 = vadd.f32 0.0, %v1527
      %1529 = vmatmul.bf16.gmra.mxu0 %v1465
      %v1530 = vpop.f32.mrf.mxu0
      %v1531 = vadd.f32 0.0, %v1530
      %v1532 = vpop.f32.mrf.mxu0
      %v1533 = vadd.f32 0.0, %v1532
      %1534 = vmatmul.bf16.gmra.mxu0 %v1468
      %v1535 = vpop.f32.mrf.mxu0
      %v1536 = vadd.f32 0.0, %v1535
      %v1537 = vpop.f32.mrf.mxu0
      %v1538 = vadd.f32 0.0, %v1537
      %1539 = vmatmul.bf16.gmra.mxu0 %v1471
      %v1540 = vpop.f32.mrf.mxu0
      %v1541 = vadd.f32 0.0, %v1540
      %v1542 = vpop.f32.mrf.mxu0
      %v1543 = vadd.f32 0.0, %v1542
      %1544 = vmatmul.bf16.gmra.mxu0 %v1474
      %v1545 = vpop.f32.mrf.mxu0
      %v1546 = vadd.f32 0.0, %v1545
      %v1547 = vpop.f32.mrf.mxu0
      %v1548 = vadd.f32 0.0, %v1547
      %1549 = vmatmul.bf16.gmra.mxu0 %v1477
      %v1550 = vpop.f32.mrf.mxu0
      %v1551 = vadd.f32 0.0, %v1550
      %v1552 = vpop.f32.mrf.mxu0
      %v1553 = vadd.f32 0.0, %v1552
      %1554 = vmatmul.bf16.gmra.mxu0 %v1480
      %v1555 = vpop.f32.mrf.mxu0
      %v1556 = vadd.f32 0.0, %v1555
      %v1557 = vpop.f32.mrf.mxu0
      %v1558 = vadd.f32 0.0, %v1557
      %1559 = vmatmul.bf16.gmra.mxu0 %v1483
      %v1560 = vpop.f32.mrf.mxu0
      %v1561 = vadd.f32 0.0, %v1560
      %v1562 = vpop.f32.mrf.mxu0
      %v1563 = vadd.f32 0.0, %v1562
      %1564 = vmatmul.bf16.gmra.mxu0 %v1486
      %v1565 = vpop.f32.mrf.mxu0
      %v1566 = vadd.f32 0.0, %v1565
      %v1567 = vpop.f32.mrf.mxu0
      %v1568 = vadd.f32 0.0, %v1567
      %1569 = vmatmul.bf16.gmra.mxu0 %v1489
      %v1570 = vpop.f32.mrf.mxu0
      %v1571 = vadd.f32 0.0, %v1570
      %v1572 = vpop.f32.mrf.mxu0
      %v1573 = vadd.f32 0.0, %v1572
      %1574 = vmatmul.bf16.gmra.mxu0 %v1492
      %v1575 = vpop.f32.mrf.mxu0
      %v1576 = vadd.f32 0.0, %v1575
      %v1577 = vpop.f32.mrf.mxu0
      %v1578 = vadd.f32 0.0, %v1577
      %1579 = vmatmul.bf16.gmra.mxu0 %v1495
      %v1580 = vpop.f32.mrf.mxu0
      %v1581 = vadd.f32 0.0, %v1580
      %v1582 = vpop.f32.mrf.mxu0
      %v1583 = vadd.f32 0.0, %v1582
      %1584 = vmatmul.bf16.gmra.mxu0 %v1498
      %v1585 = vpop.f32.mrf.mxu0
      %v1586 = vadd.f32 0.0, %v1585
      %v1587 = vpop.f32.mrf.mxu0
      %v1588 = vadd.f32 0.0, %v1587
      %1589 = vmatmul.bf16.gmra.mxu0 %v1501
      %v1590 = vpop.f32.mrf.mxu0
      %v1591 = vadd.f32 0.0, %v1590
      %v1592 = vpop.f32.mrf.mxu0
      %v1593 = vadd.f32 0.0, %v1592
      %1594 = vdwg.mxu0
      %v1595 = vtanh.pop %v1516
      %v1596 = vtanh.pop %v1518
      %v1597 = vtanh.pop %v1521
      %v1598 = vtanh.pop %v1523
      %v1599 = vtanh.pop %v1526
      %v1600 = vtanh.pop %v1528
      %v1601 = vtanh.pop %v1531
      %v1602 = vtanh.pop %v1533
      %v1603 = vtanh.pop %v1536
      %v1604 = vtanh.pop %v1538
      %v1605 = vtanh.pop %v1541
      %v1606 = vtanh.pop %v1543
      %v1607 = vtanh.pop %v1546
      %v1608 = vtanh.pop %v1548
      %v1609 = vtanh.pop %v1551
      %v1610 = vtanh.pop %v1553
      %v1611 = vtanh.pop %v1556
      %v1612 = vtanh.pop %v1558
      %v1613 = vtanh.pop %v1561
      %v1614 = vtanh.pop %v1563
      %v1615 = vtanh.pop %v1566
      %v1616 = vtanh.pop %v1568
      %v1617 = vtanh.pop %v1571
      %v1618 = vtanh.pop %v1573
      %v1619 = vtanh.pop %v1576
      %v1620 = vtanh.pop %v1578
      %v1621 = vtanh.pop %v1581
      %v1622 = vtanh.pop %v1583
      %v1623 = vtanh.pop %v1586
      %v1624 = vtanh.pop %v1588
      %v1625 = vtanh.pop %v1591
      %v1626 = vtanh.pop %v1593
      %v1627 = vpack.c.bf16 %v1595, %v1595
      %v1628 = vpack.c.bf16 %v1596, %v1596
      %v1629 = vpack.c.bf16 %v1597, %v1597
      %v1630 = vpack.c.bf16 %v1598, %v1598
      %v1631 = vpack.c.bf16 %v1599, %v1599
      %v1632 = vpack.c.bf16 %v1600, %v1600
      %v1633 = vpack.c.bf16 %v1601, %v1601
      %v1634 = vpack.c.bf16 %v1602, %v1602
      %v1635 = vpack.c.bf16 %v1603, %v1603
      %v1636 = vpack.c.bf16 %v1604, %v1604
      %v1637 = vpack.c.bf16 %v1605, %v1605
      %v1638 = vpack.c.bf16 %v1606, %v1606
      %v1639 = vpack.c.bf16 %v1607, %v1607
      %v1640 = vpack.c.bf16 %v1608, %v1608
      %v1641 = vpack.c.bf16 %v1609, %v1609
      %v1642 = vpack.c.bf16 %v1610, %v1610
      %v1643 = vpack.c.bf16 %v1611, %v1611
      %v1644 = vpack.c.bf16 %v1612, %v1612
      %v1645 = vpack.c.bf16 %v1613, %v1613
      %v1646 = vpack.c.bf16 %v1614, %v1614
      %v1647 = vpack.c.bf16 %v1615, %v1615
      %v1648 = vpack.c.bf16 %v1616, %v1616
      %v1649 = vpack.c.bf16 %v1617, %v1617
      %v1650 = vpack.c.bf16 %v1618, %v1618
      %v1651 = vpack.c.bf16 %v1619, %v1619
      %v1652 = vpack.c.bf16 %v1620, %v1620
      %v1653 = vpack.c.bf16 %v1621, %v1621
      %v1654 = vpack.c.bf16 %v1622, %v1622
      %v1655 = vpack.c.bf16 %v1623, %v1623
      %v1656 = vpack.c.bf16 %v1624, %v1624
      %v1657 = vpack.c.bf16 %v1625, %v1625
      %v1658 = vpack.c.bf16 %v1626, %v1626
      %s1659 = scalar_lea.vmem %s145, 384
      %1660 = vst [vmem:[%s1659] sm:$0xf] %v1627
      %1661 = vst [vmem:[%s1659 + $0x4] sm:$0xf] %v1628
      %1662 = vst [vmem:[%s1659 + $0x8] sm:$0xf] %v1629
      %1663 = vst [vmem:[%s1659 + $0xc] sm:$0xf] %v1630
      %1664 = vst [vmem:[%s1659 + $0x10] sm:$0xf] %v1631
      %1665 = vst [vmem:[%s1659 + $0x14] sm:$0xf] %v1632
      %1666 = vst [vmem:[%s1659 + $0x18] sm:$0xf] %v1633
      %1667 = vst [vmem:[%s1659 + $0x1c] sm:$0xf] %v1634
      %1668 = vst [vmem:[%s1659 + $0x20] sm:$0xf] %v1635
      %1669 = vst [vmem:[%s1659 + $0x24] sm:$0xf] %v1636
      %1670 = vst [vmem:[%s1659 + $0x28] sm:$0xf] %v1637
      %1671 = vst [vmem:[%s1659 + $0x2c] sm:$0xf] %v1638
      %1672 = vst [vmem:[%s1659 + $0x30] sm:$0xf] %v1639
      %1673 = vst [vmem:[%s1659 + $0x34] sm:$0xf] %v1640
      %1674 = vst [vmem:[%s1659 + $0x38] sm:$0xf] %v1641
      %1675 = vst [vmem:[%s1659 + $0x3c] sm:$0xf] %v1642
      %1676 = vst [vmem:[%s1659 + $0x40] sm:$0xf] %v1643
      %1677 = vst [vmem:[%s1659 + $0x44] sm:$0xf] %v1644
      %1678 = vst [vmem:[%s1659 + $0x48] sm:$0xf] %v1645
      %1679 = vst [vmem:[%s1659 + $0x4c] sm:$0xf] %v1646
      %1680 = vst [vmem:[%s1659 + $0x50] sm:$0xf] %v1647
      %1681 = vst [vmem:[%s1659 + $0x54] sm:$0xf] %v1648
      %1682 = vst [vmem:[%s1659 + $0x58] sm:$0xf] %v1649
      %1683 = vst [vmem:[%s1659 + $0x5c] sm:$0xf] %v1650
      %1684 = vst [vmem:[%s1659 + $0x60] sm:$0xf] %v1651
      %1685 = vst [vmem:[%s1659 + $0x64] sm:$0xf] %v1652
      %1686 = vst [vmem:[%s1659 + $0x68] sm:$0xf] %v1653
      %1687 = vst [vmem:[%s1659 + $0x6c] sm:$0xf] %v1654
      %1688 = vst [vmem:[%s1659 + $0x70] sm:$0xf] %v1655
      %1689 = vst [vmem:[%s1659 + $0x74] sm:$0xf] %v1656
      %1690 = vst [vmem:[%s1659 + $0x78] sm:$0xf] %v1657
      %1691 = vst [vmem:[%s1659 + $0x7c] sm:$0xf] %v1658
      %s1692 = smul.u32 128, %s13
      %p1693 = scmp.lt.s32.totalorder %s1692, 255
      %s1694 = scalar_select %p1693, %s1692, 255
      %s1695 = smul.addr %s1694, 4
      %s1696 = scalar_lea.vmem %s2, %s1695
      // Predicated region
      $region29: #{generator_forward.17} parent=27 // pred_check
        %p1697 = pneg %p78
      $region30: #{generator_forward.17} parent=27 // pred_check_branch
        %1699 = sbr.rel (%p1697) target = $region32
      $region31: #{generator_forward.17} parent=27 // pred_region
        %s1700 = smul.u32 128, %s13
      $region32: #{generator_forward.17} parent=27 // pred_fallthru
        _
    $region28: #{generator_forward.17} parent=5 // pred_fallthru
      _
    %p1701 = scmp.le.s32.totalorder 2, %s8
    // Predicated region
    $region33: #{generator_forward.17} parent=5 // pred_check
      %p1702 = pneg %p1701
    $region34: #{generator_forward.17} parent=5 // pred_check_branch
      %1704 = sbr.rel (%p1702) target = $region36
    $region35: #{generator_forward.17} parent=5 // pred_region
      %s1705 = ssub.s32 %s8, 2
      // Predicated region
      $region37: #{generator_forward.17} parent=35 // pred_check
        %p1706 = pneg %p84
      $region38: #{generator_forward.17} parent=35 // pred_check_branch
        %1708 = sbr.rel (%p1706) target = $region40
      $region39: #{generator_forward.17} parent=35 // pred_region
        %s1709 = smul.u32 128, %s14
        %p1710 = scmp.lt.s32.totalorder %s1709, 255
        %s1711 = scalar_select %p1710, %s1709, 255
        %s1712 = smul.addr %s1711, 4
        %s1713 = scalar_lea.vmem %s2, %s1712
      $region40: #{generator_forward.17} parent=35 // pred_fallthru
        _
    $region36: #{generator_forward.17} parent=5 // pred_fallthru
      _
  $region6: #{generator_forward.17} parent=0 // loop_footer
    %s12 = sadd.s32 1, %s8
  $region7: #{generator_forward.17} parent=0 // loop_footer_branch
    %7 = sbr.rel target = $region3
  $region8: #{generator_forward.17} parent=0 // loop_exit
    _

</llo_original>
